<compile_context>
chip_gen: v7x
topology: tpu7x:2x2x1
jax: 0.10.0
libtpu: 0.0.40
codegen_flags: <defaults>
</compile_context>

<pallas_src>
import functools
import numpy as np
import jax
import jax.numpy as jnp
from jax.experimental import pallas as pl
from jax.experimental.pallas import tpu as pltpu

LANES = 128          # lane-padded output-channel width for every kernel
BN_EPS = 1e-5        # PyTorch BatchNorm2d default


def _round_up(x, m):
    return (x + m - 1) // m * m


def _vmem():
    return pl.BlockSpec(memory_space=pltpu.MemorySpace.VMEM)


# ----------------------------- Pallas kernels -----------------------------

def _make_bn_relu_kernel(n_valid):
    """One generator block: folded-K MXU matmul -> BatchNorm(batch stats) -> ReLU."""
    inv_m = 1.0 / float(n_valid)

    def kernel(lhs_ref, w_ref, gamma_ref, beta_ref, o_ref):
        # Single matmul, bf16 operands, f32 accumulation (no scratch, no zero-init).
        acc = jnp.dot(lhs_ref[...], w_ref[...], preferred_element_type=jnp.float32)
        # BatchNorm2d training-mode batch statistics (biased variance).  Rows beyond
        # n_valid are exact zeros in the LHS, so they contribute 0 to both sums.
        s1 = jnp.sum(acc, axis=0, keepdims=True)
        s2 = jnp.sum(acc * acc, axis=0, keepdims=True)
        mean = s1 * inv_m
        var = jnp.maximum(s2 * inv_m - mean * mean, 0.0)
        scale = gamma_ref[...] * jax.lax.rsqrt(var + BN_EPS)
        shift = beta_ref[...] - mean * scale
        o_ref[...] = jnp.maximum(acc * scale + shift, 0.0).astype(o_ref.dtype)

    return kernel


def _tanh_kernel(lhs_ref, w_ref, o_ref):
    """Final block: folded Toeplitz matmul -> tanh (compact 56x128 epilogue)."""
    acc = jnp.dot(lhs_ref[...], w_ref[...], preferred_element_type=jnp.float32)
    o_ref[...] = jnp.tanh(acc)


def _bn_relu_block(lhs, wf, gamma_p, beta_p, n_valid):
    rows = lhs.shape[0]
    return pl.pallas_call(
        _make_bn_relu_kernel(n_valid),
        out_shape=jax.ShapeDtypeStruct((rows, LANES), jnp.bfloat16),
        in_specs=[_vmem()] * 4,
        out_specs=_vmem(),
    )(lhs, wf, gamma_p, beta_p)


def _tanh_block(lhs, wf):
    rows = lhs.shape[0]
    return pl.pallas_call(
        _tanh_kernel,
        out_shape=jax.ShapeDtypeStruct((rows, LANES), jnp.float32),
        in_specs=[_vmem()] * 2,
        out_specs=_vmem(),
    )(lhs, wf)


# ------------------------- plain-JAX glue (tiny) ---------------------------

def _dilate_pad(x, s, ppad):
    """Zero-dilate by stride s and zero-pad each spatial side by ppad (NHWC)."""
    n, h, w, c = x.shape
    if s > 1:
        xd = jnp.zeros((n, (h - 1) * s + 1, (w - 1) * s + 1, c), x.dtype)
        xd = xd.at[:, ::s, ::s, :].set(x)
    else:
        xd = x
    return jnp.pad(xd, ((0, 0), (ppad, ppad), (ppad, ppad), (0, 0)))


def _fold_taps(xp, k, ho, wo):
    """Implicit-GEMM LHS with all k*k taps folded into the contraction axis:
       LHS[(n,oh,ow), (kh*k+kw)*C + c] = xp[n, oh+kh, ow+kw, c]   (rows padded to 8)."""
    n, _, _, c = xp.shape
    taps = [xp[:, kh:kh + ho, kw:kw + wo, :] for kh in range(k) for kw in range(k)]
    lhs = jnp.concatenate(taps, axis=-1).reshape(n * ho * wo, k * k * c)
    rows = _round_up(n * ho * wo, 8)
    if rows != n * ho * wo:
        lhs = jnp.pad(lhs, ((0, rows - n * ho * wo), (0, 0)))
    return lhs.astype(jnp.bfloat16)


# --------------------- one-time (init) weight packing ----------------------

def _pack_convt_weight(w):
    """PyTorch ConvTranspose2d weight (Cin, Cout, k, k) -> folded (k*k*Cin, 128) bf16
       with Wf[(kh*k+kw)*Cin + ci, co] = w[ci, co, k-1-kh, k-1-kw]."""
    cin, cout, k, _ = w.shape
    wf = jnp.flip(w, axis=(2, 3)).transpose(2, 3, 0, 1).reshape(k * k * cin, cout)
    return jnp.pad(wf, ((0, 0), (0, LANES - cout))).astype(jnp.bfloat16)


def _pack_final_toeplitz(w, wp, wo):
    """Final ConvT (tiny Cout) as a spatial-in-lanes Toeplitz matrix:
       T[(kh*wp + v)*Cin + c, x*Cout + co] = w[c, co, k-1-kh, k-1-(v-x)] for 0<=v-x<k."""
    w = np.asarray(w, np.float32)
    cin, cout, k, _ = w.shape
    assert wo * cout <= LANES
    wflip = w[:, :, ::-1, ::-1].transpose(2, 3, 0, 1)        # (kh, kw, cin, cout)
    t = np.zeros((k, wp, cin, LANES), np.float32)
    for x in range(wo):
        for kw in range(k):
            t[:, x + kw, :, x * cout:(x + 1) * cout] = wflip[:, kw, :, :]
    return jnp.asarray(t.reshape(k * wp * cin, LANES), dtype=jnp.bfloat16)


def init_generator_params(key, nz, ngf, nc):
    ks = jax.random.split(key, 4)
    std = 0.02  # DCGAN-style deterministic init
    return {
        "w1": jax.random.normal(ks[0], (nz,      ngf * 4, 4, 4), jnp.float32) * std,
        "g1": jnp.ones((ngf * 4,), jnp.float32), "b1": jnp.zeros((ngf * 4,), jnp.float32),
        "w2": jax.random.normal(ks[1], (ngf * 4, ngf * 2, 3, 3), jnp.float32) * std,
        "g2": jnp.ones((ngf * 2,), jnp.float32), "b2": jnp.zeros((ngf * 2,), jnp.float32),
        "w3": jax.random.normal(ks[2], (ngf * 2, ngf,     4, 4), jnp.float32) * std,
        "g3": jnp.ones((ngf,), jnp.float32),     "b3": jnp.zeros((ngf,), jnp.float32),
        "w4": jax.random.normal(ks[3], (ngf,     nc,      4, 4), jnp.float32) * std,
    }


def pack_generator_params(params):
    """Hoisted, once-per-model weight repacking (runs eagerly, outside the forward)."""
    def pad_vec(v):
        return jnp.pad(v.astype(jnp.float32), (0, LANES - v.shape[0])).reshape(1, LANES)
    return {
        "w1": _pack_convt_weight(params["w1"]),
        "g1": pad_vec(params["g1"]), "b1": pad_vec(params["b1"]),
        "w2": _pack_convt_weight(params["w2"]),
        "g2": pad_vec(params["g2"]), "b2": pad_vec(params["b2"]),
        "w3": _pack_convt_weight(params["w3"]),
        "g3": pad_vec(params["g3"]), "b3": pad_vec(params["b3"]),
        # Final block (spatial sizes fixed by the architecture: 14x14 -> 28x28,
        # dilated+padded grid width 31).
        "w4t": _pack_final_toeplitz(params["w4"], wp=31, wo=28),
    }


# ------------------------------- Generator ---------------------------------

def generator_forward(z, packed, *, ngf, nc):
    n = z.shape[0]
    c1, c2, c3 = ngf * 4, ngf * 2, ngf

    x = jnp.transpose(z, (0, 2, 3, 1)).astype(jnp.bfloat16)     # NCHW -> NHWC, once

    # Block 1: ConvT(nz, ngf*4, 4, 1, 0) + BN + ReLU : 1x1 -> 4x4
    lhs = _fold_taps(_dilate_pad(x, 1, 3), 4, 4, 4)
    h = _bn_relu_block(lhs, packed["w1"], packed["g1"], packed["b1"], n * 16)
    x = h[: n * 16, :c1].reshape(n, 4, 4, c1)

    # Block 2: ConvT(ngf*4, ngf*2, 3, 2, 1) + BN + ReLU : 4x4 -> 7x7
    lhs = _fold_taps(_dilate_pad(x, 2, 1), 3, 7, 7)
    h = _bn_relu_block(lhs, packed["w2"], packed["g2"], packed["b2"], n * 49)
    x = h[: n * 49, :c2].reshape(n, 7, 7, c2)

    # Block 3: ConvT(ngf*2, ngf, 4, 2, 1) + BN + ReLU : 7x7 -> 14x14
    lhs = _fold_taps(_dilate_pad(x, 2, 2), 4, 14, 14)
    h = _bn_relu_block(lhs, packed["w3"], packed["g3"], packed["b3"], n * 196)
    x = h[: n * 196, :c3].reshape(n, 14, 14, c3)

    # Block 4: ConvT(ngf, nc, 4, 2, 1) + Tanh : 14x14 -> 28x28
    # Spatial-in-lanes Toeplitz GEMM: rows = (n, out_row), lanes = (out_col, nc).
    xp = _dilate_pad(x, 2, 2)                                   # (n, 31, 31, ngf)
    hp, wp = xp.shape[1], xp.shape[2]
    xl = xp.reshape(n, hp, wp * c3)
    lhs = jnp.concatenate([xl[:, kh:kh + 28, :] for kh in range(4)], axis=-1)
    lhs = lhs.reshape(n * 28, 4 * wp * c3).astype(jnp.bfloat16)
    rows4 = _round_up(n * 28, 8)
    if rows4 != n * 28:
        lhs = jnp.pad(lhs, ((0, rows4 - n * 28), (0, 0)))
    h = _tanh_block(lhs, packed["w4t"])                         # (rows4, 128) f32
    img = h[: n * 28, : 28 * nc].reshape(n, 28, 28, nc)
    return jnp.transpose(img, (0, 3, 1, 2))                     # NHWC -> NCHW, once


if __name__ == "__main__":
    nz, ngf, nc, batch = 32, 16, 1, 2
    key = jax.random.PRNGKey(0)
    k_param, k_input = jax.random.split(key)

    params = init_generator_params(k_param, nz, ngf, nc)
    packed = pack_generator_params(params)        # one-time packing, outside jit
    z = jax.random.normal(k_input, (batch, nz, 1, 1), jnp.float32)

    fwd = jax.jit(functools.partial(generator_forward, ngf=ngf, nc=nc))
    out = jax.block_until_ready(fwd(z, packed))

    assert out.shape == (batch, nc, 28, 28), out.shape
    assert bool(jnp.all(jnp.isfinite(out)))
    assert bool(jnp.all(jnp.abs(out) <= 1.0 + 1e-6))  # tanh range
    print("KERNEL_OK")
</pallas_src>

<mosaic_0001>
module attributes {stable_mosaic.version = 11 : i64} {
  func.func @kernel(%arg0: memref<32x512xbf16, #tpu.memory_space<vmem>>, %arg1: memref<512x128xbf16, #tpu.memory_space<vmem>>, %arg2: memref<1x128xf32, #tpu.memory_space<vmem>>, %arg3: memref<1x128xf32, #tpu.memory_space<vmem>>, %arg4: memref<32x128xbf16, #tpu.memory_space<vmem>>) attributes {dimension_semantics = [], scalar_prefetch = 0 : i64, scratch_operands = 0 : i64, tpu.core_type = #tpu.core_type<tc>} {
    %c0 = arith.constant 0 : index
    %c0_0 = arith.constant 0 : index
    %0 = vector.load %arg0[%c0, %c0_0] : memref<32x512xbf16, #tpu.memory_space<vmem>>, vector<32x512xbf16>
    %c0_1 = arith.constant 0 : index
    %c0_2 = arith.constant 0 : index
    %1 = vector.load %arg1[%c0_1, %c0_2] : memref<512x128xbf16, #tpu.memory_space<vmem>>, vector<512x128xbf16>
    %cst = arith.constant dense<0.000000e+00> : vector<32x128xf32>
    %2 = tpu.matmul %0, %1, %cst {dimension_numbers = #tpu.dot_dimension_numbers<[1], [0], [0], [1], [0, 0, 1, 1], [], []>} : vector<32x512xbf16>, vector<512x128xbf16>, vector<32x128xf32> -> vector<32x128xf32>
    %cst_3 = arith.constant dense<0.000000e+00> : vector<128xf32>
    %3 = vector.multi_reduction <add>, %2, %cst_3 [0] : vector<32x128xf32> to vector<128xf32>
    %4 = vector.shape_cast %3 : vector<128xf32> to vector<1x128xf32>
    %5 = arith.mulf %2, %2 : vector<32x128xf32>
    %cst_4 = arith.constant dense<0.000000e+00> : vector<128xf32>
    %6 = vector.multi_reduction <add>, %5, %cst_4 [0] : vector<32x128xf32> to vector<128xf32>
    %7 = vector.shape_cast %6 : vector<128xf32> to vector<1x128xf32>
    %cst_5 = arith.constant 3.125000e-02 : f32
    %8 = vector.broadcast %cst_5 : f32 to vector<1x128xf32>
    %9 = arith.mulf %4, %8 : vector<1x128xf32>
    %cst_6 = arith.constant 3.125000e-02 : f32
    %10 = vector.broadcast %cst_6 : f32 to vector<1x128xf32>
    %11 = arith.mulf %7, %10 : vector<1x128xf32>
    %12 = arith.mulf %9, %9 : vector<1x128xf32>
    %13 = arith.subf %11, %12 : vector<1x128xf32>
    %cst_7 = arith.constant 0.000000e+00 : f32
    %14 = vector.broadcast %cst_7 : f32 to vector<1x128xf32>
    %15 = arith.maximumf %13, %14 : vector<1x128xf32>
    %c0_8 = arith.constant 0 : index
    %c0_9 = arith.constant 0 : index
    %16 = vector.load %arg2[%c0_8, %c0_9] : memref<1x128xf32, #tpu.memory_space<vmem>>, vector<1x128xf32>
    %cst_10 = arith.constant 9.99999974E-6 : f32
    %17 = vector.broadcast %cst_10 : f32 to vector<1x128xf32>
    %18 = arith.addf %15, %17 : vector<1x128xf32>
    %19 = math.rsqrt %18 : vector<1x128xf32>
    %20 = arith.mulf %16, %19 : vector<1x128xf32>
    %c0_11 = arith.constant 0 : index
    %c0_12 = arith.constant 0 : index
    %21 = vector.load %arg3[%c0_11, %c0_12] : memref<1x128xf32, #tpu.memory_space<vmem>>, vector<1x128xf32>
    %22 = arith.mulf %9, %20 : vector<1x128xf32>
    %23 = arith.subf %21, %22 : vector<1x128xf32>
    %24 = vector.broadcast %20 : vector<1x128xf32> to vector<32x128xf32>
    %25 = arith.mulf %2, %24 : vector<32x128xf32>
    %26 = vector.broadcast %23 : vector<1x128xf32> to vector<32x128xf32>
    %27 = arith.addf %25, %26 : vector<32x128xf32>
    %cst_13 = arith.constant 0.000000e+00 : f32
    %28 = vector.broadcast %cst_13 : f32 to vector<32x128xf32>
    %29 = arith.maximumf %27, %28 : vector<32x128xf32>
    %30 = arith.truncf %29 : vector<32x128xf32> to vector<32x128xbf16>
    %c0_14 = arith.constant 0 : index
    %c0_15 = arith.constant 0 : index
    %31 = vector.load %arg4[%c0_14, %c0_15] : memref<32x128xbf16, #tpu.memory_space<vmem>>, vector<32x128xbf16>
    tpu.vector_store %arg4[%c0_14, %c0_15], %30 {strides = array<i32>} : memref<32x128xbf16, #tpu.memory_space<vmem>>, vector<32x128xbf16>,
    return
  }
}

module attributes {stable_mosaic.version = 11 : i64} {
  func.func @kernel(%arg0: memref<104x576xbf16, #tpu.memory_space<vmem>>, %arg1: memref<576x128xbf16, #tpu.memory_space<vmem>>, %arg2: memref<1x128xf32, #tpu.memory_space<vmem>>, %arg3: memref<1x128xf32, #tpu.memory_space<vmem>>, %arg4: memref<104x128xbf16, #tpu.memory_space<vmem>>) attributes {dimension_semantics = [], scalar_prefetch = 0 : i64, scratch_operands = 0 : i64, tpu.core_type = #tpu.core_type<tc>} {
    %c0 = arith.constant 0 : index
    %c0_0 = arith.constant 0 : index
    %0 = vector.load %arg0[%c0, %c0_0] : memref<104x576xbf16, #tpu.memory_space<vmem>>, vector<104x576xbf16>
    %c0_1 = arith.constant 0 : index
    %c0_2 = arith.constant 0 : index
    %1 = vector.load %arg1[%c0_1, %c0_2] : memref<576x128xbf16, #tpu.memory_space<vmem>>, vector<576x128xbf16>
    %cst = arith.constant dense<0.000000e+00> : vector<104x128xf32>
    %2 = tpu.matmul %0, %1, %cst {dimension_numbers = #tpu.dot_dimension_numbers<[1], [0], [0], [1], [0, 0, 1, 1], [], []>} : vector<104x576xbf16>, vector<576x128xbf16>, vector<104x128xf32> -> vector<104x128xf32>
    %cst_3 = arith.constant dense<0.000000e+00> : vector<128xf32>
    %3 = vector.multi_reduction <add>, %2, %cst_3 [0] : vector<104x128xf32> to vector<128xf32>
    %4 = vector.shape_cast %3 : vector<128xf32> to vector<1x128xf32>
    %5 = arith.mulf %2, %2 : vector<104x128xf32>
    %cst_4 = arith.constant dense<0.000000e+00> : vector<128xf32>
    %6 = vector.multi_reduction <add>, %5, %cst_4 [0] : vector<104x128xf32> to vector<128xf32>
    %7 = vector.shape_cast %6 : vector<128xf32> to vector<1x128xf32>
    %cst_5 = arith.constant 0.0102040814 : f32
    %8 = vector.broadcast %cst_5 : f32 to vector<1x128xf32>
    %9 = arith.mulf %4, %8 : vector<1x128xf32>
    %cst_6 = arith.constant 0.0102040814 : f32
    %10 = vector.broadcast %cst_6 : f32 to vector<1x128xf32>
    %11 = arith.mulf %7, %10 : vector<1x128xf32>
    %12 = arith.mulf %9, %9 : vector<1x128xf32>
    %13 = arith.subf %11, %12 : vector<1x128xf32>
    %cst_7 = arith.constant 0.000000e+00 : f32
    %14 = vector.broadcast %cst_7 : f32 to vector<1x128xf32>
    %15 = arith.maximumf %13, %14 : vector<1x128xf32>
    %c0_8 = arith.constant 0 : index
    %c0_9 = arith.constant 0 : index
    %16 = vector.load %arg2[%c0_8, %c0_9] : memref<1x128xf32, #tpu.memory_space<vmem>>, vector<1x128xf32>
    %cst_10 = arith.constant 9.99999974E-6 : f32
    %17 = vector.broadcast %cst_10 : f32 to vector<1x128xf32>
    %18 = arith.addf %15, %17 : vector<1x128xf32>
    %19 = math.rsqrt %18 : vector<1x128xf32>
    %20 = arith.mulf %16, %19 : vector<1x128xf32>
    %c0_11 = arith.constant 0 : index
    %c0_12 = arith.constant 0 : index
    %21 = vector.load %arg3[%c0_11, %c0_12] : memref<1x128xf32, #tpu.memory_space<vmem>>, vector<1x128xf32>
    %22 = arith.mulf %9, %20 : vector<1x128xf32>
    %23 = arith.subf %21, %22 : vector<1x128xf32>
    %24 = vector.broadcast %20 : vector<1x128xf32> to vector<104x128xf32>
    %25 = arith.mulf %2, %24 : vector<104x128xf32>
    %26 = vector.broadcast %23 : vector<1x128xf32> to vector<104x128xf32>
    %27 = arith.addf %25, %26 : vector<104x128xf32>
    %cst_13 = arith.constant 0.000000e+00 : f32
    %28 = vector.broadcast %cst_13 : f32 to vector<104x128xf32>
    %29 = arith.maximumf %27, %28 : vector<104x128xf32>
    %30 = arith.truncf %29 : vector<104x128xf32> to vector<104x128xbf16>
    %c0_14 = arith.constant 0 : index
    %c0_15 = arith.constant 0 : index
    %31 = vector.load %arg4[%c0_14, %c0_15] : memref<104x128xbf16, #tpu.memory_space<vmem>>, vector<104x128xbf16>
    tpu.vector_store %arg4[%c0_14, %c0_15], %30 {strides = array<i32>} : memref<104x128xbf16, #tpu.memory_space<vmem>>, vector<104x128xbf16>,
    return
  }
}

module attributes {stable_mosaic.version = 11 : i64} {
  func.func @kernel(%arg0: memref<392x512xbf16, #tpu.memory_space<vmem>>, %arg1: memref<512x128xbf16, #tpu.memory_space<vmem>>, %arg2: memref<1x128xf32, #tpu.memory_space<vmem>>, %arg3: memref<1x128xf32, #tpu.memory_space<vmem>>, %arg4: memref<392x128xbf16, #tpu.memory_space<vmem>>) attributes {dimension_semantics = [], scalar_prefetch = 0 : i64, scratch_operands = 0 : i64, tpu.core_type = #tpu.core_type<tc>} {
    %c0 = arith.constant 0 : index
    %c0_0 = arith.constant 0 : index
    %0 = vector.load %arg0[%c0, %c0_0] : memref<392x512xbf16, #tpu.memory_space<vmem>>, vector<392x512xbf16>
    %c0_1 = arith.constant 0 : index
    %c0_2 = arith.constant 0 : index
    %1 = vector.load %arg1[%c0_1, %c0_2] : memref<512x128xbf16, #tpu.memory_space<vmem>>, vector<512x128xbf16>
    %cst = arith.constant dense<0.000000e+00> : vector<392x128xf32>
    %2 = tpu.matmul %0, %1, %cst {dimension_numbers = #tpu.dot_dimension_numbers<[1], [0], [0], [1], [0, 0, 1, 1], [], []>} : vector<392x512xbf16>, vector<512x128xbf16>, vector<392x128xf32> -> vector<392x128xf32>
    %cst_3 = arith.constant dense<0.000000e+00> : vector<128xf32>
    %3 = vector.multi_reduction <add>, %2, %cst_3 [0] : vector<392x128xf32> to vector<128xf32>
    %4 = vector.shape_cast %3 : vector<128xf32> to vector<1x128xf32>
    %5 = arith.mulf %2, %2 : vector<392x128xf32>
    %cst_4 = arith.constant dense<0.000000e+00> : vector<128xf32>
    %6 = vector.multi_reduction <add>, %5, %cst_4 [0] : vector<392x128xf32> to vector<128xf32>
    %7 = vector.shape_cast %6 : vector<128xf32> to vector<1x128xf32>
    %cst_5 = arith.constant 0.00255102036 : f32
    %8 = vector.broadcast %cst_5 : f32 to vector<1x128xf32>
    %9 = arith.mulf %4, %8 : vector<1x128xf32>
    %cst_6 = arith.constant 0.00255102036 : f32
    %10 = vector.broadcast %cst_6 : f32 to vector<1x128xf32>
    %11 = arith.mulf %7, %10 : vector<1x128xf32>
    %12 = arith.mulf %9, %9 : vector<1x128xf32>
    %13 = arith.subf %11, %12 : vector<1x128xf32>
    %cst_7 = arith.constant 0.000000e+00 : f32
    %14 = vector.broadcast %cst_7 : f32 to vector<1x128xf32>
    %15 = arith.maximumf %13, %14 : vector<1x128xf32>
    %c0_8 = arith.constant 0 : index
    %c0_9 = arith.constant 0 : index
    %16 = vector.load %arg2[%c0_8, %c0_9] : memref<1x128xf32, #tpu.memory_space<vmem>>, vector<1x128xf32>
    %cst_10 = arith.constant 9.99999974E-6 : f32
    %17 = vector.broadcast %cst_10 : f32 to vector<1x128xf32>
    %18 = arith.addf %15, %17 : vector<1x128xf32>
    %19 = math.rsqrt %18 : vector<1x128xf32>
    %20 = arith.mulf %16, %19 : vector<1x128xf32>
    %c0_11 = arith.constant 0 : index
    %c0_12 = arith.constant 0 : index
    %21 = vector.load %arg3[%c0_11, %c0_12] : memref<1x128xf32, #tpu.memory_space<vmem>>, vector<1x128xf32>
    %22 = arith.mulf %9, %20 : vector<1x128xf32>
    %23 = arith.subf %21, %22 : vector<1x128xf32>
    %24 = vector.broadcast %20 : vector<1x128xf32> to vector<392x128xf32>
    %25 = arith.mulf %2, %24 : vector<392x128xf32>
    %26 = vector.broadcast %23 : vector<1x128xf32> to vector<392x128xf32>
    %27 = arith.addf %25, %26 : vector<392x128xf32>
    %cst_13 = arith.constant 0.000000e+00 : f32
    %28 = vector.broadcast %cst_13 : f32 to vector<392x128xf32>
    %29 = arith.maximumf %27, %28 : vector<392x128xf32>
    %30 = arith.truncf %29 : vector<392x128xf32> to vector<392x128xbf16>
    %c0_14 = arith.constant 0 : index
    %c0_15 = arith.constant 0 : index
    %31 = vector.load %arg4[%c0_14, %c0_15] : memref<392x128xbf16, #tpu.memory_space<vmem>>, vector<392x128xbf16>
    tpu.vector_store %arg4[%c0_14, %c0_15], %30 {strides = array<i32>} : memref<392x128xbf16, #tpu.memory_space<vmem>>, vector<392x128xbf16>,
    return
  }
}

module attributes {stable_mosaic.version = 11 : i64} {
  func.func @_tanh_kernel(%arg0: memref<56x1984xbf16, #tpu.memory_space<vmem>>, %arg1: memref<1984x128xbf16, #tpu.memory_space<vmem>>, %arg2: memref<56x128xf32, #tpu.memory_space<vmem>>) attributes {dimension_semantics = [], scalar_prefetch = 0 : i64, scratch_operands = 0 : i64, tpu.core_type = #tpu.core_type<tc>} {
    %c0 = arith.constant 0 : index
    %c0_0 = arith.constant 0 : index
    %0 = vector.load %arg0[%c0, %c0_0] : memref<56x1984xbf16, #tpu.memory_space<vmem>>, vector<56x1984xbf16>
    %c0_1 = arith.constant 0 : index
    %c0_2 = arith.constant 0 : index
    %1 = vector.load %arg1[%c0_1, %c0_2] : memref<1984x128xbf16, #tpu.memory_space<vmem>>, vector<1984x128xbf16>
    %cst = arith.constant dense<0.000000e+00> : vector<56x128xf32>
    %2 = tpu.matmul %0, %1, %cst {dimension_numbers = #tpu.dot_dimension_numbers<[1], [0], [0], [1], [0, 0, 1, 1], [], []>} : vector<56x1984xbf16>, vector<1984x128xbf16>, vector<56x128xf32> -> vector<56x128xf32>
    %3 = math.tanh %2 : vector<56x128xf32>
    %c0_3 = arith.constant 0 : index
    %c0_4 = arith.constant 0 : index
    %4 = vector.load %arg2[%c0_3, %c0_4] : memref<56x128xf32, #tpu.memory_space<vmem>>, vector<56x128xf32>
    tpu.vector_store %arg2[%c0_3, %c0_4], %3 {strides = array<i32>} : memref<56x128xf32, #tpu.memory_space<vmem>>, vector<56x128xf32>,
    return
  }
}

</mosaic_0001>

<llo_original>
// kernel: generator_forward.4
$region0: #{generator_forward.4}
  #allocation0 [shape = 'u32[]', space=smem, size = 0x4, offset = 0x4, fixed_abs, tag = 'smem constant byte address 0x4 - core index']
  #allocation1 [shape = 'u32[144,128]{1,0:T(1,128)}', space=vmem, size = 0x12000, scoped, tag = 'internal scratch']
  %s0 = inlined_call_operand.vmem [shape: bf16[32,512], index: 0, kind: input, shape index: {}]
  %s1 = inlined_call_operand.vmem [shape: bf16[512,128], index: 1, kind: input, shape index: {}]
  %s2 = inlined_call_operand.vmem [shape: f32[1,128], index: 2, kind: input, shape index: {}]
  %s3 = inlined_call_operand.vmem [shape: f32[1,128], index: 3, kind: input, shape index: {}]
  %s4 = inlined_call_operand.vmem [shape: bf16[32,128], index: 4, kind: output, shape index: {}]
  %s5 = sld [smem:[#allocation0]]
  $region26: #{generator_forward.4} parent=0
    _
  %s7 = ssub.s32 1, %s5
  %s8 = scalar_select 0, %s7, %s5
  // Predicated region
  $region2: #{generator_forward.4} parent=0 // pred_check
    _
  $region3: #{generator_forward.4} parent=0 // pred_check_branch
    %10 = sbr.rel (0) target = $region5
  $region4: #{generator_forward.4} parent=0 // pred_region
    _
  $region5: #{generator_forward.4} parent=0 // pred_fallthru
    _
  // Predicated region
  $region6: #{generator_forward.4} parent=0 // pred_check
    _
  $region7: #{generator_forward.4} parent=0 // pred_check_branch
    %12 = sbr.rel (0) target = $region9
  $region8: #{generator_forward.4} parent=0 // pred_region
    _
  $region9: #{generator_forward.4} parent=0 // pred_fallthru
    _
  // Predicated region
  $region10: #{generator_forward.4} parent=0 // pred_check
    _
  $region11: #{generator_forward.4} parent=0 // pred_check_branch
    %14 = sbr.rel (0) target = $region13
  $region12: #{generator_forward.4} parent=0 // pred_region
    _
  $region13: #{generator_forward.4} parent=0 // pred_fallthru
    _
  // Predicated region
  $region14: #{generator_forward.4} parent=0 // pred_check
    _
  $region15: #{generator_forward.4} parent=0 // pred_check_branch
    %16 = sbr.rel (0) target = $region17
  $region16: #{generator_forward.4} parent=0 // pred_region
    _
  $region17: #{generator_forward.4} parent=0 // pred_fallthru
    _
  %v18 = vld [vmem:[%s0] sm:$0xff]
  %v19 = vld [vmem:[%s0 + $0x8] sm:$0xff]
  %v20 = vld [vmem:[%s0 + $0x10] sm:$0xff]
  %v21 = vld [vmem:[%s0 + $0x18] sm:$0xff]
  %v22 = vld [vmem:[%s0 + $0x20] sm:$0xff]
  %v23 = vld [vmem:[%s0 + $0x28] sm:$0xff]
  %v24 = vld [vmem:[%s0 + $0x30] sm:$0xff]
  %v25 = vld [vmem:[%s0 + $0x38] sm:$0xff]
  %v26 = vld [vmem:[%s1] sm:$0xf]
  %v27 = vld [vmem:[%s1 + $0x4] sm:$0xf]
  %v28 = vld [vmem:[%s1 + $0x8] sm:$0xf]
  %v29 = vld [vmem:[%s1 + $0xc] sm:$0xf]
  %v30 = vld [vmem:[%s1 + $0x10] sm:$0xf]
  %v31 = vld [vmem:[%s1 + $0x14] sm:$0xf]
  %v32 = vld [vmem:[%s1 + $0x18] sm:$0xf]
  %v33 = vld [vmem:[%s1 + $0x1c] sm:$0xf]
  %v34 = vld [vmem:[%s1 + $0x20] sm:$0xf]
  %v35 = vld [vmem:[%s1 + $0x24] sm:$0xf]
  %v36 = vld [vmem:[%s1 + $0x28] sm:$0xf]
  %v37 = vld [vmem:[%s1 + $0x2c] sm:$0xf]
  %v38 = vld [vmem:[%s1 + $0x30] sm:$0xf]
  %v39 = vld [vmem:[%s1 + $0x34] sm:$0xf]
  %v40 = vld [vmem:[%s1 + $0x38] sm:$0xf]
  %v41 = vld [vmem:[%s1 + $0x3c] sm:$0xf]
  %v42 = vld [vmem:[%s1 + $0x40] sm:$0xf]
  %v43 = vld [vmem:[%s1 + $0x44] sm:$0xf]
  %v44 = vld [vmem:[%s1 + $0x48] sm:$0xf]
  %v45 = vld [vmem:[%s1 + $0x4c] sm:$0xf]
  %v46 = vld [vmem:[%s1 + $0x50] sm:$0xf]
  %v47 = vld [vmem:[%s1 + $0x54] sm:$0xf]
  %v48 = vld [vmem:[%s1 + $0x58] sm:$0xf]
  %v49 = vld [vmem:[%s1 + $0x5c] sm:$0xf]
  %v50 = vld [vmem:[%s1 + $0x60] sm:$0xf]
  %v51 = vld [vmem:[%s1 + $0x64] sm:$0xf]
  %v52 = vld [vmem:[%s1 + $0x68] sm:$0xf]
  %v53 = vld [vmem:[%s1 + $0x6c] sm:$0xf]
  %v54 = vld [vmem:[%s1 + $0x70] sm:$0xf]
  %v55 = vld [vmem:[%s1 + $0x74] sm:$0xf]
  %v56 = vld [vmem:[%s1 + $0x78] sm:$0xf]
  %v57 = vld [vmem:[%s1 + $0x7c] sm:$0xf]
  %v58 = vld [vmem:[%s1 + $0x80] sm:$0xf]
  %v59 = vld [vmem:[%s1 + $0x84] sm:$0xf]
  %v60 = vld [vmem:[%s1 + $0x88] sm:$0xf]
  %v61 = vld [vmem:[%s1 + $0x8c] sm:$0xf]
  %v62 = vld [vmem:[%s1 + $0x90] sm:$0xf]
  %v63 = vld [vmem:[%s1 + $0x94] sm:$0xf]
  %v64 = vld [vmem:[%s1 + $0x98] sm:$0xf]
  %v65 = vld [vmem:[%s1 + $0x9c] sm:$0xf]
  %v66 = vld [vmem:[%s1 + $0xa0] sm:$0xf]
  %v67 = vld [vmem:[%s1 + $0xa4] sm:$0xf]
  %v68 = vld [vmem:[%s1 + $0xa8] sm:$0xf]
  %v69 = vld [vmem:[%s1 + $0xac] sm:$0xf]
  %v70 = vld [vmem:[%s1 + $0xb0] sm:$0xf]
  %v71 = vld [vmem:[%s1 + $0xb4] sm:$0xf]
  %v72 = vld [vmem:[%s1 + $0xb8] sm:$0xf]
  %v73 = vld [vmem:[%s1 + $0xbc] sm:$0xf]
  %v74 = vld [vmem:[%s1 + $0xc0] sm:$0xf]
  %v75 = vld [vmem:[%s1 + $0xc4] sm:$0xf]
  %v76 = vld [vmem:[%s1 + $0xc8] sm:$0xf]
  %v77 = vld [vmem:[%s1 + $0xcc] sm:$0xf]
  %v78 = vld [vmem:[%s1 + $0xd0] sm:$0xf]
  %v79 = vld [vmem:[%s1 + $0xd4] sm:$0xf]
  %v80 = vld [vmem:[%s1 + $0xd8] sm:$0xf]
  %v81 = vld [vmem:[%s1 + $0xdc] sm:$0xf]
  %v82 = vld [vmem:[%s1 + $0xe0] sm:$0xf]
  %v83 = vld [vmem:[%s1 + $0xe4] sm:$0xf]
  %v84 = vld [vmem:[%s1 + $0xe8] sm:$0xf]
  %v85 = vld [vmem:[%s1 + $0xec] sm:$0xf]
  %v86 = vld [vmem:[%s1 + $0xf0] sm:$0xf]
  %v87 = vld [vmem:[%s1 + $0xf4] sm:$0xf]
  %v88 = vld [vmem:[%s1 + $0xf8] sm:$0xf]
  %v89 = vld [vmem:[%s1 + $0xfc] sm:$0xf]
  %v98 = vunpack.c.l.b16 %v18
  %v99 = vunpack.c.h.b16 %v18
  %v100 = vunpack.c.l.b16 %v19
  %v101 = vunpack.c.h.b16 %v19
  %v102 = vunpack.c.l.b16 %v20
  %v103 = vunpack.c.h.b16 %v20
  %v104 = vunpack.c.l.b16 %v21
  %v105 = vunpack.c.h.b16 %v21
  %v106 = vunpack.c.l.b16 %v22
  %v107 = vunpack.c.h.b16 %v22
  %v108 = vunpack.c.l.b16 %v23
  %v109 = vunpack.c.h.b16 %v23
  %v110 = vunpack.c.l.b16 %v24
  %v111 = vunpack.c.h.b16 %v24
  %v112 = vunpack.c.l.b16 %v25
  %v113 = vunpack.c.h.b16 %v25
  %v114 = vpack.c.b16 %v102, %v98
  %v115 = vpack.c.b16 %v103, %v99
  %v116 = vpack.c.b16 %v104, %v100
  %v117 = vpack.c.b16 %v105, %v101
  %v118 = vpack.c.b16 %v110, %v106
  %v119 = vpack.c.b16 %v111, %v107
  %v120 = vpack.c.b16 %v112, %v108
  %v121 = vpack.c.b16 %v113, %v109
  %v194 = vunpack.c.l.b16 %v26
  %v195 = vunpack.c.l.b16 %v27
  %v196 = vunpack.c.l.b16 %v28
  %v197 = vunpack.c.l.b16 %v29
  %v198 = vunpack.c.l.b16 %v30
  %v199 = vunpack.c.l.b16 %v31
  %v200 = vunpack.c.l.b16 %v32
  %v201 = vunpack.c.l.b16 %v33
  %v202 = vunpack.c.l.b16 %v34
  %v203 = vunpack.c.l.b16 %v35
  %v204 = vunpack.c.l.b16 %v36
  %v205 = vunpack.c.l.b16 %v37
  %v206 = vunpack.c.l.b16 %v38
  %v207 = vunpack.c.l.b16 %v39
  %v208 = vunpack.c.l.b16 %v40
  %v209 = vunpack.c.l.b16 %v41
  %v210 = vunpack.c.l.b16 %v42
  %v211 = vunpack.c.l.b16 %v43
  %v212 = vunpack.c.l.b16 %v44
  %v213 = vunpack.c.l.b16 %v45
  %v214 = vunpack.c.l.b16 %v46
  %v215 = vunpack.c.l.b16 %v47
  %v216 = vunpack.c.l.b16 %v48
  %v217 = vunpack.c.l.b16 %v49
  %v218 = vunpack.c.l.b16 %v50
  %v219 = vunpack.c.l.b16 %v51
  %v220 = vunpack.c.l.b16 %v52
  %v221 = vunpack.c.l.b16 %v53
  %v222 = vunpack.c.l.b16 %v54
  %v223 = vunpack.c.l.b16 %v55
  %v224 = vunpack.c.l.b16 %v56
  %v225 = vunpack.c.l.b16 %v57
  %v226 = vunpack.c.l.b16 %v58
  %v227 = vunpack.c.l.b16 %v59
  %v228 = vunpack.c.l.b16 %v60
  %v229 = vunpack.c.l.b16 %v61
  %v230 = vunpack.c.l.b16 %v62
  %v231 = vunpack.c.l.b16 %v63
  %v232 = vunpack.c.l.b16 %v64
  %v233 = vunpack.c.l.b16 %v65
  %v234 = vunpack.c.l.b16 %v66
  %v235 = vunpack.c.l.b16 %v67
  %v236 = vunpack.c.l.b16 %v68
  %v237 = vunpack.c.l.b16 %v69
  %v238 = vunpack.c.l.b16 %v70
  %v239 = vunpack.c.l.b16 %v71
  %v240 = vunpack.c.l.b16 %v72
  %v241 = vunpack.c.l.b16 %v73
  %v242 = vunpack.c.l.b16 %v74
  %v243 = vunpack.c.l.b16 %v75
  %v244 = vunpack.c.l.b16 %v76
  %v245 = vunpack.c.l.b16 %v77
  %v246 = vunpack.c.l.b16 %v78
  %v247 = vunpack.c.l.b16 %v79
  %v248 = vunpack.c.l.b16 %v80
  %v249 = vunpack.c.l.b16 %v81
  %v250 = vunpack.c.l.b16 %v82
  %v251 = vunpack.c.l.b16 %v83
  %v252 = vunpack.c.l.b16 %v84
  %v253 = vunpack.c.l.b16 %v85
  %v254 = vunpack.c.l.b16 %v86
  %v255 = vunpack.c.l.b16 %v87
  %v256 = vunpack.c.l.b16 %v88
  %v257 = vunpack.c.l.b16 %v89
  %v258 = vpack.c.b16 %v195, %v194
  %v259 = vpack.c.b16 %v197, %v196
  %v260 = vpack.c.b16 %v199, %v198
  %v261 = vpack.c.b16 %v201, %v200
  %v262 = vpack.c.b16 %v203, %v202
  %v263 = vpack.c.b16 %v205, %v204
  %v264 = vpack.c.b16 %v207, %v206
  %v265 = vpack.c.b16 %v209, %v208
  %v266 = vpack.c.b16 %v211, %v210
  %v267 = vpack.c.b16 %v213, %v212
  %v268 = vpack.c.b16 %v215, %v214
  %v269 = vpack.c.b16 %v217, %v216
  %v270 = vpack.c.b16 %v219, %v218
  %v271 = vpack.c.b16 %v221, %v220
  %v272 = vpack.c.b16 %v223, %v222
  %v273 = vpack.c.b16 %v225, %v224
  %v274 = vpack.c.b16 %v227, %v226
  %v275 = vpack.c.b16 %v229, %v228
  %v276 = vpack.c.b16 %v231, %v230
  %v277 = vpack.c.b16 %v233, %v232
  %v278 = vpack.c.b16 %v235, %v234
  %v279 = vpack.c.b16 %v237, %v236
  %v280 = vpack.c.b16 %v239, %v238
  %v281 = vpack.c.b16 %v241, %v240
  %v282 = vpack.c.b16 %v243, %v242
  %v283 = vpack.c.b16 %v245, %v244
  %v284 = vpack.c.b16 %v247, %v246
  %v285 = vpack.c.b16 %v249, %v248
  %v286 = vpack.c.b16 %v251, %v250
  %v287 = vpack.c.b16 %v253, %v252
  %v288 = vpack.c.b16 %v255, %v254
  %v289 = vpack.c.b16 %v257, %v256
  %322 = vmatprep.subr.bf16.mxu0 0
  %323 = vmatpush1.bf16.msra.mxu0 %v258
  %324 = vmatprep.subr.bf16.mxu0 0
  %325 = vmatpush1.bf16.msra.mxu0 %v259
  %326 = vmatprep.subr.bf16.mxu0 0
  %327 = vmatpush1.bf16.msra.mxu0 %v260
  %328 = vmatprep.subr.bf16.mxu0 0
  %329 = vmatpush1.bf16.msra.mxu0 %v261
  %330 = vmatprep.subr.bf16.mxu0 0
  %331 = vmatpush1.bf16.msra.mxu0 %v262
  %332 = vmatprep.subr.bf16.mxu0 0
  %333 = vmatpush1.bf16.msra.mxu0 %v263
  %334 = vmatprep.subr.bf16.mxu0 0
  %335 = vmatpush1.bf16.msra.mxu0 %v264
  %336 = vmatprep.subr.bf16.mxu0 0
  %337 = vmatpush1.bf16.msra.mxu0 %v265
  %338 = vmatprep.subr.bf16.mxu0 0
  %339 = vmatpush1.bf16.msra.mxu0 %v266
  %340 = vmatprep.subr.bf16.mxu0 0
  %341 = vmatpush1.bf16.msra.mxu0 %v267
  %342 = vmatprep.subr.bf16.mxu0 0
  %343 = vmatpush1.bf16.msra.mxu0 %v268
  %344 = vmatprep.subr.bf16.mxu0 0
  %345 = vmatpush1.bf16.msra.mxu0 %v269
  %346 = vmatprep.subr.bf16.mxu0 0
  %347 = vmatpush1.bf16.msra.mxu0 %v270
  %348 = vmatprep.subr.bf16.mxu0 0
  %349 = vmatpush1.bf16.msra.mxu0 %v271
  %350 = vmatprep.subr.bf16.mxu0 0
  %351 = vmatpush1.bf16.msra.mxu0 %v272
  %352 = vmatprep.subr.bf16.mxu0 0
  %353 = vmatpush1.bf16.msra.mxu0 %v273
  %354 = vmatprep.mubr.bf16.mxu0 %v115
  %355 = vmatmul.mubr.bf16.gmra.mrb[0].mxu0 %v114
  %v356 = vpop.f32.mrb[0].mxu0
  %v357 = vadd.f32 0.0, %v356
  %v358 = vpop.f32.mrb[0].mxu0
  %v359 = vpop.f32.mrb[0].mxu0
  %v360 = vadd.f32 0.0, %v359
  %v361 = vpop.f32.mrb[0].mxu0
  %362 = vmatprep.mubr.bf16.mxu0 %v119
  %363 = vmatmul.mubr.bf16.gmra.mrb[0].mxu0 %v118
  %v364 = vpop.f32.mrb[0].mxu0
  %v365 = vadd.f32 0.0, %v364
  %v366 = vpop.f32.mrb[0].mxu0
  %v367 = vpop.f32.mrb[0].mxu0
  %v368 = vadd.f32 0.0, %v367
  %v369 = vpop.f32.mrb[0].mxu0
  %370 = vdwg.mxu0
  %371 = vmatprep.subr.bf16.mxu0 0
  %372 = vmatpush1.bf16.msra.mxu0 %v274
  %373 = vmatprep.subr.bf16.mxu0 0
  %374 = vmatpush1.bf16.msra.mxu0 %v275
  %375 = vmatprep.subr.bf16.mxu0 0
  %376 = vmatpush1.bf16.msra.mxu0 %v276
  %377 = vmatprep.subr.bf16.mxu0 0
  %378 = vmatpush1.bf16.msra.mxu0 %v277
  %379 = vmatprep.subr.bf16.mxu0 0
  %380 = vmatpush1.bf16.msra.mxu0 %v278
  %381 = vmatprep.subr.bf16.mxu0 0
  %382 = vmatpush1.bf16.msra.mxu0 %v279
  %383 = vmatprep.subr.bf16.mxu0 0
  %384 = vmatpush1.bf16.msra.mxu0 %v280
  %385 = vmatprep.subr.bf16.mxu0 0
  %386 = vmatpush1.bf16.msra.mxu0 %v281
  %387 = vmatprep.subr.bf16.mxu0 0
  %388 = vmatpush1.bf16.msra.mxu0 %v282
  %389 = vmatprep.subr.bf16.mxu0 0
  %390 = vmatpush1.bf16.msra.mxu0 %v283
  %391 = vmatprep.subr.bf16.mxu0 0
  %392 = vmatpush1.bf16.msra.mxu0 %v284
  %393 = vmatprep.subr.bf16.mxu0 0
  %394 = vmatpush1.bf16.msra.mxu0 %v285
  %395 = vmatprep.subr.bf16.mxu0 0
  %396 = vmatpush1.bf16.msra.mxu0 %v286
  %397 = vmatprep.subr.bf16.mxu0 0
  %398 = vmatpush1.bf16.msra.mxu0 %v287
  %399 = vmatprep.subr.bf16.mxu0 0
  %400 = vmatpush1.bf16.msra.mxu0 %v288
  %401 = vmatprep.subr.bf16.mxu0 0
  %402 = vmatpush1.bf16.msra.mxu0 %v289
  %403 = vmatprep.mubr.bf16.mxu0 %v117
  %404 = vmatmul.mubr.bf16.gmra.mrb[0].mxu0 %v116
  %v405 = vpop.f32.mrb[0].mxu0
  %v406 = vadd.f32 %v357, %v405
  %v407 = vpop.f32.mrb[0].mxu0
  %v408 = vpop.f32.mrb[0].mxu0
  %v409 = vadd.f32 %v360, %v408
  %v410 = vpop.f32.mrb[0].mxu0
  %411 = vmatprep.mubr.bf16.mxu0 %v121
  %412 = vmatmul.mubr.bf16.gmra.mrb[0].mxu0 %v120
  %v413 = vpop.f32.mrb[0].mxu0
  %v414 = vadd.f32 %v365, %v413
  %v415 = vpop.f32.mrb[0].mxu0
  %v416 = vpop.f32.mrb[0].mxu0
  %v417 = vadd.f32 %v368, %v416
  %v418 = vpop.f32.mrb[0].mxu0
  %419 = vdwg.mxu0
  %v420 = vadd.f32 %v406, %v409
  %v421 = vadd.f32 %v420, %v414
  %v422 = vadd.f32 %v421, %v417
  %v423 = vrot.slane %v422, 4
  %v424 = vadd.f32 %v422, %v423
  %v425 = vrot.slane %v424, 2
  %v426 = vadd.f32 %v424, %v425
  %v427 = vrot.slane %v426, 1
  %v428 = vadd.f32 %v426, %v427
  %v429 = vmul.f32 %v406, %v406
  %v430 = vmul.f32 %v409, %v409
  %v431 = vmul.f32 %v414, %v414
  %v432 = vmul.f32 %v417, %v417
  %v433 = vadd.f32 %v429, %v430
  %v434 = vadd.f32 %v433, %v431
  %v435 = vadd.f32 %v434, %v432
  %v436 = vrot.slane %v435, 4
  %v437 = vadd.f32 %v435, %v436
  %v438 = vrot.slane %v437, 2
  %v439 = vadd.f32 %v437, %v438
  %v440 = vrot.slane %v439, 1
  %v441 = vadd.f32 %v439, %v440
  %v442 = vmul.f32 %v428, 0.03125
  %v443 = vmul.f32 %v441, 0.03125
  %v444 = vmul.f32 %v442, %v442
  %v445 = vsub.f32 %v443, %v444
  %v446 = vmax.f32 %v445, 0.0
  %v447 = vld [vmem:[%s2] sm:$0x1]
  %v448 = vadd.f32 %v446, 1e-05
  %v449 = vrsqrt.pop %v448
  %v450 = vmul.f32 %v447, %v449
  %v451 = vld [vmem:[%s3] sm:$0x1]
  %v452 = vmul.f32 %v442, %v450
  %v453 = vsub.f32 %v451, %v452
  %v455 = vlaneseq
  %v456 = vshrl.u32 %v455, 7
  %v457 = vsub.s32 0, %v456
  %v458 = vrot.slane %v450, %v457
  %v460 = vmul.f32 %v406, %v458
  %v461 = vmul.f32 %v409, %v458
  %v462 = vmul.f32 %v414, %v458
  %v463 = vmul.f32 %v417, %v458
  %v465 = vlaneseq
  %v466 = vshrl.u32 %v465, 7
  %v467 = vsub.s32 0, %v466
  %v468 = vrot.slane %v453, %v467
  %v470 = vadd.f32 %v460, %v468
  %v471 = vadd.f32 %v461, %v468
  %v472 = vadd.f32 %v462, %v468
  %v473 = vadd.f32 %v463, %v468
  %v474 = vmax.f32 %v470, 0.0
  %v475 = vmax.f32 %v471, 0.0
  %v476 = vmax.f32 %v472, 0.0
  %v477 = vmax.f32 %v473, 0.0
  %v478 = vpack.c.bf16 %v475, %v474
  %v479 = vpack.c.bf16 %v477, %v476
  %v482 = vunpack.c.l.b16 %v478
  %v483 = vunpack.c.h.b16 %v478
  %v484 = vunpack.c.l.b16 %v479
  %v485 = vunpack.c.h.b16 %v479
  %v486 = vpack.c.b16 %v482, %v482
  %v487 = vpack.c.b16 %v483, %v483
  %v488 = vpack.c.b16 %v484, %v484
  %v489 = vpack.c.b16 %v485, %v485
  %494 = vst [vmem:[%s4] sm:$0xf] %v486
  %495 = vst [vmem:[%s4 + $0x4] sm:$0xf] %v487
  %496 = vst [vmem:[%s4 + $0x8] sm:$0xf] %v488
  %497 = vst [vmem:[%s4 + $0xc] sm:$0xf] %v489
  // Predicated region
  $region18: #{generator_forward.4} parent=0 // pred_check
    _
  $region19: #{generator_forward.4} parent=0 // pred_check_branch
    %499 = sbr.rel (0) target = $region21
  $region20: #{generator_forward.4} parent=0 // pred_region
    _
  $region21: #{generator_forward.4} parent=0 // pred_fallthru
    _
  // Predicated region
  $region22: #{generator_forward.4} parent=0 // pred_check
    _
  $region23: #{generator_forward.4} parent=0 // pred_check_branch
    %501 = sbr.rel (0) target = $region25
  $region24: #{generator_forward.4} parent=0 // pred_region
    _
  $region25: #{generator_forward.4} parent=0 // pred_fallthru
    _

// kernel: generator_forward.5
$region0: #{generator_forward.5}
  #allocation0 [shape = 'u32[]', space=smem, size = 0x4, offset = 0x4, fixed_abs, tag = 'smem constant byte address 0x4 - core index']
  #allocation1 [shape = 'u32[144,128]{1,0:T(1,128)}', space=vmem, size = 0x12000, scoped, tag = 'internal scratch']
  %s0 = inlined_call_operand.vmem [shape: bf16[104,576], index: 0, kind: input, shape index: {}]
  %s1 = inlined_call_operand.vmem [shape: bf16[576,128], index: 1, kind: input, shape index: {}]
  %s2 = inlined_call_operand.vmem [shape: f32[1,128], index: 2, kind: input, shape index: {}]
  %s3 = inlined_call_operand.vmem [shape: f32[1,128], index: 3, kind: input, shape index: {}]
  %s4 = inlined_call_operand.vmem [shape: bf16[104,128], index: 4, kind: output, shape index: {}]
  %s5 = sld [smem:[#allocation0]]
  $region26: #{generator_forward.5} parent=0
    _
  %s7 = ssub.s32 1, %s5
  %s8 = scalar_select 0, %s7, %s5
  // Predicated region
  $region2: #{generator_forward.5} parent=0 // pred_check
    _
  $region3: #{generator_forward.5} parent=0 // pred_check_branch
    %10 = sbr.rel (0) target = $region5
  $region4: #{generator_forward.5} parent=0 // pred_region
    _
  $region5: #{generator_forward.5} parent=0 // pred_fallthru
    _
  // Predicated region
  $region6: #{generator_forward.5} parent=0 // pred_check
    _
  $region7: #{generator_forward.5} parent=0 // pred_check_branch
    %12 = sbr.rel (0) target = $region9
  $region8: #{generator_forward.5} parent=0 // pred_region
    _
  $region9: #{generator_forward.5} parent=0 // pred_fallthru
    _
  // Predicated region
  $region10: #{generator_forward.5} parent=0 // pred_check
    _
  $region11: #{generator_forward.5} parent=0 // pred_check_branch
    %14 = sbr.rel (0) target = $region13
  $region12: #{generator_forward.5} parent=0 // pred_region
    _
  $region13: #{generator_forward.5} parent=0 // pred_fallthru
    _
  // Predicated region
  $region14: #{generator_forward.5} parent=0 // pred_check
    _
  $region15: #{generator_forward.5} parent=0 // pred_check_branch
    %16 = sbr.rel (0) target = $region17
  $region16: #{generator_forward.5} parent=0 // pred_region
    _
  $region17: #{generator_forward.5} parent=0 // pred_fallthru
    _
  %v18 = vld [vmem:[%s0] sm:$0xff]
  %v19 = vld [vmem:[%s0 + $0x8] sm:$0xff]
  %v20 = vld [vmem:[%s0 + $0x10] sm:$0xf]
  %v21 = vld [vmem:[%s0 + $0x14] sm:$0xff]
  %v22 = vld [vmem:[%s0 + $0x1c] sm:$0xff]
  %v23 = vld [vmem:[%s0 + $0x24] sm:$0xf]
  %v24 = vld [vmem:[%s0 + $0x28] sm:$0xff]
  %v25 = vld [vmem:[%s0 + $0x30] sm:$0xff]
  %v26 = vld [vmem:[%s0 + $0x38] sm:$0xf]
  %v27 = vld [vmem:[%s0 + $0x3c] sm:$0xff]
  %v28 = vld [vmem:[%s0 + $0x44] sm:$0xff]
  %v29 = vld [vmem:[%s0 + $0x4c] sm:$0xf]
  %v30 = vld [vmem:[%s0 + $0x50] sm:$0xff]
  %v31 = vld [vmem:[%s0 + $0x58] sm:$0xff]
  %v32 = vld [vmem:[%s0 + $0x60] sm:$0xf]
  %v33 = vld [vmem:[%s0 + $0x64] sm:$0xff]
  %v34 = vld [vmem:[%s0 + $0x6c] sm:$0xff]
  %v35 = vld [vmem:[%s0 + $0x74] sm:$0xf]
  %v36 = vld [vmem:[%s0 + $0x78] sm:$0xff]
  %v37 = vld [vmem:[%s0 + $0x80] sm:$0xff]
  %v38 = vld [vmem:[%s0 + $0x88] sm:$0xf]
  %v39 = vld [vmem:[%s0 + $0x8c] sm:$0xff]
  %v40 = vld [vmem:[%s0 + $0x94] sm:$0xff]
  %v41 = vld [vmem:[%s0 + $0x9c] sm:$0xf]
  %v42 = vld [vmem:[%s0 + $0xa0] sm:$0xff]
  %v43 = vld [vmem:[%s0 + $0xa8] sm:$0xff]
  %v44 = vld [vmem:[%s0 + $0xb0] sm:$0xf]
  %v45 = vld [vmem:[%s0 + $0xb4] sm:$0xff]
  %v46 = vld [vmem:[%s0 + $0xbc] sm:$0xff]
  %v47 = vld [vmem:[%s0 + $0xc4] sm:$0xf]
  %v48 = vld [vmem:[%s0 + $0xc8] sm:$0xff]
  %v49 = vld [vmem:[%s0 + $0xd0] sm:$0xff]
  %v50 = vld [vmem:[%s0 + $0xd8] sm:$0xf]
  %v51 = vld [vmem:[%s0 + $0xdc] sm:$0xff]
  %v52 = vld [vmem:[%s0 + $0xe4] sm:$0xff]
  %v53 = vld [vmem:[%s0 + $0xec] sm:$0xf]
  %v54 = vld [vmem:[%s0 + $0xf0] sm:$0xff]
  %v55 = vld [vmem:[%s0 + $0xf8] sm:$0xff]
  %v56 = vld [vmem:[%s0 + $0x100] sm:$0xf]
  %v57 = vld [vmem:[%s1] sm:$0xf]
  %v58 = vld [vmem:[%s1 + $0x4] sm:$0xf]
  %v59 = vld [vmem:[%s1 + $0x8] sm:$0xf]
  %v60 = vld [vmem:[%s1 + $0xc] sm:$0xf]
  %v61 = vld [vmem:[%s1 + $0x10] sm:$0xf]
  %v62 = vld [vmem:[%s1 + $0x14] sm:$0xf]
  %v63 = vld [vmem:[%s1 + $0x18] sm:$0xf]
  %v64 = vld [vmem:[%s1 + $0x1c] sm:$0xf]
  %v65 = vld [vmem:[%s1 + $0x20] sm:$0xf]
  %v66 = vld [vmem:[%s1 + $0x24] sm:$0xf]
  %v67 = vld [vmem:[%s1 + $0x28] sm:$0xf]
  %v68 = vld [vmem:[%s1 + $0x2c] sm:$0xf]
  %v69 = vld [vmem:[%s1 + $0x30] sm:$0xf]
  %v70 = vld [vmem:[%s1 + $0x34] sm:$0xf]
  %v71 = vld [vmem:[%s1 + $0x38] sm:$0xf]
  %v72 = vld [vmem:[%s1 + $0x3c] sm:$0xf]
  %v73 = vld [vmem:[%s1 + $0x40] sm:$0xf]
  %v74 = vld [vmem:[%s1 + $0x44] sm:$0xf]
  %v75 = vld [vmem:[%s1 + $0x48] sm:$0xf]
  %v76 = vld [vmem:[%s1 + $0x4c] sm:$0xf]
  %v77 = vld [vmem:[%s1 + $0x50] sm:$0xf]
  %v78 = vld [vmem:[%s1 + $0x54] sm:$0xf]
  %v79 = vld [vmem:[%s1 + $0x58] sm:$0xf]
  %v80 = vld [vmem:[%s1 + $0x5c] sm:$0xf]
  %v81 = vld [vmem:[%s1 + $0x60] sm:$0xf]
  %v82 = vld [vmem:[%s1 + $0x64] sm:$0xf]
  %v83 = vld [vmem:[%s1 + $0x68] sm:$0xf]
  %v84 = vld [vmem:[%s1 + $0x6c] sm:$0xf]
  %v85 = vld [vmem:[%s1 + $0x70] sm:$0xf]
  %v86 = vld [vmem:[%s1 + $0x74] sm:$0xf]
  %v87 = vld [vmem:[%s1 + $0x78] sm:$0xf]
  %v88 = vld [vmem:[%s1 + $0x7c] sm:$0xf]
  %v89 = vld [vmem:[%s1 + $0x80] sm:$0xf]
  %v90 = vld [vmem:[%s1 + $0x84] sm:$0xf]
  %v91 = vld [vmem:[%s1 + $0x88] sm:$0xf]
  %v92 = vld [vmem:[%s1 + $0x8c] sm:$0xf]
  %v93 = vld [vmem:[%s1 + $0x90] sm:$0xf]
  %v94 = vld [vmem:[%s1 + $0x94] sm:$0xf]
  %v95 = vld [vmem:[%s1 + $0x98] sm:$0xf]
  %v96 = vld [vmem:[%s1 + $0x9c] sm:$0xf]
  %v97 = vld [vmem:[%s1 + $0xa0] sm:$0xf]
  %v98 = vld [vmem:[%s1 + $0xa4] sm:$0xf]
  %v99 = vld [vmem:[%s1 + $0xa8] sm:$0xf]
  %v100 = vld [vmem:[%s1 + $0xac] sm:$0xf]
  %v101 = vld [vmem:[%s1 + $0xb0] sm:$0xf]
  %v102 = vld [vmem:[%s1 + $0xb4] sm:$0xf]
  %v103 = vld [vmem:[%s1 + $0xb8] sm:$0xf]
  %v104 = vld [vmem:[%s1 + $0xbc] sm:$0xf]
  %v105 = vld [vmem:[%s1 + $0xc0] sm:$0xf]
  %v106 = vld [vmem:[%s1 + $0xc4] sm:$0xf]
  %v107 = vld [vmem:[%s1 + $0xc8] sm:$0xf]
  %v108 = vld [vmem:[%s1 + $0xcc] sm:$0xf]
  %v109 = vld [vmem:[%s1 + $0xd0] sm:$0xf]
  %v110 = vld [vmem:[%s1 + $0xd4] sm:$0xf]
  %v111 = vld [vmem:[%s1 + $0xd8] sm:$0xf]
  %v112 = vld [vmem:[%s1 + $0xdc] sm:$0xf]
  %v113 = vld [vmem:[%s1 + $0xe0] sm:$0xf]
  %v114 = vld [vmem:[%s1 + $0xe4] sm:$0xf]
  %v115 = vld [vmem:[%s1 + $0xe8] sm:$0xf]
  %v116 = vld [vmem:[%s1 + $0xec] sm:$0xf]
  %v117 = vld [vmem:[%s1 + $0xf0] sm:$0xf]
  %v118 = vld [vmem:[%s1 + $0xf4] sm:$0xf]
  %v119 = vld [vmem:[%s1 + $0xf8] sm:$0xf]
  %v120 = vld [vmem:[%s1 + $0xfc] sm:$0xf]
  %v121 = vld [vmem:[%s1 + $0x100] sm:$0xf]
  %v122 = vld [vmem:[%s1 + $0x104] sm:$0xf]
  %v123 = vld [vmem:[%s1 + $0x108] sm:$0xf]
  %v124 = vld [vmem:[%s1 + $0x10c] sm:$0xf]
  %v125 = vld [vmem:[%s1 + $0x110] sm:$0xf]
  %v126 = vld [vmem:[%s1 + $0x114] sm:$0xf]
  %v127 = vld [vmem:[%s1 + $0x118] sm:$0xf]
  %v128 = vld [vmem:[%s1 + $0x11c] sm:$0xf]
  %v168 = vunpack.c.l.b16 %v18
  %v169 = vunpack.c.h.b16 %v18
  %v170 = vunpack.c.l.b16 %v19
  %v171 = vunpack.c.h.b16 %v19
  %v172 = vunpack.c.l.b16 %v20
  %v173 = vunpack.c.l.b16 %v21
  %v174 = vunpack.c.h.b16 %v21
  %v175 = vunpack.c.l.b16 %v22
  %v176 = vunpack.c.h.b16 %v22
  %v177 = vunpack.c.l.b16 %v23
  %v178 = vunpack.c.l.b16 %v24
  %v179 = vunpack.c.h.b16 %v24
  %v180 = vunpack.c.l.b16 %v25
  %v181 = vunpack.c.h.b16 %v25
  %v182 = vunpack.c.l.b16 %v26
  %v183 = vunpack.c.l.b16 %v27
  %v184 = vunpack.c.h.b16 %v27
  %v185 = vunpack.c.l.b16 %v28
  %v186 = vunpack.c.h.b16 %v28
  %v187 = vunpack.c.l.b16 %v29
  %v188 = vunpack.c.l.b16 %v30
  %v189 = vunpack.c.h.b16 %v30
  %v190 = vunpack.c.l.b16 %v31
  %v191 = vunpack.c.h.b16 %v31
  %v192 = vunpack.c.l.b16 %v32
  %v193 = vunpack.c.l.b16 %v33
  %v194 = vunpack.c.h.b16 %v33
  %v195 = vunpack.c.l.b16 %v34
  %v196 = vunpack.c.h.b16 %v34
  %v197 = vunpack.c.l.b16 %v35
  %v198 = vunpack.c.l.b16 %v36
  %v199 = vunpack.c.h.b16 %v36
  %v200 = vunpack.c.l.b16 %v37
  %v201 = vunpack.c.h.b16 %v37
  %v202 = vunpack.c.l.b16 %v38
  %v203 = vunpack.c.l.b16 %v39
  %v204 = vunpack.c.h.b16 %v39
  %v205 = vunpack.c.l.b16 %v40
  %v206 = vunpack.c.h.b16 %v40
  %v207 = vunpack.c.l.b16 %v41
  %v208 = vunpack.c.l.b16 %v42
  %v209 = vunpack.c.h.b16 %v42
  %v210 = vunpack.c.l.b16 %v43
  %v211 = vunpack.c.h.b16 %v43
  %v212 = vunpack.c.l.b16 %v44
  %v213 = vunpack.c.l.b16 %v45
  %v214 = vunpack.c.h.b16 %v45
  %v215 = vunpack.c.l.b16 %v46
  %v216 = vunpack.c.h.b16 %v46
  %v217 = vunpack.c.l.b16 %v47
  %v218 = vunpack.c.l.b16 %v48
  %v219 = vunpack.c.h.b16 %v48
  %v220 = vunpack.c.l.b16 %v49
  %v221 = vunpack.c.h.b16 %v49
  %v222 = vunpack.c.l.b16 %v50
  %v223 = vunpack.c.l.b16 %v51
  %v224 = vunpack.c.h.b16 %v51
  %v225 = vunpack.c.l.b16 %v52
  %v226 = vunpack.c.h.b16 %v52
  %v227 = vunpack.c.l.b16 %v53
  %v228 = vunpack.c.l.b16 %v54
  %v229 = vunpack.c.h.b16 %v54
  %v230 = vunpack.c.l.b16 %v55
  %v231 = vunpack.c.h.b16 %v55
  %v232 = vunpack.c.l.b16 %v56
  %v233 = vpack.c.b16 %v173, %v168
  %v234 = vpack.c.b16 %v174, %v169
  %v235 = vpack.c.b16 %v175, %v170
  %v236 = vpack.c.b16 %v176, %v171
  %v237 = vpack.c.b16 %v177, %v172
  %v238 = vpack.c.b16 %v183, %v178
  %v239 = vpack.c.b16 %v184, %v179
  %v240 = vpack.c.b16 %v185, %v180
  %v241 = vpack.c.b16 %v186, %v181
  %v242 = vpack.c.b16 %v187, %v182
  %v243 = vpack.c.b16 %v193, %v188
  %v244 = vpack.c.b16 %v194, %v189
  %v245 = vpack.c.b16 %v195, %v190
  %v246 = vpack.c.b16 %v196, %v191
  %v247 = vpack.c.b16 %v197, %v192
  %v248 = vpack.c.b16 %v203, %v198
  %v249 = vpack.c.b16 %v204, %v199
  %v250 = vpack.c.b16 %v205, %v200
  %v251 = vpack.c.b16 %v206, %v201
  %v252 = vpack.c.b16 %v207, %v202
  %v253 = vpack.c.b16 %v213, %v208
  %v254 = vpack.c.b16 %v214, %v209
  %v255 = vpack.c.b16 %v215, %v210
  %v256 = vpack.c.b16 %v216, %v211
  %v257 = vpack.c.b16 %v217, %v212
  %v258 = vpack.c.b16 %v223, %v218
  %v259 = vpack.c.b16 %v224, %v219
  %v260 = vpack.c.b16 %v225, %v220
  %v261 = vpack.c.b16 %v226, %v221
  %v262 = vpack.c.b16 %v227, %v222
  %v263 = vpack.c.b16 %v228, %v228
  %v264 = vpack.c.b16 %v229, %v229
  %v265 = vpack.c.b16 %v230, %v230
  %v266 = vpack.c.b16 %v231, %v231
  %v267 = vpack.c.b16 %v232, %v232
  %v368 = vunpack.c.l.b16 %v57
  %v369 = vunpack.c.l.b16 %v58
  %v370 = vunpack.c.l.b16 %v59
  %v371 = vunpack.c.l.b16 %v60
  %v372 = vunpack.c.l.b16 %v61
  %v373 = vunpack.c.l.b16 %v62
  %v374 = vunpack.c.l.b16 %v63
  %v375 = vunpack.c.l.b16 %v64
  %v376 = vunpack.c.l.b16 %v65
  %v377 = vunpack.c.l.b16 %v66
  %v378 = vunpack.c.l.b16 %v67
  %v379 = vunpack.c.l.b16 %v68
  %v380 = vunpack.c.l.b16 %v69
  %v381 = vunpack.c.l.b16 %v70
  %v382 = vunpack.c.l.b16 %v71
  %v383 = vunpack.c.l.b16 %v72
  %v384 = vunpack.c.l.b16 %v73
  %v385 = vunpack.c.l.b16 %v74
  %v386 = vunpack.c.l.b16 %v75
  %v387 = vunpack.c.l.b16 %v76
  %v388 = vunpack.c.l.b16 %v77
  %v389 = vunpack.c.l.b16 %v78
  %v390 = vunpack.c.l.b16 %v79
  %v391 = vunpack.c.l.b16 %v80
  %v392 = vunpack.c.l.b16 %v81
  %v393 = vunpack.c.l.b16 %v82
  %v394 = vunpack.c.l.b16 %v83
  %v395 = vunpack.c.l.b16 %v84
  %v396 = vunpack.c.l.b16 %v85
  %v397 = vunpack.c.l.b16 %v86
  %v398 = vunpack.c.l.b16 %v87
  %v399 = vunpack.c.l.b16 %v88
  %v400 = vunpack.c.l.b16 %v89
  %v401 = vunpack.c.l.b16 %v90
  %v402 = vunpack.c.l.b16 %v91
  %v403 = vunpack.c.l.b16 %v92
  %v404 = vunpack.c.l.b16 %v93
  %v405 = vunpack.c.l.b16 %v94
  %v406 = vunpack.c.l.b16 %v95
  %v407 = vunpack.c.l.b16 %v96
  %v408 = vunpack.c.l.b16 %v97
  %v409 = vunpack.c.l.b16 %v98
  %v410 = vunpack.c.l.b16 %v99
  %v411 = vunpack.c.l.b16 %v100
  %v412 = vunpack.c.l.b16 %v101
  %v413 = vunpack.c.l.b16 %v102
  %v414 = vunpack.c.l.b16 %v103
  %v415 = vunpack.c.l.b16 %v104
  %v416 = vunpack.c.l.b16 %v105
  %v417 = vunpack.c.l.b16 %v106
  %v418 = vunpack.c.l.b16 %v107
  %v419 = vunpack.c.l.b16 %v108
  %v420 = vunpack.c.l.b16 %v109
  %v421 = vunpack.c.l.b16 %v110
  %v422 = vunpack.c.l.b16 %v111
  %v423 = vunpack.c.l.b16 %v112
  %v424 = vunpack.c.l.b16 %v113
  %v425 = vunpack.c.l.b16 %v114
  %v426 = vunpack.c.l.b16 %v115
  %v427 = vunpack.c.l.b16 %v116
  %v428 = vunpack.c.l.b16 %v117
  %v429 = vunpack.c.l.b16 %v118
  %v430 = vunpack.c.l.b16 %v119
  %v431 = vunpack.c.l.b16 %v120
  %v432 = vunpack.c.l.b16 %v121
  %v433 = vunpack.c.l.b16 %v122
  %v434 = vunpack.c.l.b16 %v123
  %v435 = vunpack.c.l.b16 %v124
  %v436 = vunpack.c.l.b16 %v125
  %v437 = vunpack.c.l.b16 %v126
  %v438 = vunpack.c.l.b16 %v127
  %v439 = vunpack.c.l.b16 %v128
  %v440 = vpack.c.b16 %v369, %v368
  %v441 = vpack.c.b16 %v371, %v370
  %v442 = vpack.c.b16 %v373, %v372
  %v443 = vpack.c.b16 %v375, %v374
  %v444 = vpack.c.b16 %v377, %v376
  %v445 = vpack.c.b16 %v379, %v378
  %v446 = vpack.c.b16 %v381, %v380
  %v447 = vpack.c.b16 %v383, %v382
  %v448 = vpack.c.b16 %v385, %v384
  %v449 = vpack.c.b16 %v387, %v386
  %v450 = vpack.c.b16 %v389, %v388
  %v451 = vpack.c.b16 %v391, %v390
  %v452 = vpack.c.b16 %v393, %v392
  %v453 = vpack.c.b16 %v395, %v394
  %v454 = vpack.c.b16 %v397, %v396
  %v455 = vpack.c.b16 %v399, %v398
  %v456 = vpack.c.b16 %v401, %v400
  %v457 = vpack.c.b16 %v403, %v402
  %v458 = vpack.c.b16 %v405, %v404
  %v459 = vpack.c.b16 %v407, %v406
  %v460 = vpack.c.b16 %v409, %v408
  %v461 = vpack.c.b16 %v411, %v410
  %v462 = vpack.c.b16 %v413, %v412
  %v463 = vpack.c.b16 %v415, %v414
  %v464 = vpack.c.b16 %v417, %v416
  %v465 = vpack.c.b16 %v419, %v418
  %v466 = vpack.c.b16 %v421, %v420
  %v467 = vpack.c.b16 %v423, %v422
  %v468 = vpack.c.b16 %v425, %v424
  %v469 = vpack.c.b16 %v427, %v426
  %v470 = vpack.c.b16 %v429, %v428
  %v471 = vpack.c.b16 %v431, %v430
  %v472 = vpack.c.b16 %v433, %v432
  %v473 = vpack.c.b16 %v435, %v434
  %v474 = vpack.c.b16 %v437, %v436
  %v475 = vpack.c.b16 %v439, %v438
  %vm512 = vcmask 523264
  %v514 = vsel %vm512, %v237, 0
  %v517 = vsel %vm512, %v242, 0
  %v520 = vsel %vm512, %v247, 0
  %v523 = vsel %vm512, %v252, 0
  %v526 = vsel %vm512, %v257, 0
  %v529 = vsel %vm512, %v262, 0
  %v532 = vsel %vm512, %v267, 0
  %534 = vmatprep.subr.bf16.mxu0 0
  %535 = vmatpush1.bf16.msra.mxu0 %v440
  %536 = vmatprep.subr.bf16.mxu0 0
  %537 = vmatpush1.bf16.msra.mxu0 %v441
  %538 = vmatprep.subr.bf16.mxu0 0
  %539 = vmatpush1.bf16.msra.mxu0 %v442
  %540 = vmatprep.subr.bf16.mxu0 0
  %541 = vmatpush1.bf16.msra.mxu0 %v443
  %542 = vmatprep.subr.bf16.mxu0 0
  %543 = vmatpush1.bf16.msra.mxu0 %v444
  %544 = vmatprep.subr.bf16.mxu0 0
  %545 = vmatpush1.bf16.msra.mxu0 %v445
  %546 = vmatprep.subr.bf16.mxu0 0
  %547 = vmatpush1.bf16.msra.mxu0 %v446
  %548 = vmatprep.subr.bf16.mxu0 0
  %549 = vmatpush1.bf16.msra.mxu0 %v447
  %550 = vmatprep.subr.bf16.mxu0 0
  %551 = vmatpush1.bf16.msra.mxu0 %v448
  %552 = vmatprep.subr.bf16.mxu0 0
  %553 = vmatpush1.bf16.msra.mxu0 %v449
  %554 = vmatprep.subr.bf16.mxu0 0
  %555 = vmatpush1.bf16.msra.mxu0 %v450
  %556 = vmatprep.subr.bf16.mxu0 0
  %557 = vmatpush1.bf16.msra.mxu0 %v451
  %558 = vmatprep.subr.bf16.mxu0 0
  %559 = vmatpush1.bf16.msra.mxu0 %v452
  %560 = vmatprep.subr.bf16.mxu0 0
  %561 = vmatpush1.bf16.msra.mxu0 %v453
  %562 = vmatprep.subr.bf16.mxu0 0
  %563 = vmatpush1.bf16.msra.mxu0 %v454
  %564 = vmatprep.subr.bf16.mxu0 0
  %565 = vmatpush1.bf16.msra.mxu0 %v455
  %566 = vmatprep.mubr.bf16.mxu0 %v234
  %567 = vmatmul.mubr.bf16.gmra.mrb[0].mxu0 %v233
  %v568 = vpop.f32.mrb[0].mxu0
  %v569 = vadd.f32 0.0, %v568
  %v570 = vpop.f32.mrb[0].mxu0
  %v571 = vpop.f32.mrb[0].mxu0
  %v572 = vadd.f32 0.0, %v571
  %v573 = vpop.f32.mrb[0].mxu0
  %574 = vmatprep.mubr.bf16.mxu0 %v239
  %575 = vmatmul.mubr.bf16.gmra.mrb[0].mxu0 %v238
  %v576 = vpop.f32.mrb[0].mxu0
  %v577 = vadd.f32 0.0, %v576
  %v578 = vpop.f32.mrb[0].mxu0
  %v579 = vpop.f32.mrb[0].mxu0
  %v580 = vadd.f32 0.0, %v579
  %v581 = vpop.f32.mrb[0].mxu0
  %582 = vmatprep.mubr.bf16.mxu0 %v244
  %583 = vmatmul.mubr.bf16.gmra.mrb[0].mxu0 %v243
  %v584 = vpop.f32.mrb[0].mxu0
  %v585 = vadd.f32 0.0, %v584
  %v586 = vpop.f32.mrb[0].mxu0
  %v587 = vpop.f32.mrb[0].mxu0
  %v588 = vadd.f32 0.0, %v587
  %v589 = vpop.f32.mrb[0].mxu0
  %590 = vmatprep.mubr.bf16.mxu0 %v249
  %591 = vmatmul.mubr.bf16.gmra.mrb[0].mxu0 %v248
  %v592 = vpop.f32.mrb[0].mxu0
  %v593 = vadd.f32 0.0, %v592
  %v594 = vpop.f32.mrb[0].mxu0
  %v595 = vpop.f32.mrb[0].mxu0
  %v596 = vadd.f32 0.0, %v595
  %v597 = vpop.f32.mrb[0].mxu0
  %598 = vmatprep.mubr.bf16.mxu0 %v254
  %599 = vmatmul.mubr.bf16.gmra.mrb[0].mxu0 %v253
  %v600 = vpop.f32.mrb[0].mxu0
  %v601 = vadd.f32 0.0, %v600
  %v602 = vpop.f32.mrb[0].mxu0
  %v603 = vpop.f32.mrb[0].mxu0
  %v604 = vadd.f32 0.0, %v603
  %v605 = vpop.f32.mrb[0].mxu0
  %606 = vmatprep.mubr.bf16.mxu0 %v259
  %607 = vmatmul.mubr.bf16.gmra.mrb[0].mxu0 %v258
  %v608 = vpop.f32.mrb[0].mxu0
  %v609 = vadd.f32 0.0, %v608
  %v610 = vpop.f32.mrb[0].mxu0
  %v611 = vpop.f32.mrb[0].mxu0
  %v612 = vadd.f32 0.0, %v611
  %v613 = vpop.f32.mrb[0].mxu0
  %614 = vmatprep.mubr.bf16.mxu0 %v264
  %615 = vmatmul.mubr.bf16.gmra.mrb[0].mxu0 %v263
  %v616 = vpop.f32.mrb[0].mxu0
  %v617 = vadd.f32 0.0, %v616
  %v618 = vpop.f32.mrb[0].mxu0
  %v619 = vpop.f32.mrb[0].mxu0
  %v620 = vpop.f32.mrb[0].mxu0
  %621 = vdwg.mxu0
  %622 = vmatprep.subr.bf16.mxu0 0
  %623 = vmatpush1.bf16.msra.mxu0 %v456
  %624 = vmatprep.subr.bf16.mxu0 0
  %625 = vmatpush1.bf16.msra.mxu0 %v457
  %626 = vmatprep.subr.bf16.mxu0 0
  %627 = vmatpush1.bf16.msra.mxu0 %v458
  %628 = vmatprep.subr.bf16.mxu0 0
  %629 = vmatpush1.bf16.msra.mxu0 %v459
  %630 = vmatprep.subr.bf16.mxu0 0
  %631 = vmatpush1.bf16.msra.mxu0 %v460
  %632 = vmatprep.subr.bf16.mxu0 0
  %633 = vmatpush1.bf16.msra.mxu0 %v461
  %634 = vmatprep.subr.bf16.mxu0 0
  %635 = vmatpush1.bf16.msra.mxu0 %v462
  %636 = vmatprep.subr.bf16.mxu0 0
  %637 = vmatpush1.bf16.msra.mxu0 %v463
  %638 = vmatprep.subr.bf16.mxu0 0
  %639 = vmatpush1.bf16.msra.mxu0 %v464
  %640 = vmatprep.subr.bf16.mxu0 0
  %641 = vmatpush1.bf16.msra.mxu0 %v465
  %642 = vmatprep.subr.bf16.mxu0 0
  %643 = vmatpush1.bf16.msra.mxu0 %v466
  %644 = vmatprep.subr.bf16.mxu0 0
  %645 = vmatpush1.bf16.msra.mxu0 %v467
  %646 = vmatprep.subr.bf16.mxu0 0
  %647 = vmatpush1.bf16.msra.mxu0 %v468
  %648 = vmatprep.subr.bf16.mxu0 0
  %649 = vmatpush1.bf16.msra.mxu0 %v469
  %650 = vmatprep.subr.bf16.mxu0 0
  %651 = vmatpush1.bf16.msra.mxu0 %v470
  %652 = vmatprep.subr.bf16.mxu0 0
  %653 = vmatpush1.bf16.msra.mxu0 %v471
  %654 = vmatprep.mubr.bf16.mxu0 %v236
  %655 = vmatmul.mubr.bf16.gmra.mrb[0].mxu0 %v235
  %v656 = vpop.f32.mrb[0].mxu0
  %v657 = vadd.f32 %v569, %v656
  %v658 = vpop.f32.mrb[0].mxu0
  %v659 = vpop.f32.mrb[0].mxu0
  %v660 = vadd.f32 %v572, %v659
  %v661 = vpop.f32.mrb[0].mxu0
  %662 = vmatprep.mubr.bf16.mxu0 %v241
  %663 = vmatmul.mubr.bf16.gmra.mrb[0].mxu0 %v240
  %v664 = vpop.f32.mrb[0].mxu0
  %v665 = vadd.f32 %v577, %v664
  %v666 = vpop.f32.mrb[0].mxu0
  %v667 = vpop.f32.mrb[0].mxu0
  %v668 = vadd.f32 %v580, %v667
  %v669 = vpop.f32.mrb[0].mxu0
  %670 = vmatprep.mubr.bf16.mxu0 %v246
  %671 = vmatmul.mubr.bf16.gmra.mrb[0].mxu0 %v245
  %v672 = vpop.f32.mrb[0].mxu0
  %v673 = vadd.f32 %v585, %v672
  %v674 = vpop.f32.mrb[0].mxu0
  %v675 = vpop.f32.mrb[0].mxu0
  %v676 = vadd.f32 %v588, %v675
  %v677 = vpop.f32.mrb[0].mxu0
  %678 = vmatprep.mubr.bf16.mxu0 %v251
  %679 = vmatmul.mubr.bf16.gmra.mrb[0].mxu0 %v250
  %v680 = vpop.f32.mrb[0].mxu0
  %v681 = vadd.f32 %v593, %v680
  %v682 = vpop.f32.mrb[0].mxu0
  %v683 = vpop.f32.mrb[0].mxu0
  %v684 = vadd.f32 %v596, %v683
  %v685 = vpop.f32.mrb[0].mxu0
  %686 = vmatprep.mubr.bf16.mxu0 %v256
  %687 = vmatmul.mubr.bf16.gmra.mrb[0].mxu0 %v255
  %v688 = vpop.f32.mrb[0].mxu0
  %v689 = vadd.f32 %v601, %v688
  %v690 = vpop.f32.mrb[0].mxu0
  %v691 = vpop.f32.mrb[0].mxu0
  %v692 = vadd.f32 %v604, %v691
  %v693 = vpop.f32.mrb[0].mxu0
  %694 = vmatprep.mubr.bf16.mxu0 %v261
  %695 = vmatmul.mubr.bf16.gmra.mrb[0].mxu0 %v260
  %v696 = vpop.f32.mrb[0].mxu0
  %v697 = vadd.f32 %v609, %v696
  %v698 = vpop.f32.mrb[0].mxu0
  %v699 = vpop.f32.mrb[0].mxu0
  %v700 = vadd.f32 %v612, %v699
  %v701 = vpop.f32.mrb[0].mxu0
  %702 = vmatprep.mubr.bf16.mxu0 %v266
  %703 = vmatmul.mubr.bf16.gmra.mrb[0].mxu0 %v265
  %v704 = vpop.f32.mrb[0].mxu0
  %v705 = vadd.f32 %v617, %v704
  %v706 = vpop.f32.mrb[0].mxu0
  %v707 = vpop.f32.mrb[0].mxu0
  %v708 = vpop.f32.mrb[0].mxu0
  %709 = vdwg.mxu0
  %710 = vmatprep.subr.bf16.mxu0 0
  %711 = vmatpush1.bf16.msra.mxu0 %v472
  %712 = vmatprep.subr.bf16.mxu0 0
  %713 = vmatpush1.bf16.msra.mxu0 %v473
  %714 = vmatprep.subr.bf16.mxu0 0
  %715 = vmatpush1.bf16.msra.mxu0 %v474
  %716 = vmatprep.subr.bf16.mxu0 0
  %717 = vmatpush1.bf16.msra.mxu0 %v475
  %718 = vmatprep.subr.bf16.mxu0 0
  %719 = vmatpush1.bf16.msra.mxu0 0
  %720 = vmatprep.subr.bf16.mxu0 0
  %721 = vmatpush1.bf16.msra.mxu0 0
  %722 = vmatprep.subr.bf16.mxu0 0
  %723 = vmatpush1.bf16.msra.mxu0 0
  %724 = vmatprep.subr.bf16.mxu0 0
  %725 = vmatpush1.bf16.msra.mxu0 0
  %726 = vmatprep.subr.bf16.mxu0 0
  %727 = vmatpush1.bf16.msra.mxu0 0
  %728 = vmatprep.subr.bf16.mxu0 0
  %729 = vmatpush1.bf16.msra.mxu0 0
  %730 = vmatprep.subr.bf16.mxu0 0
  %731 = vmatpush1.bf16.msra.mxu0 0
  %732 = vmatprep.subr.bf16.mxu0 0
  %733 = vmatpush1.bf16.msra.mxu0 0
  %734 = vmatprep.subr.bf16.mxu0 0
  %735 = vmatpush1.bf16.msra.mxu0 0
  %736 = vmatprep.subr.bf16.mxu0 0
  %737 = vmatpush1.bf16.msra.mxu0 0
  %738 = vmatprep.subr.bf16.mxu0 0
  %739 = vmatpush1.bf16.msra.mxu0 0
  %740 = vmatprep.subr.bf16.mxu0 0
  %741 = vmatpush1.bf16.msra.mxu0 0
  %742 = vmatprep.mubr.bf16.mxu0 0
  %743 = vmatmul.mubr.bf16.gmra.mrb[0].mxu0 %v514
  %v744 = vpop.f32.mrb[0].mxu0
  %v745 = vadd.f32 %v657, %v744
  %v746 = vpop.f32.mrb[0].mxu0
  %v747 = vpop.f32.mrb[0].mxu0
  %v748 = vadd.f32 %v660, %v747
  %v749 = vpop.f32.mrb[0].mxu0
  %750 = vmatprep.mubr.bf16.mxu0 0
  %751 = vmatmul.mubr.bf16.gmra.mrb[0].mxu0 %v517
  %v752 = vpop.f32.mrb[0].mxu0
  %v753 = vadd.f32 %v665, %v752
  %v754 = vpop.f32.mrb[0].mxu0
  %v755 = vpop.f32.mrb[0].mxu0
  %v756 = vadd.f32 %v668, %v755
  %v757 = vpop.f32.mrb[0].mxu0
  %758 = vmatprep.mubr.bf16.mxu0 0
  %759 = vmatmul.mubr.bf16.gmra.mrb[0].mxu0 %v520
  %v760 = vpop.f32.mrb[0].mxu0
  %v761 = vadd.f32 %v673, %v760
  %v762 = vpop.f32.mrb[0].mxu0
  %v763 = vpop.f32.mrb[0].mxu0
  %v764 = vadd.f32 %v676, %v763
  %v765 = vpop.f32.mrb[0].mxu0
  %766 = vmatprep.mubr.bf16.mxu0 0
  %767 = vmatmul.mubr.bf16.gmra.mrb[0].mxu0 %v523
  %v768 = vpop.f32.mrb[0].mxu0
  %v769 = vadd.f32 %v681, %v768
  %v770 = vpop.f32.mrb[0].mxu0
  %v771 = vpop.f32.mrb[0].mxu0
  %v772 = vadd.f32 %v684, %v771
  %v773 = vpop.f32.mrb[0].mxu0
  %774 = vmatprep.mubr.bf16.mxu0 0
  %775 = vmatmul.mubr.bf16.gmra.mrb[0].mxu0 %v526
  %v776 = vpop.f32.mrb[0].mxu0
  %v777 = vadd.f32 %v689, %v776
  %v778 = vpop.f32.mrb[0].mxu0
  %v779 = vpop.f32.mrb[0].mxu0
  %v780 = vadd.f32 %v692, %v779
  %v781 = vpop.f32.mrb[0].mxu0
  %782 = vmatprep.mubr.bf16.mxu0 0
  %783 = vmatmul.mubr.bf16.gmra.mrb[0].mxu0 %v529
  %v784 = vpop.f32.mrb[0].mxu0
  %v785 = vadd.f32 %v697, %v784
  %v786 = vpop.f32.mrb[0].mxu0
  %v787 = vpop.f32.mrb[0].mxu0
  %v788 = vadd.f32 %v700, %v787
  %v789 = vpop.f32.mrb[0].mxu0
  %790 = vmatprep.mubr.bf16.mxu0 0
  %791 = vmatmul.mubr.bf16.gmra.mrb[0].mxu0 %v532
  %v792 = vpop.f32.mrb[0].mxu0
  %v793 = vadd.f32 %v705, %v792
  %v794 = vpop.f32.mrb[0].mxu0
  %v795 = vpop.f32.mrb[0].mxu0
  %v796 = vpop.f32.mrb[0].mxu0
  %797 = vdwg.mxu0
  %v798 = vadd.f32 %v745, %v748
  %v799 = vadd.f32 %v798, %v753
  %v800 = vadd.f32 %v799, %v756
  %v801 = vadd.f32 %v800, %v761
  %v802 = vadd.f32 %v801, %v764
  %v803 = vadd.f32 %v802, %v769
  %v804 = vadd.f32 %v803, %v772
  %v805 = vadd.f32 %v804, %v777
  %v806 = vadd.f32 %v805, %v780
  %v807 = vadd.f32 %v806, %v785
  %v808 = vadd.f32 %v807, %v788
  %v809 = vadd.f32 %v808, %v793
  %v810 = vrot.slane %v809, 4
  %v811 = vadd.f32 %v809, %v810
  %v812 = vrot.slane %v811, 2
  %v813 = vadd.f32 %v811, %v812
  %v814 = vrot.slane %v813, 1
  %v815 = vadd.f32 %v813, %v814
  %v816 = vmul.f32 %v745, %v745
  %v817 = vmul.f32 %v748, %v748
  %v818 = vmul.f32 %v753, %v753
  %v819 = vmul.f32 %v756, %v756
  %v820 = vmul.f32 %v761, %v761
  %v821 = vmul.f32 %v764, %v764
  %v822 = vmul.f32 %v769, %v769
  %v823 = vmul.f32 %v772, %v772
  %v824 = vmul.f32 %v777, %v777
  %v825 = vmul.f32 %v780, %v780
  %v826 = vmul.f32 %v785, %v785
  %v827 = vmul.f32 %v788, %v788
  %v828 = vmul.f32 %v793, %v793
  %v829 = vadd.f32 %v816, %v817
  %v830 = vadd.f32 %v829, %v818
  %v831 = vadd.f32 %v830, %v819
  %v832 = vadd.f32 %v831, %v820
  %v833 = vadd.f32 %v832, %v821
  %v834 = vadd.f32 %v833, %v822
  %v835 = vadd.f32 %v834, %v823
  %v836 = vadd.f32 %v835, %v824
  %v837 = vadd.f32 %v836, %v825
  %v838 = vadd.f32 %v837, %v826
  %v839 = vadd.f32 %v838, %v827
  %v840 = vadd.f32 %v839, %v828
  %v841 = vrot.slane %v840, 4
  %v842 = vadd.f32 %v840, %v841
  %v843 = vrot.slane %v842, 2
  %v844 = vadd.f32 %v842, %v843
  %v845 = vrot.slane %v844, 1
  %v846 = vadd.f32 %v844, %v845
  %v847 = vmul.f32 %v815, 0.010204081
  %v848 = vmul.f32 %v846, 0.010204081
  %v849 = vmul.f32 %v847, %v847
  %v850 = vsub.f32 %v848, %v849
  %v851 = vmax.f32 %v850, 0.0
  %v852 = vld [vmem:[%s2] sm:$0x1]
  %v853 = vadd.f32 %v851, 1e-05
  %v854 = vrsqrt.pop %v853
  %v855 = vmul.f32 %v852, %v854
  %v856 = vld [vmem:[%s3] sm:$0x1]
  %v857 = vmul.f32 %v847, %v855
  %v858 = vsub.f32 %v856, %v857
  %v860 = vlaneseq
  %v861 = vshrl.u32 %v860, 7
  %v862 = vsub.s32 0, %v861
  %v863 = vrot.slane %v855, %v862
  %v865 = vmul.f32 %v745, %v863
  %v866 = vmul.f32 %v748, %v863
  %v867 = vmul.f32 %v753, %v863
  %v868 = vmul.f32 %v756, %v863
  %v869 = vmul.f32 %v761, %v863
  %v870 = vmul.f32 %v764, %v863
  %v871 = vmul.f32 %v769, %v863
  %v872 = vmul.f32 %v772, %v863
  %v873 = vmul.f32 %v777, %v863
  %v874 = vmul.f32 %v780, %v863
  %v875 = vmul.f32 %v785, %v863
  %v876 = vmul.f32 %v788, %v863
  %v877 = vmul.f32 %v793, %v863
  %v879 = vlaneseq
  %v880 = vshrl.u32 %v879, 7
  %v881 = vsub.s32 0, %v880
  %v882 = vrot.slane %v858, %v881
  %v884 = vadd.f32 %v865, %v882
  %v885 = vadd.f32 %v866, %v882
  %v886 = vadd.f32 %v867, %v882
  %v887 = vadd.f32 %v868, %v882
  %v888 = vadd.f32 %v869, %v882
  %v889 = vadd.f32 %v870, %v882
  %v890 = vadd.f32 %v871, %v882
  %v891 = vadd.f32 %v872, %v882
  %v892 = vadd.f32 %v873, %v882
  %v893 = vadd.f32 %v874, %v882
  %v894 = vadd.f32 %v875, %v882
  %v895 = vadd.f32 %v876, %v882
  %v896 = vadd.f32 %v877, %v882
  %v897 = vmax.f32 %v884, 0.0
  %v898 = vmax.f32 %v885, 0.0
  %v899 = vmax.f32 %v886, 0.0
  %v900 = vmax.f32 %v887, 0.0
  %v901 = vmax.f32 %v888, 0.0
  %v902 = vmax.f32 %v889, 0.0
  %v903 = vmax.f32 %v890, 0.0
  %v904 = vmax.f32 %v891, 0.0
  %v905 = vmax.f32 %v892, 0.0
  %v906 = vmax.f32 %v893, 0.0
  %v907 = vmax.f32 %v894, 0.0
  %v908 = vmax.f32 %v895, 0.0
  %v909 = vmax.f32 %v896, 0.0
  %v910 = vpack.c.bf16 %v898, %v897
  %v911 = vpack.c.bf16 %v900, %v899
  %v912 = vpack.c.bf16 %v902, %v901
  %v913 = vpack.c.bf16 %v904, %v903
  %v914 = vpack.c.bf16 %v906, %v905
  %v915 = vpack.c.bf16 %v908, %v907
  %v916 = vpack.c.bf16 %v909, %v909
  %v924 = vunpack.c.l.b16 %v910
  %v925 = vunpack.c.h.b16 %v910
  %v926 = vunpack.c.l.b16 %v911
  %v927 = vunpack.c.h.b16 %v911
  %v928 = vunpack.c.l.b16 %v912
  %v929 = vunpack.c.h.b16 %v912
  %v930 = vunpack.c.l.b16 %v913
  %v931 = vunpack.c.h.b16 %v913
  %v932 = vunpack.c.l.b16 %v914
  %v933 = vunpack.c.h.b16 %v914
  %v934 = vunpack.c.l.b16 %v915
  %v935 = vunpack.c.h.b16 %v915
  %v936 = vunpack.c.l.b16 %v916
  %v937 = vpack.c.b16 %v924, %v924
  %v938 = vpack.c.b16 %v925, %v925
  %v939 = vpack.c.b16 %v926, %v926
  %v940 = vpack.c.b16 %v927, %v927
  %v941 = vpack.c.b16 %v928, %v928
  %v942 = vpack.c.b16 %v929, %v929
  %v943 = vpack.c.b16 %v930, %v930
  %v944 = vpack.c.b16 %v931, %v931
  %v945 = vpack.c.b16 %v932, %v932
  %v946 = vpack.c.b16 %v933, %v933
  %v947 = vpack.c.b16 %v934, %v934
  %v948 = vpack.c.b16 %v935, %v935
  %v949 = vpack.c.b16 %v936, %v936
  %963 = vst [vmem:[%s4] sm:$0xf] %v937
  %964 = vst [vmem:[%s4 + $0x4] sm:$0xf] %v938
  %965 = vst [vmem:[%s4 + $0x8] sm:$0xf] %v939
  %966 = vst [vmem:[%s4 + $0xc] sm:$0xf] %v940
  %967 = vst [vmem:[%s4 + $0x10] sm:$0xf] %v941
  %968 = vst [vmem:[%s4 + $0x14] sm:$0xf] %v942
  %969 = vst [vmem:[%s4 + $0x18] sm:$0xf] %v943
  %970 = vst [vmem:[%s4 + $0x1c] sm:$0xf] %v944
  %971 = vst [vmem:[%s4 + $0x20] sm:$0xf] %v945
  %972 = vst [vmem:[%s4 + $0x24] sm:$0xf] %v946
  %973 = vst [vmem:[%s4 + $0x28] sm:$0xf] %v947
  %974 = vst [vmem:[%s4 + $0x2c] sm:$0xf] %v948
  %975 = vst [vmem:[%s4 + $0x30] sm:$0xf] %v949
  // Predicated region
  $region18: #{generator_forward.5} parent=0 // pred_check
    _
  $region19: #{generator_forward.5} parent=0 // pred_check_branch
    %977 = sbr.rel (0) target = $region21
  $region20: #{generator_forward.5} parent=0 // pred_region
    _
  $region21: #{generator_forward.5} parent=0 // pred_fallthru
    _
  // Predicated region
  $region22: #{generator_forward.5} parent=0 // pred_check
    _
  $region23: #{generator_forward.5} parent=0 // pred_check_branch
    %979 = sbr.rel (0) target = $region25
  $region24: #{generator_forward.5} parent=0 // pred_region
    _
  $region25: #{generator_forward.5} parent=0 // pred_fallthru
    _

// kernel: generator_forward.6
$region0: #{generator_forward.6}
  #allocation0 [shape = 'u32[]', space=smem, size = 0x4, offset = 0x4, fixed_abs, tag = 'smem constant byte address 0x4 - core index']
  #allocation1 [shape = 'u32[144,128]{1,0:T(1,128)}', space=vmem, size = 0x12000, scoped, tag = 'internal scratch']
  %s0 = inlined_call_operand.vmem [shape: bf16[392,512], index: 0, kind: input, shape index: {}]
  %s1 = inlined_call_operand.vmem [shape: bf16[512,128], index: 1, kind: input, shape index: {}]
  %s2 = inlined_call_operand.vmem [shape: f32[1,128], index: 2, kind: input, shape index: {}]
  %s3 = inlined_call_operand.vmem [shape: f32[1,128], index: 3, kind: input, shape index: {}]
  %s4 = inlined_call_operand.vmem [shape: bf16[392,128], index: 4, kind: output, shape index: {}]
  %s5 = sld [smem:[#allocation0]]
  $region26: #{generator_forward.6} parent=0
    _
  %s7 = ssub.s32 1, %s5
  %s8 = scalar_select 0, %s7, %s5
  // Predicated region
  $region2: #{generator_forward.6} parent=0 // pred_check
    _
  $region3: #{generator_forward.6} parent=0 // pred_check_branch
    %10 = sbr.rel (0) target = $region5
  $region4: #{generator_forward.6} parent=0 // pred_region
    _
  $region5: #{generator_forward.6} parent=0 // pred_fallthru
    _
  // Predicated region
  $region6: #{generator_forward.6} parent=0 // pred_check
    _
  $region7: #{generator_forward.6} parent=0 // pred_check_branch
    %12 = sbr.rel (0) target = $region9
  $region8: #{generator_forward.6} parent=0 // pred_region
    _
  $region9: #{generator_forward.6} parent=0 // pred_fallthru
    _
  // Predicated region
  $region10: #{generator_forward.6} parent=0 // pred_check
    _
  $region11: #{generator_forward.6} parent=0 // pred_check_branch
    %14 = sbr.rel (0) target = $region13
  $region12: #{generator_forward.6} parent=0 // pred_region
    _
  $region13: #{generator_forward.6} parent=0 // pred_fallthru
    _
  // Predicated region
  $region14: #{generator_forward.6} parent=0 // pred_check
    _
  $region15: #{generator_forward.6} parent=0 // pred_check_branch
    %16 = sbr.rel (0) target = $region17
  $region16: #{generator_forward.6} parent=0 // pred_region
    _
  $region17: #{generator_forward.6} parent=0 // pred_fallthru
    _
  %v18 = vld [vmem:[%s0] sm:$0xff]
  %v19 = vld [vmem:[%s0 + $0x8] sm:$0xff]
  %v20 = vld [vmem:[%s0 + $0x10] sm:$0xff]
  %v21 = vld [vmem:[%s0 + $0x18] sm:$0xff]
  %v22 = vld [vmem:[%s0 + $0x20] sm:$0xff]
  %v23 = vld [vmem:[%s0 + $0x28] sm:$0xff]
  %v24 = vld [vmem:[%s0 + $0x30] sm:$0xff]
  %v25 = vld [vmem:[%s0 + $0x38] sm:$0xff]
  %v26 = vld [vmem:[%s0 + $0x40] sm:$0xff]
  %v27 = vld [vmem:[%s0 + $0x48] sm:$0xff]
  %v28 = vld [vmem:[%s0 + $0x50] sm:$0xff]
  %v29 = vld [vmem:[%s0 + $0x58] sm:$0xff]
  %v30 = vld [vmem:[%s0 + $0x60] sm:$0xff]
  %v31 = vld [vmem:[%s0 + $0x68] sm:$0xff]
  %v32 = vld [vmem:[%s0 + $0x70] sm:$0xff]
  %v33 = vld [vmem:[%s0 + $0x78] sm:$0xff]
  %v34 = vld [vmem:[%s0 + $0x80] sm:$0xff]
  %v35 = vld [vmem:[%s0 + $0x88] sm:$0xff]
  %v36 = vld [vmem:[%s0 + $0x90] sm:$0xff]
  %v37 = vld [vmem:[%s0 + $0x98] sm:$0xff]
  %v38 = vld [vmem:[%s0 + $0xa0] sm:$0xff]
  %v39 = vld [vmem:[%s0 + $0xa8] sm:$0xff]
  %v40 = vld [vmem:[%s0 + $0xb0] sm:$0xff]
  %v41 = vld [vmem:[%s0 + $0xb8] sm:$0xff]
  %v42 = vld [vmem:[%s0 + $0xc0] sm:$0xff]
  %v43 = vld [vmem:[%s0 + $0xc8] sm:$0xff]
  %v44 = vld [vmem:[%s0 + $0xd0] sm:$0xff]
  %v45 = vld [vmem:[%s0 + $0xd8] sm:$0xff]
  %v46 = vld [vmem:[%s0 + $0xe0] sm:$0xff]
  %v47 = vld [vmem:[%s0 + $0xe8] sm:$0xff]
  %v48 = vld [vmem:[%s0 + $0xf0] sm:$0xff]
  %v49 = vld [vmem:[%s0 + $0xf8] sm:$0xff]
  %v50 = vld [vmem:[%s0 + $0x100] sm:$0xff]
  %v51 = vld [vmem:[%s0 + $0x108] sm:$0xff]
  %v52 = vld [vmem:[%s0 + $0x110] sm:$0xff]
  %v53 = vld [vmem:[%s0 + $0x118] sm:$0xff]
  %v54 = vld [vmem:[%s0 + $0x120] sm:$0xff]
  %v55 = vld [vmem:[%s0 + $0x128] sm:$0xff]
  %v56 = vld [vmem:[%s0 + $0x130] sm:$0xff]
  %v57 = vld [vmem:[%s0 + $0x138] sm:$0xff]
  %v58 = vld [vmem:[%s0 + $0x140] sm:$0xff]
  %v59 = vld [vmem:[%s0 + $0x148] sm:$0xff]
  %v60 = vld [vmem:[%s0 + $0x150] sm:$0xff]
  %v61 = vld [vmem:[%s0 + $0x158] sm:$0xff]
  %v62 = vld [vmem:[%s0 + $0x160] sm:$0xff]
  %v63 = vld [vmem:[%s0 + $0x168] sm:$0xff]
  %v64 = vld [vmem:[%s0 + $0x170] sm:$0xff]
  %v65 = vld [vmem:[%s0 + $0x178] sm:$0xff]
  %v66 = vld [vmem:[%s0 + $0x180] sm:$0xff]
  %v67 = vld [vmem:[%s0 + $0x188] sm:$0xff]
  %v68 = vld [vmem:[%s0 + $0x190] sm:$0xff]
  %v69 = vld [vmem:[%s0 + $0x198] sm:$0xff]
  %v70 = vld [vmem:[%s0 + $0x1a0] sm:$0xff]
  %v71 = vld [vmem:[%s0 + $0x1a8] sm:$0xff]
  %v72 = vld [vmem:[%s0 + $0x1b0] sm:$0xff]
  %v73 = vld [vmem:[%s0 + $0x1b8] sm:$0xff]
  %v74 = vld [vmem:[%s0 + $0x1c0] sm:$0xff]
  %v75 = vld [vmem:[%s0 + $0x1c8] sm:$0xff]
  %v76 = vld [vmem:[%s0 + $0x1d0] sm:$0xff]
  %v77 = vld [vmem:[%s0 + $0x1d8] sm:$0xff]
  %v78 = vld [vmem:[%s0 + $0x1e0] sm:$0xff]
  %v79 = vld [vmem:[%s0 + $0x1e8] sm:$0xff]
  %v80 = vld [vmem:[%s0 + $0x1f0] sm:$0xff]
  %v81 = vld [vmem:[%s0 + $0x1f8] sm:$0xff]
  %v82 = vld [vmem:[%s0 + $0x200] sm:$0xff]
  %v83 = vld [vmem:[%s0 + $0x208] sm:$0xff]
  %v84 = vld [vmem:[%s0 + $0x210] sm:$0xff]
  %v85 = vld [vmem:[%s0 + $0x218] sm:$0xff]
  %v86 = vld [vmem:[%s0 + $0x220] sm:$0xff]
  %v87 = vld [vmem:[%s0 + $0x228] sm:$0xff]
  %v88 = vld [vmem:[%s0 + $0x230] sm:$0xff]
  %v89 = vld [vmem:[%s0 + $0x238] sm:$0xff]
  %v90 = vld [vmem:[%s0 + $0x240] sm:$0xff]
  %v91 = vld [vmem:[%s0 + $0x248] sm:$0xff]
  %v92 = vld [vmem:[%s0 + $0x250] sm:$0xff]
  %v93 = vld [vmem:[%s0 + $0x258] sm:$0xff]
  %v94 = vld [vmem:[%s0 + $0x260] sm:$0xff]
  %v95 = vld [vmem:[%s0 + $0x268] sm:$0xff]
  %v96 = vld [vmem:[%s0 + $0x270] sm:$0xff]
  %v97 = vld [vmem:[%s0 + $0x278] sm:$0xff]
  %v98 = vld [vmem:[%s0 + $0x280] sm:$0xff]
  %v99 = vld [vmem:[%s0 + $0x288] sm:$0xff]
  %v100 = vld [vmem:[%s0 + $0x290] sm:$0xff]
  %v101 = vld [vmem:[%s0 + $0x298] sm:$0xff]
  %v102 = vld [vmem:[%s0 + $0x2a0] sm:$0xff]
  %v103 = vld [vmem:[%s0 + $0x2a8] sm:$0xff]
  %v104 = vld [vmem:[%s0 + $0x2b0] sm:$0xff]
  %v105 = vld [vmem:[%s0 + $0x2b8] sm:$0xff]
  %v106 = vld [vmem:[%s0 + $0x2c0] sm:$0xff]
  %v107 = vld [vmem:[%s0 + $0x2c8] sm:$0xff]
  %v108 = vld [vmem:[%s0 + $0x2d0] sm:$0xff]
  %v109 = vld [vmem:[%s0 + $0x2d8] sm:$0xff]
  %v110 = vld [vmem:[%s0 + $0x2e0] sm:$0xff]
  %v111 = vld [vmem:[%s0 + $0x2e8] sm:$0xff]
  %v112 = vld [vmem:[%s0 + $0x2f0] sm:$0xff]
  %v113 = vld [vmem:[%s0 + $0x2f8] sm:$0xff]
  %v114 = vld [vmem:[%s0 + $0x300] sm:$0xff]
  %v115 = vld [vmem:[%s0 + $0x308] sm:$0xff]
  %v116 = vld [vmem:[%s1] sm:$0xf]
  %v117 = vld [vmem:[%s1 + $0x4] sm:$0xf]
  %v118 = vld [vmem:[%s1 + $0x8] sm:$0xf]
  %v119 = vld [vmem:[%s1 + $0xc] sm:$0xf]
  %v120 = vld [vmem:[%s1 + $0x10] sm:$0xf]
  %v121 = vld [vmem:[%s1 + $0x14] sm:$0xf]
  %v122 = vld [vmem:[%s1 + $0x18] sm:$0xf]
  %v123 = vld [vmem:[%s1 + $0x1c] sm:$0xf]
  %v124 = vld [vmem:[%s1 + $0x20] sm:$0xf]
  %v125 = vld [vmem:[%s1 + $0x24] sm:$0xf]
  %v126 = vld [vmem:[%s1 + $0x28] sm:$0xf]
  %v127 = vld [vmem:[%s1 + $0x2c] sm:$0xf]
  %v128 = vld [vmem:[%s1 + $0x30] sm:$0xf]
  %v129 = vld [vmem:[%s1 + $0x34] sm:$0xf]
  %v130 = vld [vmem:[%s1 + $0x38] sm:$0xf]
  %v131 = vld [vmem:[%s1 + $0x3c] sm:$0xf]
  %v132 = vld [vmem:[%s1 + $0x40] sm:$0xf]
  %v133 = vld [vmem:[%s1 + $0x44] sm:$0xf]
  %v134 = vld [vmem:[%s1 + $0x48] sm:$0xf]
  %v135 = vld [vmem:[%s1 + $0x4c] sm:$0xf]
  %v136 = vld [vmem:[%s1 + $0x50] sm:$0xf]
  %v137 = vld [vmem:[%s1 + $0x54] sm:$0xf]
  %v138 = vld [vmem:[%s1 + $0x58] sm:$0xf]
  %v139 = vld [vmem:[%s1 + $0x5c] sm:$0xf]
  %v140 = vld [vmem:[%s1 + $0x60] sm:$0xf]
  %v141 = vld [vmem:[%s1 + $0x64] sm:$0xf]
  %v142 = vld [vmem:[%s1 + $0x68] sm:$0xf]
  %v143 = vld [vmem:[%s1 + $0x6c] sm:$0xf]
  %v144 = vld [vmem:[%s1 + $0x70] sm:$0xf]
  %v145 = vld [vmem:[%s1 + $0x74] sm:$0xf]
  %v146 = vld [vmem:[%s1 + $0x78] sm:$0xf]
  %v147 = vld [vmem:[%s1 + $0x7c] sm:$0xf]
  %v148 = vld [vmem:[%s1 + $0x80] sm:$0xf]
  %v149 = vld [vmem:[%s1 + $0x84] sm:$0xf]
  %v150 = vld [vmem:[%s1 + $0x88] sm:$0xf]
  %v151 = vld [vmem:[%s1 + $0x8c] sm:$0xf]
  %v152 = vld [vmem:[%s1 + $0x90] sm:$0xf]
  %v153 = vld [vmem:[%s1 + $0x94] sm:$0xf]
  %v154 = vld [vmem:[%s1 + $0x98] sm:$0xf]
  %v155 = vld [vmem:[%s1 + $0x9c] sm:$0xf]
  %v156 = vld [vmem:[%s1 + $0xa0] sm:$0xf]
  %v157 = vld [vmem:[%s1 + $0xa4] sm:$0xf]
  %v158 = vld [vmem:[%s1 + $0xa8] sm:$0xf]
  %v159 = vld [vmem:[%s1 + $0xac] sm:$0xf]
  %v160 = vld [vmem:[%s1 + $0xb0] sm:$0xf]
  %v161 = vld [vmem:[%s1 + $0xb4] sm:$0xf]
  %v162 = vld [vmem:[%s1 + $0xb8] sm:$0xf]
  %v163 = vld [vmem:[%s1 + $0xbc] sm:$0xf]
  %v164 = vld [vmem:[%s1 + $0xc0] sm:$0xf]
  %v165 = vld [vmem:[%s1 + $0xc4] sm:$0xf]
  %v166 = vld [vmem:[%s1 + $0xc8] sm:$0xf]
  %v167 = vld [vmem:[%s1 + $0xcc] sm:$0xf]
  %v168 = vld [vmem:[%s1 + $0xd0] sm:$0xf]
  %v169 = vld [vmem:[%s1 + $0xd4] sm:$0xf]
  %v170 = vld [vmem:[%s1 + $0xd8] sm:$0xf]
  %v171 = vld [vmem:[%s1 + $0xdc] sm:$0xf]
  %v172 = vld [vmem:[%s1 + $0xe0] sm:$0xf]
  %v173 = vld [vmem:[%s1 + $0xe4] sm:$0xf]
  %v174 = vld [vmem:[%s1 + $0xe8] sm:$0xf]
  %v175 = vld [vmem:[%s1 + $0xec] sm:$0xf]
  %v176 = vld [vmem:[%s1 + $0xf0] sm:$0xf]
  %v177 = vld [vmem:[%s1 + $0xf4] sm:$0xf]
  %v178 = vld [vmem:[%s1 + $0xf8] sm:$0xf]
  %v179 = vld [vmem:[%s1 + $0xfc] sm:$0xf]
  %v278 = vunpack.c.l.b16 %v18
  %v279 = vunpack.c.h.b16 %v18
  %v280 = vunpack.c.l.b16 %v19
  %v281 = vunpack.c.h.b16 %v19
  %v282 = vunpack.c.l.b16 %v20
  %v283 = vunpack.c.h.b16 %v20
  %v284 = vunpack.c.l.b16 %v21
  %v285 = vunpack.c.h.b16 %v21
  %v286 = vunpack.c.l.b16 %v22
  %v287 = vunpack.c.h.b16 %v22
  %v288 = vunpack.c.l.b16 %v23
  %v289 = vunpack.c.h.b16 %v23
  %v290 = vunpack.c.l.b16 %v24
  %v291 = vunpack.c.h.b16 %v24
  %v292 = vunpack.c.l.b16 %v25
  %v293 = vunpack.c.h.b16 %v25
  %v294 = vunpack.c.l.b16 %v26
  %v295 = vunpack.c.h.b16 %v26
  %v296 = vunpack.c.l.b16 %v27
  %v297 = vunpack.c.h.b16 %v27
  %v298 = vunpack.c.l.b16 %v28
  %v299 = vunpack.c.h.b16 %v28
  %v300 = vunpack.c.l.b16 %v29
  %v301 = vunpack.c.h.b16 %v29
  %v302 = vunpack.c.l.b16 %v30
  %v303 = vunpack.c.h.b16 %v30
  %v304 = vunpack.c.l.b16 %v31
  %v305 = vunpack.c.h.b16 %v31
  %v306 = vunpack.c.l.b16 %v32
  %v307 = vunpack.c.h.b16 %v32
  %v308 = vunpack.c.l.b16 %v33
  %v309 = vunpack.c.h.b16 %v33
  %v310 = vunpack.c.l.b16 %v34
  %v311 = vunpack.c.h.b16 %v34
  %v312 = vunpack.c.l.b16 %v35
  %v313 = vunpack.c.h.b16 %v35
  %v314 = vunpack.c.l.b16 %v36
  %v315 = vunpack.c.h.b16 %v36
  %v316 = vunpack.c.l.b16 %v37
  %v317 = vunpack.c.h.b16 %v37
  %v318 = vunpack.c.l.b16 %v38
  %v319 = vunpack.c.h.b16 %v38
  %v320 = vunpack.c.l.b16 %v39
  %v321 = vunpack.c.h.b16 %v39
  %v322 = vunpack.c.l.b16 %v40
  %v323 = vunpack.c.h.b16 %v40
  %v324 = vunpack.c.l.b16 %v41
  %v325 = vunpack.c.h.b16 %v41
  %v326 = vunpack.c.l.b16 %v42
  %v327 = vunpack.c.h.b16 %v42
  %v328 = vunpack.c.l.b16 %v43
  %v329 = vunpack.c.h.b16 %v43
  %v330 = vunpack.c.l.b16 %v44
  %v331 = vunpack.c.h.b16 %v44
  %v332 = vunpack.c.l.b16 %v45
  %v333 = vunpack.c.h.b16 %v45
  %v334 = vunpack.c.l.b16 %v46
  %v335 = vunpack.c.h.b16 %v46
  %v336 = vunpack.c.l.b16 %v47
  %v337 = vunpack.c.h.b16 %v47
  %v338 = vunpack.c.l.b16 %v48
  %v339 = vunpack.c.h.b16 %v48
  %v340 = vunpack.c.l.b16 %v49
  %v341 = vunpack.c.h.b16 %v49
  %v342 = vunpack.c.l.b16 %v50
  %v343 = vunpack.c.h.b16 %v50
  %v344 = vunpack.c.l.b16 %v51
  %v345 = vunpack.c.h.b16 %v51
  %v346 = vunpack.c.l.b16 %v52
  %v347 = vunpack.c.h.b16 %v52
  %v348 = vunpack.c.l.b16 %v53
  %v349 = vunpack.c.h.b16 %v53
  %v350 = vunpack.c.l.b16 %v54
  %v351 = vunpack.c.h.b16 %v54
  %v352 = vunpack.c.l.b16 %v55
  %v353 = vunpack.c.h.b16 %v55
  %v354 = vunpack.c.l.b16 %v56
  %v355 = vunpack.c.h.b16 %v56
  %v356 = vunpack.c.l.b16 %v57
  %v357 = vunpack.c.h.b16 %v57
  %v358 = vunpack.c.l.b16 %v58
  %v359 = vunpack.c.h.b16 %v58
  %v360 = vunpack.c.l.b16 %v59
  %v361 = vunpack.c.h.b16 %v59
  %v362 = vunpack.c.l.b16 %v60
  %v363 = vunpack.c.h.b16 %v60
  %v364 = vunpack.c.l.b16 %v61
  %v365 = vunpack.c.h.b16 %v61
  %v366 = vunpack.c.l.b16 %v62
  %v367 = vunpack.c.h.b16 %v62
  %v368 = vunpack.c.l.b16 %v63
  %v369 = vunpack.c.h.b16 %v63
  %v370 = vunpack.c.l.b16 %v64
  %v371 = vunpack.c.h.b16 %v64
  %v372 = vunpack.c.l.b16 %v65
  %v373 = vunpack.c.h.b16 %v65
  %v374 = vunpack.c.l.b16 %v66
  %v375 = vunpack.c.h.b16 %v66
  %v376 = vunpack.c.l.b16 %v67
  %v377 = vunpack.c.h.b16 %v67
  %v378 = vunpack.c.l.b16 %v68
  %v379 = vunpack.c.h.b16 %v68
  %v380 = vunpack.c.l.b16 %v69
  %v381 = vunpack.c.h.b16 %v69
  %v382 = vunpack.c.l.b16 %v70
  %v383 = vunpack.c.h.b16 %v70
  %v384 = vunpack.c.l.b16 %v71
  %v385 = vunpack.c.h.b16 %v71
  %v386 = vunpack.c.l.b16 %v72
  %v387 = vunpack.c.h.b16 %v72
  %v388 = vunpack.c.l.b16 %v73
  %v389 = vunpack.c.h.b16 %v73
  %v390 = vunpack.c.l.b16 %v74
  %v391 = vunpack.c.h.b16 %v74
  %v392 = vunpack.c.l.b16 %v75
  %v393 = vunpack.c.h.b16 %v75
  %v394 = vunpack.c.l.b16 %v76
  %v395 = vunpack.c.h.b16 %v76
  %v396 = vunpack.c.l.b16 %v77
  %v397 = vunpack.c.h.b16 %v77
  %v398 = vunpack.c.l.b16 %v78
  %v399 = vunpack.c.h.b16 %v78
  %v400 = vunpack.c.l.b16 %v79
  %v401 = vunpack.c.h.b16 %v79
  %v402 = vunpack.c.l.b16 %v80
  %v403 = vunpack.c.h.b16 %v80
  %v404 = vunpack.c.l.b16 %v81
  %v405 = vunpack.c.h.b16 %v81
  %v406 = vunpack.c.l.b16 %v82
  %v407 = vunpack.c.h.b16 %v82
  %v408 = vunpack.c.l.b16 %v83
  %v409 = vunpack.c.h.b16 %v83
  %v410 = vunpack.c.l.b16 %v84
  %v411 = vunpack.c.h.b16 %v84
  %v412 = vunpack.c.l.b16 %v85
  %v413 = vunpack.c.h.b16 %v85
  %v414 = vunpack.c.l.b16 %v86
  %v415 = vunpack.c.h.b16 %v86
  %v416 = vunpack.c.l.b16 %v87
  %v417 = vunpack.c.h.b16 %v87
  %v418 = vunpack.c.l.b16 %v88
  %v419 = vunpack.c.h.b16 %v88
  %v420 = vunpack.c.l.b16 %v89
  %v421 = vunpack.c.h.b16 %v89
  %v422 = vunpack.c.l.b16 %v90
  %v423 = vunpack.c.h.b16 %v90
  %v424 = vunpack.c.l.b16 %v91
  %v425 = vunpack.c.h.b16 %v91
  %v426 = vunpack.c.l.b16 %v92
  %v427 = vunpack.c.h.b16 %v92
  %v428 = vunpack.c.l.b16 %v93
  %v429 = vunpack.c.h.b16 %v93
  %v430 = vunpack.c.l.b16 %v94
  %v431 = vunpack.c.h.b16 %v94
  %v432 = vunpack.c.l.b16 %v95
  %v433 = vunpack.c.h.b16 %v95
  %v434 = vunpack.c.l.b16 %v96
  %v435 = vunpack.c.h.b16 %v96
  %v436 = vunpack.c.l.b16 %v97
  %v437 = vunpack.c.h.b16 %v97
  %v438 = vunpack.c.l.b16 %v98
  %v439 = vunpack.c.h.b16 %v98
  %v440 = vunpack.c.l.b16 %v99
  %v441 = vunpack.c.h.b16 %v99
  %v442 = vunpack.c.l.b16 %v100
  %v443 = vunpack.c.h.b16 %v100
  %v444 = vunpack.c.l.b16 %v101
  %v445 = vunpack.c.h.b16 %v101
  %v446 = vunpack.c.l.b16 %v102
  %v447 = vunpack.c.h.b16 %v102
  %v448 = vunpack.c.l.b16 %v103
  %v449 = vunpack.c.h.b16 %v103
  %v450 = vunpack.c.l.b16 %v104
  %v451 = vunpack.c.h.b16 %v104
  %v452 = vunpack.c.l.b16 %v105
  %v453 = vunpack.c.h.b16 %v105
  %v454 = vunpack.c.l.b16 %v106
  %v455 = vunpack.c.h.b16 %v106
  %v456 = vunpack.c.l.b16 %v107
  %v457 = vunpack.c.h.b16 %v107
  %v458 = vunpack.c.l.b16 %v108
  %v459 = vunpack.c.h.b16 %v108
  %v460 = vunpack.c.l.b16 %v109
  %v461 = vunpack.c.h.b16 %v109
  %v462 = vunpack.c.l.b16 %v110
  %v463 = vunpack.c.h.b16 %v110
  %v464 = vunpack.c.l.b16 %v111
  %v465 = vunpack.c.h.b16 %v111
  %v466 = vunpack.c.l.b16 %v112
  %v467 = vunpack.c.h.b16 %v112
  %v468 = vunpack.c.l.b16 %v113
  %v469 = vunpack.c.h.b16 %v113
  %v470 = vunpack.c.l.b16 %v114
  %v471 = vunpack.c.h.b16 %v114
  %v472 = vunpack.c.l.b16 %v115
  %v473 = vunpack.c.h.b16 %v115
  %v474 = vpack.c.b16 %v282, %v278
  %v475 = vpack.c.b16 %v283, %v279
  %v476 = vpack.c.b16 %v284, %v280
  %v477 = vpack.c.b16 %v285, %v281
  %v478 = vpack.c.b16 %v290, %v286
  %v479 = vpack.c.b16 %v291, %v287
  %v480 = vpack.c.b16 %v292, %v288
  %v481 = vpack.c.b16 %v293, %v289
  %v482 = vpack.c.b16 %v298, %v294
  %v483 = vpack.c.b16 %v299, %v295
  %v484 = vpack.c.b16 %v300, %v296
  %v485 = vpack.c.b16 %v301, %v297
  %v486 = vpack.c.b16 %v306, %v302
  %v487 = vpack.c.b16 %v307, %v303
  %v488 = vpack.c.b16 %v308, %v304
  %v489 = vpack.c.b16 %v309, %v305
  %v490 = vpack.c.b16 %v314, %v310
  %v491 = vpack.c.b16 %v315, %v311
  %v492 = vpack.c.b16 %v316, %v312
  %v493 = vpack.c.b16 %v317, %v313
  %v494 = vpack.c.b16 %v322, %v318
  %v495 = vpack.c.b16 %v323, %v319
  %v496 = vpack.c.b16 %v324, %v320
  %v497 = vpack.c.b16 %v325, %v321
  %v498 = vpack.c.b16 %v330, %v326
  %v499 = vpack.c.b16 %v331, %v327
  %v500 = vpack.c.b16 %v332, %v328
  %v501 = vpack.c.b16 %v333, %v329
  %v502 = vpack.c.b16 %v338, %v334
  %v503 = vpack.c.b16 %v339, %v335
  %v504 = vpack.c.b16 %v340, %v336
  %v505 = vpack.c.b16 %v341, %v337
  %v506 = vpack.c.b16 %v346, %v342
  %v507 = vpack.c.b16 %v347, %v343
  %v508 = vpack.c.b16 %v348, %v344
  %v509 = vpack.c.b16 %v349, %v345
  %v510 = vpack.c.b16 %v354, %v350
  %v511 = vpack.c.b16 %v355, %v351
  %v512 = vpack.c.b16 %v356, %v352
  %v513 = vpack.c.b16 %v357, %v353
  %v514 = vpack.c.b16 %v362, %v358
  %v515 = vpack.c.b16 %v363, %v359
  %v516 = vpack.c.b16 %v364, %v360
  %v517 = vpack.c.b16 %v365, %v361
  %v518 = vpack.c.b16 %v370, %v366
  %v519 = vpack.c.b16 %v371, %v367
  %v520 = vpack.c.b16 %v372, %v368
  %v521 = vpack.c.b16 %v373, %v369
  %v522 = vpack.c.b16 %v378, %v374
  %v523 = vpack.c.b16 %v379, %v375
  %v524 = vpack.c.b16 %v380, %v376
  %v525 = vpack.c.b16 %v381, %v377
  %v526 = vpack.c.b16 %v386, %v382
  %v527 = vpack.c.b16 %v387, %v383
  %v528 = vpack.c.b16 %v388, %v384
  %v529 = vpack.c.b16 %v389, %v385
  %v530 = vpack.c.b16 %v394, %v390
  %v531 = vpack.c.b16 %v395, %v391
  %v532 = vpack.c.b16 %v396, %v392
  %v533 = vpack.c.b16 %v397, %v393
  %v534 = vpack.c.b16 %v402, %v398
  %v535 = vpack.c.b16 %v403, %v399
  %v536 = vpack.c.b16 %v404, %v400
  %v537 = vpack.c.b16 %v405, %v401
  %v538 = vpack.c.b16 %v410, %v406
  %v539 = vpack.c.b16 %v411, %v407
  %v540 = vpack.c.b16 %v412, %v408
  %v541 = vpack.c.b16 %v413, %v409
  %v542 = vpack.c.b16 %v418, %v414
  %v543 = vpack.c.b16 %v419, %v415
  %v544 = vpack.c.b16 %v420, %v416
  %v545 = vpack.c.b16 %v421, %v417
  %v546 = vpack.c.b16 %v426, %v422
  %v547 = vpack.c.b16 %v427, %v423
  %v548 = vpack.c.b16 %v428, %v424
  %v549 = vpack.c.b16 %v429, %v425
  %v550 = vpack.c.b16 %v434, %v430
  %v551 = vpack.c.b16 %v435, %v431
  %v552 = vpack.c.b16 %v436, %v432
  %v553 = vpack.c.b16 %v437, %v433
  %v554 = vpack.c.b16 %v442, %v438
  %v555 = vpack.c.b16 %v443, %v439
  %v556 = vpack.c.b16 %v444, %v440
  %v557 = vpack.c.b16 %v445, %v441
  %v558 = vpack.c.b16 %v450, %v446
  %v559 = vpack.c.b16 %v451, %v447
  %v560 = vpack.c.b16 %v452, %v448
  %v561 = vpack.c.b16 %v453, %v449
  %v562 = vpack.c.b16 %v458, %v454
  %v563 = vpack.c.b16 %v459, %v455
  %v564 = vpack.c.b16 %v460, %v456
  %v565 = vpack.c.b16 %v461, %v457
  %v566 = vpack.c.b16 %v466, %v462
  %v567 = vpack.c.b16 %v467, %v463
  %v568 = vpack.c.b16 %v468, %v464
  %v569 = vpack.c.b16 %v469, %v465
  %v570 = vpack.c.b16 %v470, %v470
  %v571 = vpack.c.b16 %v471, %v471
  %v572 = vpack.c.b16 %v472, %v472
  %v573 = vpack.c.b16 %v473, %v473
  %v738 = vunpack.c.l.b16 %v116
  %v739 = vunpack.c.l.b16 %v117
  %v740 = vunpack.c.l.b16 %v118
  %v741 = vunpack.c.l.b16 %v119
  %v742 = vunpack.c.l.b16 %v120
  %v743 = vunpack.c.l.b16 %v121
  %v744 = vunpack.c.l.b16 %v122
  %v745 = vunpack.c.l.b16 %v123
  %v746 = vunpack.c.l.b16 %v124
  %v747 = vunpack.c.l.b16 %v125
  %v748 = vunpack.c.l.b16 %v126
  %v749 = vunpack.c.l.b16 %v127
  %v750 = vunpack.c.l.b16 %v128
  %v751 = vunpack.c.l.b16 %v129
  %v752 = vunpack.c.l.b16 %v130
  %v753 = vunpack.c.l.b16 %v131
  %v754 = vunpack.c.l.b16 %v132
  %v755 = vunpack.c.l.b16 %v133
  %v756 = vunpack.c.l.b16 %v134
  %v757 = vunpack.c.l.b16 %v135
  %v758 = vunpack.c.l.b16 %v136
  %v759 = vunpack.c.l.b16 %v137
  %v760 = vunpack.c.l.b16 %v138
  %v761 = vunpack.c.l.b16 %v139
  %v762 = vunpack.c.l.b16 %v140
  %v763 = vunpack.c.l.b16 %v141
  %v764 = vunpack.c.l.b16 %v142
  %v765 = vunpack.c.l.b16 %v143
  %v766 = vunpack.c.l.b16 %v144
  %v767 = vunpack.c.l.b16 %v145
  %v768 = vunpack.c.l.b16 %v146
  %v769 = vunpack.c.l.b16 %v147
  %v770 = vunpack.c.l.b16 %v148
  %v771 = vunpack.c.l.b16 %v149
  %v772 = vunpack.c.l.b16 %v150
  %v773 = vunpack.c.l.b16 %v151
  %v774 = vunpack.c.l.b16 %v152
  %v775 = vunpack.c.l.b16 %v153
  %v776 = vunpack.c.l.b16 %v154
  %v777 = vunpack.c.l.b16 %v155
  %v778 = vunpack.c.l.b16 %v156
  %v779 = vunpack.c.l.b16 %v157
  %v780 = vunpack.c.l.b16 %v158
  %v781 = vunpack.c.l.b16 %v159
  %v782 = vunpack.c.l.b16 %v160
  %v783 = vunpack.c.l.b16 %v161
  %v784 = vunpack.c.l.b16 %v162
  %v785 = vunpack.c.l.b16 %v163
  %v786 = vunpack.c.l.b16 %v164
  %v787 = vunpack.c.l.b16 %v165
  %v788 = vunpack.c.l.b16 %v166
  %v789 = vunpack.c.l.b16 %v167
  %v790 = vunpack.c.l.b16 %v168
  %v791 = vunpack.c.l.b16 %v169
  %v792 = vunpack.c.l.b16 %v170
  %v793 = vunpack.c.l.b16 %v171
  %v794 = vunpack.c.l.b16 %v172
  %v795 = vunpack.c.l.b16 %v173
  %v796 = vunpack.c.l.b16 %v174
  %v797 = vunpack.c.l.b16 %v175
  %v798 = vunpack.c.l.b16 %v176
  %v799 = vunpack.c.l.b16 %v177
  %v800 = vunpack.c.l.b16 %v178
  %v801 = vunpack.c.l.b16 %v179
  %v802 = vpack.c.b16 %v739, %v738
  %v803 = vpack.c.b16 %v741, %v740
  %v804 = vpack.c.b16 %v743, %v742
  %v805 = vpack.c.b16 %v745, %v744
  %v806 = vpack.c.b16 %v747, %v746
  %v807 = vpack.c.b16 %v749, %v748
  %v808 = vpack.c.b16 %v751, %v750
  %v809 = vpack.c.b16 %v753, %v752
  %v810 = vpack.c.b16 %v755, %v754
  %v811 = vpack.c.b16 %v757, %v756
  %v812 = vpack.c.b16 %v759, %v758
  %v813 = vpack.c.b16 %v761, %v760
  %v814 = vpack.c.b16 %v763, %v762
  %v815 = vpack.c.b16 %v765, %v764
  %v816 = vpack.c.b16 %v767, %v766
  %v817 = vpack.c.b16 %v769, %v768
  %v818 = vpack.c.b16 %v771, %v770
  %v819 = vpack.c.b16 %v773, %v772
  %v820 = vpack.c.b16 %v775, %v774
  %v821 = vpack.c.b16 %v777, %v776
  %v822 = vpack.c.b16 %v779, %v778
  %v823 = vpack.c.b16 %v781, %v780
  %v824 = vpack.c.b16 %v783, %v782
  %v825 = vpack.c.b16 %v785, %v784
  %v826 = vpack.c.b16 %v787, %v786
  %v827 = vpack.c.b16 %v789, %v788
  %v828 = vpack.c.b16 %v791, %v790
  %v829 = vpack.c.b16 %v793, %v792
  %v830 = vpack.c.b16 %v795, %v794
  %v831 = vpack.c.b16 %v797, %v796
  %v832 = vpack.c.b16 %v799, %v798
  %v833 = vpack.c.b16 %v801, %v800
  %866 = vmatprep.subr.bf16.mxu0 0
  %867 = vmatpush1.bf16.msra.mxu0 %v802
  %868 = vmatprep.subr.bf16.mxu0 0
  %869 = vmatpush1.bf16.msra.mxu0 %v803
  %870 = vmatprep.subr.bf16.mxu0 0
  %871 = vmatpush1.bf16.msra.mxu0 %v804
  %872 = vmatprep.subr.bf16.mxu0 0
  %873 = vmatpush1.bf16.msra.mxu0 %v805
  %874 = vmatprep.subr.bf16.mxu0 0
  %875 = vmatpush1.bf16.msra.mxu0 %v806
  %876 = vmatprep.subr.bf16.mxu0 0
  %877 = vmatpush1.bf16.msra.mxu0 %v807
  %878 = vmatprep.subr.bf16.mxu0 0
  %879 = vmatpush1.bf16.msra.mxu0 %v808
  %880 = vmatprep.subr.bf16.mxu0 0
  %881 = vmatpush1.bf16.msra.mxu0 %v809
  %882 = vmatprep.subr.bf16.mxu0 0
  %883 = vmatpush1.bf16.msra.mxu0 %v810
  %884 = vmatprep.subr.bf16.mxu0 0
  %885 = vmatpush1.bf16.msra.mxu0 %v811
  %886 = vmatprep.subr.bf16.mxu0 0
  %887 = vmatpush1.bf16.msra.mxu0 %v812
  %888 = vmatprep.subr.bf16.mxu0 0
  %889 = vmatpush1.bf16.msra.mxu0 %v813
  %890 = vmatprep.subr.bf16.mxu0 0
  %891 = vmatpush1.bf16.msra.mxu0 %v814
  %892 = vmatprep.subr.bf16.mxu0 0
  %893 = vmatpush1.bf16.msra.mxu0 %v815
  %894 = vmatprep.subr.bf16.mxu0 0
  %895 = vmatpush1.bf16.msra.mxu0 %v816
  %896 = vmatprep.subr.bf16.mxu0 0
  %897 = vmatpush1.bf16.msra.mxu0 %v817
  %898 = vmatprep.mubr.bf16.mxu0 %v475
  %899 = vmatmul.mubr.bf16.gmra.mrb[0].mxu0 %v474
  %v900 = vpop.f32.mrb[0].mxu0
  %v901 = vadd.f32 0.0, %v900
  %v902 = vpop.f32.mrb[0].mxu0
  %v903 = vpop.f32.mrb[0].mxu0
  %v904 = vadd.f32 0.0, %v903
  %v905 = vpop.f32.mrb[0].mxu0
  %906 = vmatprep.mubr.bf16.mxu0 %v479
  %907 = vmatmul.mubr.bf16.gmra.mrb[0].mxu0 %v478
  %v908 = vpop.f32.mrb[0].mxu0
  %v909 = vadd.f32 0.0, %v908
  %v910 = vpop.f32.mrb[0].mxu0
  %v911 = vpop.f32.mrb[0].mxu0
  %v912 = vadd.f32 0.0, %v911
  %v913 = vpop.f32.mrb[0].mxu0
  %914 = vmatprep.mubr.bf16.mxu0 %v483
  %915 = vmatmul.mubr.bf16.gmra.mrb[0].mxu0 %v482
  %v916 = vpop.f32.mrb[0].mxu0
  %v917 = vadd.f32 0.0, %v916
  %v918 = vpop.f32.mrb[0].mxu0
  %v919 = vpop.f32.mrb[0].mxu0
  %v920 = vadd.f32 0.0, %v919
  %v921 = vpop.f32.mrb[0].mxu0
  %922 = vmatprep.mubr.bf16.mxu0 %v487
  %923 = vmatmul.mubr.bf16.gmra.mrb[0].mxu0 %v486
  %v924 = vpop.f32.mrb[0].mxu0
  %v925 = vadd.f32 0.0, %v924
  %v926 = vpop.f32.mrb[0].mxu0
  %v927 = vpop.f32.mrb[0].mxu0
  %v928 = vadd.f32 0.0, %v927
  %v929 = vpop.f32.mrb[0].mxu0
  %930 = vmatprep.mubr.bf16.mxu0 %v491
  %931 = vmatmul.mubr.bf16.gmra.mrb[0].mxu0 %v490
  %v932 = vpop.f32.mrb[0].mxu0
  %v933 = vadd.f32 0.0, %v932
  %v934 = vpop.f32.mrb[0].mxu0
  %v935 = vpop.f32.mrb[0].mxu0
  %v936 = vadd.f32 0.0, %v935
  %v937 = vpop.f32.mrb[0].mxu0
  %938 = vmatprep.mubr.bf16.mxu0 %v495
  %939 = vmatmul.mubr.bf16.gmra.mrb[0].mxu0 %v494
  %v940 = vpop.f32.mrb[0].mxu0
  %v941 = vadd.f32 0.0, %v940
  %v942 = vpop.f32.mrb[0].mxu0
  %v943 = vpop.f32.mrb[0].mxu0
  %v944 = vadd.f32 0.0, %v943
  %v945 = vpop.f32.mrb[0].mxu0
  %946 = vmatprep.mubr.bf16.mxu0 %v499
  %947 = vmatmul.mubr.bf16.gmra.mrb[0].mxu0 %v498
  %v948 = vpop.f32.mrb[0].mxu0
  %v949 = vadd.f32 0.0, %v948
  %v950 = vpop.f32.mrb[0].mxu0
  %v951 = vpop.f32.mrb[0].mxu0
  %v952 = vadd.f32 0.0, %v951
  %v953 = vpop.f32.mrb[0].mxu0
  %954 = vmatprep.mubr.bf16.mxu0 %v503
  %955 = vmatmul.mubr.bf16.gmra.mrb[0].mxu0 %v502
  %v956 = vpop.f32.mrb[0].mxu0
  %v957 = vadd.f32 0.0, %v956
  %v958 = vpop.f32.mrb[0].mxu0
  %v959 = vpop.f32.mrb[0].mxu0
  %v960 = vadd.f32 0.0, %v959
  %v961 = vpop.f32.mrb[0].mxu0
  %962 = vmatprep.mubr.bf16.mxu0 %v507
  %963 = vmatmul.mubr.bf16.gmra.mrb[0].mxu0 %v506
  %v964 = vpop.f32.mrb[0].mxu0
  %v965 = vadd.f32 0.0, %v964
  %v966 = vpop.f32.mrb[0].mxu0
  %v967 = vpop.f32.mrb[0].mxu0
  %v968 = vadd.f32 0.0, %v967
  %v969 = vpop.f32.mrb[0].mxu0
  %970 = vmatprep.mubr.bf16.mxu0 %v511
  %971 = vmatmul.mubr.bf16.gmra.mrb[0].mxu0 %v510
  %v972 = vpop.f32.mrb[0].mxu0
  %v973 = vadd.f32 0.0, %v972
  %v974 = vpop.f32.mrb[0].mxu0
  %v975 = vpop.f32.mrb[0].mxu0
  %v976 = vadd.f32 0.0, %v975
  %v977 = vpop.f32.mrb[0].mxu0
  %978 = vmatprep.mubr.bf16.mxu0 %v515
  %979 = vmatmul.mubr.bf16.gmra.mrb[0].mxu0 %v514
  %v980 = vpop.f32.mrb[0].mxu0
  %v981 = vadd.f32 0.0, %v980
  %v982 = vpop.f32.mrb[0].mxu0
  %v983 = vpop.f32.mrb[0].mxu0
  %v984 = vadd.f32 0.0, %v983
  %v985 = vpop.f32.mrb[0].mxu0
  %986 = vmatprep.mubr.bf16.mxu0 %v519
  %987 = vmatmul.mubr.bf16.gmra.mrb[0].mxu0 %v518
  %v988 = vpop.f32.mrb[0].mxu0
  %v989 = vadd.f32 0.0, %v988
  %v990 = vpop.f32.mrb[0].mxu0
  %v991 = vpop.f32.mrb[0].mxu0
  %v992 = vadd.f32 0.0, %v991
  %v993 = vpop.f32.mrb[0].mxu0
  %994 = vmatprep.mubr.bf16.mxu0 %v523
  %995 = vmatmul.mubr.bf16.gmra.mrb[0].mxu0 %v522
  %v996 = vpop.f32.mrb[0].mxu0
  %v997 = vadd.f32 0.0, %v996
  %v998 = vpop.f32.mrb[0].mxu0
  %v999 = vpop.f32.mrb[0].mxu0
  %v1000 = vadd.f32 0.0, %v999
  %v1001 = vpop.f32.mrb[0].mxu0
  %1002 = vmatprep.mubr.bf16.mxu0 %v527
  %1003 = vmatmul.mubr.bf16.gmra.mrb[0].mxu0 %v526
  %v1004 = vpop.f32.mrb[0].mxu0
  %v1005 = vadd.f32 0.0, %v1004
  %v1006 = vpop.f32.mrb[0].mxu0
  %v1007 = vpop.f32.mrb[0].mxu0
  %v1008 = vadd.f32 0.0, %v1007
  %v1009 = vpop.f32.mrb[0].mxu0
  %1010 = vmatprep.mubr.bf16.mxu0 %v531
  %1011 = vmatmul.mubr.bf16.gmra.mrb[0].mxu0 %v530
  %v1012 = vpop.f32.mrb[0].mxu0
  %v1013 = vadd.f32 0.0, %v1012
  %v1014 = vpop.f32.mrb[0].mxu0
  %v1015 = vpop.f32.mrb[0].mxu0
  %v1016 = vadd.f32 0.0, %v1015
  %v1017 = vpop.f32.mrb[0].mxu0
  %1018 = vmatprep.mubr.bf16.mxu0 %v535
  %1019 = vmatmul.mubr.bf16.gmra.mrb[0].mxu0 %v534
  %v1020 = vpop.f32.mrb[0].mxu0
  %v1021 = vadd.f32 0.0, %v1020
  %v1022 = vpop.f32.mrb[0].mxu0
  %v1023 = vpop.f32.mrb[0].mxu0
  %v1024 = vadd.f32 0.0, %v1023
  %v1025 = vpop.f32.mrb[0].mxu0
  %1026 = vmatprep.mubr.bf16.mxu0 %v539
  %1027 = vmatmul.mubr.bf16.gmra.mrb[0].mxu0 %v538
  %v1028 = vpop.f32.mrb[0].mxu0
  %v1029 = vadd.f32 0.0, %v1028
  %v1030 = vpop.f32.mrb[0].mxu0
  %v1031 = vpop.f32.mrb[0].mxu0
  %v1032 = vadd.f32 0.0, %v1031
  %v1033 = vpop.f32.mrb[0].mxu0
  %1034 = vmatprep.mubr.bf16.mxu0 %v543
  %1035 = vmatmul.mubr.bf16.gmra.mrb[0].mxu0 %v542
  %v1036 = vpop.f32.mrb[0].mxu0
  %v1037 = vadd.f32 0.0, %v1036
  %v1038 = vpop.f32.mrb[0].mxu0
  %v1039 = vpop.f32.mrb[0].mxu0
  %v1040 = vadd.f32 0.0, %v1039
  %v1041 = vpop.f32.mrb[0].mxu0
  %1042 = vmatprep.mubr.bf16.mxu0 %v547
  %1043 = vmatmul.mubr.bf16.gmra.mrb[0].mxu0 %v546
  %v1044 = vpop.f32.mrb[0].mxu0
  %v1045 = vadd.f32 0.0, %v1044
  %v1046 = vpop.f32.mrb[0].mxu0
  %v1047 = vpop.f32.mrb[0].mxu0
  %v1048 = vadd.f32 0.0, %v1047
  %v1049 = vpop.f32.mrb[0].mxu0
  %1050 = vmatprep.mubr.bf16.mxu0 %v551
  %1051 = vmatmul.mubr.bf16.gmra.mrb[0].mxu0 %v550
  %v1052 = vpop.f32.mrb[0].mxu0
  %v1053 = vadd.f32 0.0, %v1052
  %v1054 = vpop.f32.mrb[0].mxu0
  %v1055 = vpop.f32.mrb[0].mxu0
  %v1056 = vadd.f32 0.0, %v1055
  %v1057 = vpop.f32.mrb[0].mxu0
  %1058 = vmatprep.mubr.bf16.mxu0 %v555
  %1059 = vmatmul.mubr.bf16.gmra.mrb[0].mxu0 %v554
  %v1060 = vpop.f32.mrb[0].mxu0
  %v1061 = vadd.f32 0.0, %v1060
  %v1062 = vpop.f32.mrb[0].mxu0
  %v1063 = vpop.f32.mrb[0].mxu0
  %v1064 = vadd.f32 0.0, %v1063
  %v1065 = vpop.f32.mrb[0].mxu0
  %1066 = vmatprep.mubr.bf16.mxu0 %v559
  %1067 = vmatmul.mubr.bf16.gmra.mrb[0].mxu0 %v558
  %v1068 = vpop.f32.mrb[0].mxu0
  %v1069 = vadd.f32 0.0, %v1068
  %v1070 = vpop.f32.mrb[0].mxu0
  %v1071 = vpop.f32.mrb[0].mxu0
  %v1072 = vadd.f32 0.0, %v1071
  %v1073 = vpop.f32.mrb[0].mxu0
  %1074 = vmatprep.mubr.bf16.mxu0 %v563
  %1075 = vmatmul.mubr.bf16.gmra.mrb[0].mxu0 %v562
  %v1076 = vpop.f32.mrb[0].mxu0
  %v1077 = vadd.f32 0.0, %v1076
  %v1078 = vpop.f32.mrb[0].mxu0
  %v1079 = vpop.f32.mrb[0].mxu0
  %v1080 = vadd.f32 0.0, %v1079
  %v1081 = vpop.f32.mrb[0].mxu0
  %1082 = vmatprep.mubr.bf16.mxu0 %v567
  %1083 = vmatmul.mubr.bf16.gmra.mrb[0].mxu0 %v566
  %v1084 = vpop.f32.mrb[0].mxu0
  %v1085 = vadd.f32 0.0, %v1084
  %v1086 = vpop.f32.mrb[0].mxu0
  %v1087 = vpop.f32.mrb[0].mxu0
  %v1088 = vadd.f32 0.0, %v1087
  %v1089 = vpop.f32.mrb[0].mxu0
  %1090 = vmatprep.mubr.bf16.mxu0 %v571
  %1091 = vmatmul.mubr.bf16.gmra.mrb[0].mxu0 %v570
  %v1092 = vpop.f32.mrb[0].mxu0
  %v1093 = vadd.f32 0.0, %v1092
  %v1094 = vpop.f32.mrb[0].mxu0
  %v1095 = vpop.f32.mrb[0].mxu0
  %v1096 = vpop.f32.mrb[0].mxu0
  %1097 = vdwg.mxu0
  %1098 = vmatprep.subr.bf16.mxu0 0
  %1099 = vmatpush1.bf16.msra.mxu0 %v818
  %1100 = vmatprep.subr.bf16.mxu0 0
  %1101 = vmatpush1.bf16.msra.mxu0 %v819
  %1102 = vmatprep.subr.bf16.mxu0 0
  %1103 = vmatpush1.bf16.msra.mxu0 %v820
  %1104 = vmatprep.subr.bf16.mxu0 0
  %1105 = vmatpush1.bf16.msra.mxu0 %v821
  %1106 = vmatprep.subr.bf16.mxu0 0
  %1107 = vmatpush1.bf16.msra.mxu0 %v822
  %1108 = vmatprep.subr.bf16.mxu0 0
  %1109 = vmatpush1.bf16.msra.mxu0 %v823
  %1110 = vmatprep.subr.bf16.mxu0 0
  %1111 = vmatpush1.bf16.msra.mxu0 %v824
  %1112 = vmatprep.subr.bf16.mxu0 0
  %1113 = vmatpush1.bf16.msra.mxu0 %v825
  %1114 = vmatprep.subr.bf16.mxu0 0
  %1115 = vmatpush1.bf16.msra.mxu0 %v826
  %1116 = vmatprep.subr.bf16.mxu0 0
  %1117 = vmatpush1.bf16.msra.mxu0 %v827
  %1118 = vmatprep.subr.bf16.mxu0 0
  %1119 = vmatpush1.bf16.msra.mxu0 %v828
  %1120 = vmatprep.subr.bf16.mxu0 0
  %1121 = vmatpush1.bf16.msra.mxu0 %v829
  %1122 = vmatprep.subr.bf16.mxu0 0
  %1123 = vmatpush1.bf16.msra.mxu0 %v830
  %1124 = vmatprep.subr.bf16.mxu0 0
  %1125 = vmatpush1.bf16.msra.mxu0 %v831
  %1126 = vmatprep.subr.bf16.mxu0 0
  %1127 = vmatpush1.bf16.msra.mxu0 %v832
  %1128 = vmatprep.subr.bf16.mxu0 0
  %1129 = vmatpush1.bf16.msra.mxu0 %v833
  %1130 = vmatprep.mubr.bf16.mxu0 %v477
  %1131 = vmatmul.mubr.bf16.gmra.mrb[0].mxu0 %v476
  %v1132 = vpop.f32.mrb[0].mxu0
  %v1133 = vadd.f32 %v901, %v1132
  %v1134 = vpop.f32.mrb[0].mxu0
  %v1135 = vpop.f32.mrb[0].mxu0
  %v1136 = vadd.f32 %v904, %v1135
  %v1137 = vpop.f32.mrb[0].mxu0
  %1138 = vmatprep.mubr.bf16.mxu0 %v481
  %1139 = vmatmul.mubr.bf16.gmra.mrb[0].mxu0 %v480
  %v1140 = vpop.f32.mrb[0].mxu0
  %v1141 = vadd.f32 %v909, %v1140
  %v1142 = vpop.f32.mrb[0].mxu0
  %v1143 = vpop.f32.mrb[0].mxu0
  %v1144 = vadd.f32 %v912, %v1143
  %v1145 = vpop.f32.mrb[0].mxu0
  %1146 = vmatprep.mubr.bf16.mxu0 %v485
  %1147 = vmatmul.mubr.bf16.gmra.mrb[0].mxu0 %v484
  %v1148 = vpop.f32.mrb[0].mxu0
  %v1149 = vadd.f32 %v917, %v1148
  %v1150 = vpop.f32.mrb[0].mxu0
  %v1151 = vpop.f32.mrb[0].mxu0
  %v1152 = vadd.f32 %v920, %v1151
  %v1153 = vpop.f32.mrb[0].mxu0
  %1154 = vmatprep.mubr.bf16.mxu0 %v489
  %1155 = vmatmul.mubr.bf16.gmra.mrb[0].mxu0 %v488
  %v1156 = vpop.f32.mrb[0].mxu0
  %v1157 = vadd.f32 %v925, %v1156
  %v1158 = vpop.f32.mrb[0].mxu0
  %v1159 = vpop.f32.mrb[0].mxu0
  %v1160 = vadd.f32 %v928, %v1159
  %v1161 = vpop.f32.mrb[0].mxu0
  %1162 = vmatprep.mubr.bf16.mxu0 %v493
  %1163 = vmatmul.mubr.bf16.gmra.mrb[0].mxu0 %v492
  %v1164 = vpop.f32.mrb[0].mxu0
  %v1165 = vadd.f32 %v933, %v1164
  %v1166 = vpop.f32.mrb[0].mxu0
  %v1167 = vpop.f32.mrb[0].mxu0
  %v1168 = vadd.f32 %v936, %v1167
  %v1169 = vpop.f32.mrb[0].mxu0
  %1170 = vmatprep.mubr.bf16.mxu0 %v497
  %1171 = vmatmul.mubr.bf16.gmra.mrb[0].mxu0 %v496
  %v1172 = vpop.f32.mrb[0].mxu0
  %v1173 = vadd.f32 %v941, %v1172
  %v1174 = vpop.f32.mrb[0].mxu0
  %v1175 = vpop.f32.mrb[0].mxu0
  %v1176 = vadd.f32 %v944, %v1175
  %v1177 = vpop.f32.mrb[0].mxu0
  %1178 = vmatprep.mubr.bf16.mxu0 %v501
  %1179 = vmatmul.mubr.bf16.gmra.mrb[0].mxu0 %v500
  %v1180 = vpop.f32.mrb[0].mxu0
  %v1181 = vadd.f32 %v949, %v1180
  %v1182 = vpop.f32.mrb[0].mxu0
  %v1183 = vpop.f32.mrb[0].mxu0
  %v1184 = vadd.f32 %v952, %v1183
  %v1185 = vpop.f32.mrb[0].mxu0
  %1186 = vmatprep.mubr.bf16.mxu0 %v505
  %1187 = vmatmul.mubr.bf16.gmra.mrb[0].mxu0 %v504
  %v1188 = vpop.f32.mrb[0].mxu0
  %v1189 = vadd.f32 %v957, %v1188
  %v1190 = vpop.f32.mrb[0].mxu0
  %v1191 = vpop.f32.mrb[0].mxu0
  %v1192 = vadd.f32 %v960, %v1191
  %v1193 = vpop.f32.mrb[0].mxu0
  %1194 = vmatprep.mubr.bf16.mxu0 %v509
  %1195 = vmatmul.mubr.bf16.gmra.mrb[0].mxu0 %v508
  %v1196 = vpop.f32.mrb[0].mxu0
  %v1197 = vadd.f32 %v965, %v1196
  %v1198 = vpop.f32.mrb[0].mxu0
  %v1199 = vpop.f32.mrb[0].mxu0
  %v1200 = vadd.f32 %v968, %v1199
  %v1201 = vpop.f32.mrb[0].mxu0
  %1202 = vmatprep.mubr.bf16.mxu0 %v513
  %1203 = vmatmul.mubr.bf16.gmra.mrb[0].mxu0 %v512
  %v1204 = vpop.f32.mrb[0].mxu0
  %v1205 = vadd.f32 %v973, %v1204
  %v1206 = vpop.f32.mrb[0].mxu0
  %v1207 = vpop.f32.mrb[0].mxu0
  %v1208 = vadd.f32 %v976, %v1207
  %v1209 = vpop.f32.mrb[0].mxu0
  %1210 = vmatprep.mubr.bf16.mxu0 %v517
  %1211 = vmatmul.mubr.bf16.gmra.mrb[0].mxu0 %v516
  %v1212 = vpop.f32.mrb[0].mxu0
  %v1213 = vadd.f32 %v981, %v1212
  %v1214 = vpop.f32.mrb[0].mxu0
  %v1215 = vpop.f32.mrb[0].mxu0
  %v1216 = vadd.f32 %v984, %v1215
  %v1217 = vpop.f32.mrb[0].mxu0
  %1218 = vmatprep.mubr.bf16.mxu0 %v521
  %1219 = vmatmul.mubr.bf16.gmra.mrb[0].mxu0 %v520
  %v1220 = vpop.f32.mrb[0].mxu0
  %v1221 = vadd.f32 %v989, %v1220
  %v1222 = vpop.f32.mrb[0].mxu0
  %v1223 = vpop.f32.mrb[0].mxu0
  %v1224 = vadd.f32 %v992, %v1223
  %v1225 = vpop.f32.mrb[0].mxu0
  %1226 = vmatprep.mubr.bf16.mxu0 %v525
  %1227 = vmatmul.mubr.bf16.gmra.mrb[0].mxu0 %v524
  %v1228 = vpop.f32.mrb[0].mxu0
  %v1229 = vadd.f32 %v997, %v1228
  %v1230 = vpop.f32.mrb[0].mxu0
  %v1231 = vpop.f32.mrb[0].mxu0
  %v1232 = vadd.f32 %v1000, %v1231
  %v1233 = vpop.f32.mrb[0].mxu0
  %1234 = vmatprep.mubr.bf16.mxu0 %v529
  %1235 = vmatmul.mubr.bf16.gmra.mrb[0].mxu0 %v528
  %v1236 = vpop.f32.mrb[0].mxu0
  %v1237 = vadd.f32 %v1005, %v1236
  %v1238 = vpop.f32.mrb[0].mxu0
  %v1239 = vpop.f32.mrb[0].mxu0
  %v1240 = vadd.f32 %v1008, %v1239
  %v1241 = vpop.f32.mrb[0].mxu0
  %1242 = vmatprep.mubr.bf16.mxu0 %v533
  %1243 = vmatmul.mubr.bf16.gmra.mrb[0].mxu0 %v532
  %v1244 = vpop.f32.mrb[0].mxu0
  %v1245 = vadd.f32 %v1013, %v1244
  %v1246 = vpop.f32.mrb[0].mxu0
  %v1247 = vpop.f32.mrb[0].mxu0
  %v1248 = vadd.f32 %v1016, %v1247
  %v1249 = vpop.f32.mrb[0].mxu0
  %1250 = vmatprep.mubr.bf16.mxu0 %v537
  %1251 = vmatmul.mubr.bf16.gmra.mrb[0].mxu0 %v536
  %v1252 = vpop.f32.mrb[0].mxu0
  %v1253 = vadd.f32 %v1021, %v1252
  %v1254 = vpop.f32.mrb[0].mxu0
  %v1255 = vpop.f32.mrb[0].mxu0
  %v1256 = vadd.f32 %v1024, %v1255
  %v1257 = vpop.f32.mrb[0].mxu0
  %1258 = vmatprep.mubr.bf16.mxu0 %v541
  %1259 = vmatmul.mubr.bf16.gmra.mrb[0].mxu0 %v540
  %v1260 = vpop.f32.mrb[0].mxu0
  %v1261 = vadd.f32 %v1029, %v1260
  %v1262 = vpop.f32.mrb[0].mxu0
  %v1263 = vpop.f32.mrb[0].mxu0
  %v1264 = vadd.f32 %v1032, %v1263
  %v1265 = vpop.f32.mrb[0].mxu0
  %1266 = vmatprep.mubr.bf16.mxu0 %v545
  %1267 = vmatmul.mubr.bf16.gmra.mrb[0].mxu0 %v544
  %v1268 = vpop.f32.mrb[0].mxu0
  %v1269 = vadd.f32 %v1037, %v1268
  %v1270 = vpop.f32.mrb[0].mxu0
  %v1271 = vpop.f32.mrb[0].mxu0
  %v1272 = vadd.f32 %v1040, %v1271
  %v1273 = vpop.f32.mrb[0].mxu0
  %1274 = vmatprep.mubr.bf16.mxu0 %v549
  %1275 = vmatmul.mubr.bf16.gmra.mrb[0].mxu0 %v548
  %v1276 = vpop.f32.mrb[0].mxu0
  %v1277 = vadd.f32 %v1045, %v1276
  %v1278 = vpop.f32.mrb[0].mxu0
  %v1279 = vpop.f32.mrb[0].mxu0
  %v1280 = vadd.f32 %v1048, %v1279
  %v1281 = vpop.f32.mrb[0].mxu0
  %1282 = vmatprep.mubr.bf16.mxu0 %v553
  %1283 = vmatmul.mubr.bf16.gmra.mrb[0].mxu0 %v552
  %v1284 = vpop.f32.mrb[0].mxu0
  %v1285 = vadd.f32 %v1053, %v1284
  %v1286 = vpop.f32.mrb[0].mxu0
  %v1287 = vpop.f32.mrb[0].mxu0
  %v1288 = vadd.f32 %v1056, %v1287
  %v1289 = vpop.f32.mrb[0].mxu0
  %1290 = vmatprep.mubr.bf16.mxu0 %v557
  %1291 = vmatmul.mubr.bf16.gmra.mrb[0].mxu0 %v556
  %v1292 = vpop.f32.mrb[0].mxu0
  %v1293 = vadd.f32 %v1061, %v1292
  %v1294 = vpop.f32.mrb[0].mxu0
  %v1295 = vpop.f32.mrb[0].mxu0
  %v1296 = vadd.f32 %v1064, %v1295
  %v1297 = vpop.f32.mrb[0].mxu0
  %1298 = vmatprep.mubr.bf16.mxu0 %v561
  %1299 = vmatmul.mubr.bf16.gmra.mrb[0].mxu0 %v560
  %v1300 = vpop.f32.mrb[0].mxu0
  %v1301 = vadd.f32 %v1069, %v1300
  %v1302 = vpop.f32.mrb[0].mxu0
  %v1303 = vpop.f32.mrb[0].mxu0
  %v1304 = vadd.f32 %v1072, %v1303
  %v1305 = vpop.f32.mrb[0].mxu0
  %1306 = vmatprep.mubr.bf16.mxu0 %v565
  %1307 = vmatmul.mubr.bf16.gmra.mrb[0].mxu0 %v564
  %v1308 = vpop.f32.mrb[0].mxu0
  %v1309 = vadd.f32 %v1077, %v1308
  %v1310 = vpop.f32.mrb[0].mxu0
  %v1311 = vpop.f32.mrb[0].mxu0
  %v1312 = vadd.f32 %v1080, %v1311
  %v1313 = vpop.f32.mrb[0].mxu0
  %1314 = vmatprep.mubr.bf16.mxu0 %v569
  %1315 = vmatmul.mubr.bf16.gmra.mrb[0].mxu0 %v568
  %v1316 = vpop.f32.mrb[0].mxu0
  %v1317 = vadd.f32 %v1085, %v1316
  %v1318 = vpop.f32.mrb[0].mxu0
  %v1319 = vpop.f32.mrb[0].mxu0
  %v1320 = vadd.f32 %v1088, %v1319
  %v1321 = vpop.f32.mrb[0].mxu0
  %1322 = vmatprep.mubr.bf16.mxu0 %v573
  %1323 = vmatmul.mubr.bf16.gmra.mrb[0].mxu0 %v572
  %v1324 = vpop.f32.mrb[0].mxu0
  %v1325 = vadd.f32 %v1093, %v1324
  %v1326 = vpop.f32.mrb[0].mxu0
  %v1327 = vpop.f32.mrb[0].mxu0
  %v1328 = vpop.f32.mrb[0].mxu0
  %1329 = vdwg.mxu0
  %v1330 = vadd.f32 %v1133, %v1136
  %v1331 = vadd.f32 %v1330, %v1141
  %v1332 = vadd.f32 %v1331, %v1144
  %v1333 = vadd.f32 %v1332, %v1149
  %v1334 = vadd.f32 %v1333, %v1152
  %v1335 = vadd.f32 %v1334, %v1157
  %v1336 = vadd.f32 %v1335, %v1160
  %v1337 = vadd.f32 %v1336, %v1165
  %v1338 = vadd.f32 %v1337, %v1168
  %v1339 = vadd.f32 %v1338, %v1173
  %v1340 = vadd.f32 %v1339, %v1176
  %v1341 = vadd.f32 %v1340, %v1181
  %v1342 = vadd.f32 %v1341, %v1184
  %v1343 = vadd.f32 %v1342, %v1189
  %v1344 = vadd.f32 %v1343, %v1192
  %v1345 = vadd.f32 %v1344, %v1197
  %v1346 = vadd.f32 %v1345, %v1200
  %v1347 = vadd.f32 %v1346, %v1205
  %v1348 = vadd.f32 %v1347, %v1208
  %v1349 = vadd.f32 %v1348, %v1213
  %v1350 = vadd.f32 %v1349, %v1216
  %v1351 = vadd.f32 %v1350, %v1221
  %v1352 = vadd.f32 %v1351, %v1224
  %v1353 = vadd.f32 %v1352, %v1229
  %v1354 = vadd.f32 %v1353, %v1232
  %v1355 = vadd.f32 %v1354, %v1237
  %v1356 = vadd.f32 %v1355, %v1240
  %v1357 = vadd.f32 %v1356, %v1245
  %v1358 = vadd.f32 %v1357, %v1248
  %v1359 = vadd.f32 %v1358, %v1253
  %v1360 = vadd.f32 %v1359, %v1256
  %v1361 = vadd.f32 %v1360, %v1261
  %v1362 = vadd.f32 %v1361, %v1264
  %v1363 = vadd.f32 %v1362, %v1269
  %v1364 = vadd.f32 %v1363, %v1272
  %v1365 = vadd.f32 %v1364, %v1277
  %v1366 = vadd.f32 %v1365, %v1280
  %v1367 = vadd.f32 %v1366, %v1285
  %v1368 = vadd.f32 %v1367, %v1288
  %v1369 = vadd.f32 %v1368, %v1293
  %v1370 = vadd.f32 %v1369, %v1296
  %v1371 = vadd.f32 %v1370, %v1301
  %v1372 = vadd.f32 %v1371, %v1304
  %v1373 = vadd.f32 %v1372, %v1309
  %v1374 = vadd.f32 %v1373, %v1312
  %v1375 = vadd.f32 %v1374, %v1317
  %v1376 = vadd.f32 %v1375, %v1320
  %v1377 = vadd.f32 %v1376, %v1325
  %v1378 = vrot.slane %v1377, 4
  %v1379 = vadd.f32 %v1377, %v1378
  %v1380 = vrot.slane %v1379, 2
  %v1381 = vadd.f32 %v1379, %v1380
  %v1382 = vrot.slane %v1381, 1
  %v1383 = vadd.f32 %v1381, %v1382
  %v1384 = vmul.f32 %v1133, %v1133
  %v1385 = vmul.f32 %v1136, %v1136
  %v1386 = vmul.f32 %v1141, %v1141
  %v1387 = vmul.f32 %v1144, %v1144
  %v1388 = vmul.f32 %v1149, %v1149
  %v1389 = vmul.f32 %v1152, %v1152
  %v1390 = vmul.f32 %v1157, %v1157
  %v1391 = vmul.f32 %v1160, %v1160
  %v1392 = vmul.f32 %v1165, %v1165
  %v1393 = vmul.f32 %v1168, %v1168
  %v1394 = vmul.f32 %v1173, %v1173
  %v1395 = vmul.f32 %v1176, %v1176
  %v1396 = vmul.f32 %v1181, %v1181
  %v1397 = vmul.f32 %v1184, %v1184
  %v1398 = vmul.f32 %v1189, %v1189
  %v1399 = vmul.f32 %v1192, %v1192
  %v1400 = vmul.f32 %v1197, %v1197
  %v1401 = vmul.f32 %v1200, %v1200
  %v1402 = vmul.f32 %v1205, %v1205
  %v1403 = vmul.f32 %v1208, %v1208
  %v1404 = vmul.f32 %v1213, %v1213
  %v1405 = vmul.f32 %v1216, %v1216
  %v1406 = vmul.f32 %v1221, %v1221
  %v1407 = vmul.f32 %v1224, %v1224
  %v1408 = vmul.f32 %v1229, %v1229
  %v1409 = vmul.f32 %v1232, %v1232
  %v1410 = vmul.f32 %v1237, %v1237
  %v1411 = vmul.f32 %v1240, %v1240
  %v1412 = vmul.f32 %v1245, %v1245
  %v1413 = vmul.f32 %v1248, %v1248
  %v1414 = vmul.f32 %v1253, %v1253
  %v1415 = vmul.f32 %v1256, %v1256
  %v1416 = vmul.f32 %v1261, %v1261
  %v1417 = vmul.f32 %v1264, %v1264
  %v1418 = vmul.f32 %v1269, %v1269
  %v1419 = vmul.f32 %v1272, %v1272
  %v1420 = vmul.f32 %v1277, %v1277
  %v1421 = vmul.f32 %v1280, %v1280
  %v1422 = vmul.f32 %v1285, %v1285
  %v1423 = vmul.f32 %v1288, %v1288
  %v1424 = vmul.f32 %v1293, %v1293
  %v1425 = vmul.f32 %v1296, %v1296
  %v1426 = vmul.f32 %v1301, %v1301
  %v1427 = vmul.f32 %v1304, %v1304
  %v1428 = vmul.f32 %v1309, %v1309
  %v1429 = vmul.f32 %v1312, %v1312
  %v1430 = vmul.f32 %v1317, %v1317
  %v1431 = vmul.f32 %v1320, %v1320
  %v1432 = vmul.f32 %v1325, %v1325
  %v1433 = vadd.f32 %v1384, %v1385
  %v1434 = vadd.f32 %v1433, %v1386
  %v1435 = vadd.f32 %v1434, %v1387
  %v1436 = vadd.f32 %v1435, %v1388
  %v1437 = vadd.f32 %v1436, %v1389
  %v1438 = vadd.f32 %v1437, %v1390
  %v1439 = vadd.f32 %v1438, %v1391
  %v1440 = vadd.f32 %v1439, %v1392
  %v1441 = vadd.f32 %v1440, %v1393
  %v1442 = vadd.f32 %v1441, %v1394
  %v1443 = vadd.f32 %v1442, %v1395
  %v1444 = vadd.f32 %v1443, %v1396
  %v1445 = vadd.f32 %v1444, %v1397
  %v1446 = vadd.f32 %v1445, %v1398
  %v1447 = vadd.f32 %v1446, %v1399
  %v1448 = vadd.f32 %v1447, %v1400
  %v1449 = vadd.f32 %v1448, %v1401
  %v1450 = vadd.f32 %v1449, %v1402
  %v1451 = vadd.f32 %v1450, %v1403
  %v1452 = vadd.f32 %v1451, %v1404
  %v1453 = vadd.f32 %v1452, %v1405
  %v1454 = vadd.f32 %v1453, %v1406
  %v1455 = vadd.f32 %v1454, %v1407
  %v1456 = vadd.f32 %v1455, %v1408
  %v1457 = vadd.f32 %v1456, %v1409
  %v1458 = vadd.f32 %v1457, %v1410
  %v1459 = vadd.f32 %v1458, %v1411
  %v1460 = vadd.f32 %v1459, %v1412
  %v1461 = vadd.f32 %v1460, %v1413
  %v1462 = vadd.f32 %v1461, %v1414
  %v1463 = vadd.f32 %v1462, %v1415
  %v1464 = vadd.f32 %v1463, %v1416
  %v1465 = vadd.f32 %v1464, %v1417
  %v1466 = vadd.f32 %v1465, %v1418
  %v1467 = vadd.f32 %v1466, %v1419
  %v1468 = vadd.f32 %v1467, %v1420
  %v1469 = vadd.f32 %v1468, %v1421
  %v1470 = vadd.f32 %v1469, %v1422
  %v1471 = vadd.f32 %v1470, %v1423
  %v1472 = vadd.f32 %v1471, %v1424
  %v1473 = vadd.f32 %v1472, %v1425
  %v1474 = vadd.f32 %v1473, %v1426
  %v1475 = vadd.f32 %v1474, %v1427
  %v1476 = vadd.f32 %v1475, %v1428
  %v1477 = vadd.f32 %v1476, %v1429
  %v1478 = vadd.f32 %v1477, %v1430
  %v1479 = vadd.f32 %v1478, %v1431
  %v1480 = vadd.f32 %v1479, %v1432
  %v1481 = vrot.slane %v1480, 4
  %v1482 = vadd.f32 %v1480, %v1481
  %v1483 = vrot.slane %v1482, 2
  %v1484 = vadd.f32 %v1482, %v1483
  %v1485 = vrot.slane %v1484, 1
  %v1486 = vadd.f32 %v1484, %v1485
  %v1487 = vmul.f32 %v1383, 0.0025510204
  %v1488 = vmul.f32 %v1486, 0.0025510204
  %v1489 = vmul.f32 %v1487, %v1487
  %v1490 = vsub.f32 %v1488, %v1489
  %v1491 = vmax.f32 %v1490, 0.0
  %v1492 = vld [vmem:[%s2] sm:$0x1]
  %v1493 = vadd.f32 %v1491, 1e-05
  %v1494 = vrsqrt.pop %v1493
  %v1495 = vmul.f32 %v1492, %v1494
  %v1496 = vld [vmem:[%s3] sm:$0x1]
  %v1497 = vmul.f32 %v1487, %v1495
  %v1498 = vsub.f32 %v1496, %v1497
  %v1500 = vlaneseq
  %v1501 = vshrl.u32 %v1500, 7
  %v1502 = vsub.s32 0, %v1501
  %v1503 = vrot.slane %v1495, %v1502
  %v1505 = vmul.f32 %v1133, %v1503
  %v1506 = vmul.f32 %v1136, %v1503
  %v1507 = vmul.f32 %v1141, %v1503
  %v1508 = vmul.f32 %v1144, %v1503
  %v1509 = vmul.f32 %v1149, %v1503
  %v1510 = vmul.f32 %v1152, %v1503
  %v1511 = vmul.f32 %v1157, %v1503
  %v1512 = vmul.f32 %v1160, %v1503
  %v1513 = vmul.f32 %v1165, %v1503
  %v1514 = vmul.f32 %v1168, %v1503
  %v1515 = vmul.f32 %v1173, %v1503
  %v1516 = vmul.f32 %v1176, %v1503
  %v1517 = vmul.f32 %v1181, %v1503
  %v1518 = vmul.f32 %v1184, %v1503
  %v1519 = vmul.f32 %v1189, %v1503
  %v1520 = vmul.f32 %v1192, %v1503
  %v1521 = vmul.f32 %v1197, %v1503
  %v1522 = vmul.f32 %v1200, %v1503
  %v1523 = vmul.f32 %v1205, %v1503
  %v1524 = vmul.f32 %v1208, %v1503
  %v1525 = vmul.f32 %v1213, %v1503
  %v1526 = vmul.f32 %v1216, %v1503
  %v1527 = vmul.f32 %v1221, %v1503
  %v1528 = vmul.f32 %v1224, %v1503
  %v1529 = vmul.f32 %v1229, %v1503
  %v1530 = vmul.f32 %v1232, %v1503
  %v1531 = vmul.f32 %v1237, %v1503
  %v1532 = vmul.f32 %v1240, %v1503
  %v1533 = vmul.f32 %v1245, %v1503
  %v1534 = vmul.f32 %v1248, %v1503
  %v1535 = vmul.f32 %v1253, %v1503
  %v1536 = vmul.f32 %v1256, %v1503
  %v1537 = vmul.f32 %v1261, %v1503
  %v1538 = vmul.f32 %v1264, %v1503
  %v1539 = vmul.f32 %v1269, %v1503
  %v1540 = vmul.f32 %v1272, %v1503
  %v1541 = vmul.f32 %v1277, %v1503
  %v1542 = vmul.f32 %v1280, %v1503
  %v1543 = vmul.f32 %v1285, %v1503
  %v1544 = vmul.f32 %v1288, %v1503
  %v1545 = vmul.f32 %v1293, %v1503
  %v1546 = vmul.f32 %v1296, %v1503
  %v1547 = vmul.f32 %v1301, %v1503
  %v1548 = vmul.f32 %v1304, %v1503
  %v1549 = vmul.f32 %v1309, %v1503
  %v1550 = vmul.f32 %v1312, %v1503
  %v1551 = vmul.f32 %v1317, %v1503
  %v1552 = vmul.f32 %v1320, %v1503
  %v1553 = vmul.f32 %v1325, %v1503
  %v1555 = vlaneseq
  %v1556 = vshrl.u32 %v1555, 7
  %v1557 = vsub.s32 0, %v1556
  %v1558 = vrot.slane %v1498, %v1557
  %v1560 = vadd.f32 %v1505, %v1558
  %v1561 = vadd.f32 %v1506, %v1558
  %v1562 = vadd.f32 %v1507, %v1558
  %v1563 = vadd.f32 %v1508, %v1558
  %v1564 = vadd.f32 %v1509, %v1558
  %v1565 = vadd.f32 %v1510, %v1558
  %v1566 = vadd.f32 %v1511, %v1558
  %v1567 = vadd.f32 %v1512, %v1558
  %v1568 = vadd.f32 %v1513, %v1558
  %v1569 = vadd.f32 %v1514, %v1558
  %v1570 = vadd.f32 %v1515, %v1558
  %v1571 = vadd.f32 %v1516, %v1558
  %v1572 = vadd.f32 %v1517, %v1558
  %v1573 = vadd.f32 %v1518, %v1558
  %v1574 = vadd.f32 %v1519, %v1558
  %v1575 = vadd.f32 %v1520, %v1558
  %v1576 = vadd.f32 %v1521, %v1558
  %v1577 = vadd.f32 %v1522, %v1558
  %v1578 = vadd.f32 %v1523, %v1558
  %v1579 = vadd.f32 %v1524, %v1558
  %v1580 = vadd.f32 %v1525, %v1558
  %v1581 = vadd.f32 %v1526, %v1558
  %v1582 = vadd.f32 %v1527, %v1558
  %v1583 = vadd.f32 %v1528, %v1558
  %v1584 = vadd.f32 %v1529, %v1558
  %v1585 = vadd.f32 %v1530, %v1558
  %v1586 = vadd.f32 %v1531, %v1558
  %v1587 = vadd.f32 %v1532, %v1558
  %v1588 = vadd.f32 %v1533, %v1558
  %v1589 = vadd.f32 %v1534, %v1558
  %v1590 = vadd.f32 %v1535, %v1558
  %v1591 = vadd.f32 %v1536, %v1558
  %v1592 = vadd.f32 %v1537, %v1558
  %v1593 = vadd.f32 %v1538, %v1558
  %v1594 = vadd.f32 %v1539, %v1558
  %v1595 = vadd.f32 %v1540, %v1558
  %v1596 = vadd.f32 %v1541, %v1558
  %v1597 = vadd.f32 %v1542, %v1558
  %v1598 = vadd.f32 %v1543, %v1558
  %v1599 = vadd.f32 %v1544, %v1558
  %v1600 = vadd.f32 %v1545, %v1558
  %v1601 = vadd.f32 %v1546, %v1558
  %v1602 = vadd.f32 %v1547, %v1558
  %v1603 = vadd.f32 %v1548, %v1558
  %v1604 = vadd.f32 %v1549, %v1558
  %v1605 = vadd.f32 %v1550, %v1558
  %v1606 = vadd.f32 %v1551, %v1558
  %v1607 = vadd.f32 %v1552, %v1558
  %v1608 = vadd.f32 %v1553, %v1558
  %v1609 = vmax.f32 %v1560, 0.0
  %v1610 = vmax.f32 %v1561, 0.0
  %v1611 = vmax.f32 %v1562, 0.0
  %v1612 = vmax.f32 %v1563, 0.0
  %v1613 = vmax.f32 %v1564, 0.0
  %v1614 = vmax.f32 %v1565, 0.0
  %v1615 = vmax.f32 %v1566, 0.0
  %v1616 = vmax.f32 %v1567, 0.0
  %v1617 = vmax.f32 %v1568, 0.0
  %v1618 = vmax.f32 %v1569, 0.0
  %v1619 = vmax.f32 %v1570, 0.0
  %v1620 = vmax.f32 %v1571, 0.0
  %v1621 = vmax.f32 %v1572, 0.0
  %v1622 = vmax.f32 %v1573, 0.0
  %v1623 = vmax.f32 %v1574, 0.0
  %v1624 = vmax.f32 %v1575, 0.0
  %v1625 = vmax.f32 %v1576, 0.0
  %v1626 = vmax.f32 %v1577, 0.0
  %v1627 = vmax.f32 %v1578, 0.0
  %v1628 = vmax.f32 %v1579, 0.0
  %v1629 = vmax.f32 %v1580, 0.0
  %v1630 = vmax.f32 %v1581, 0.0
  %v1631 = vmax.f32 %v1582, 0.0
  %v1632 = vmax.f32 %v1583, 0.0
  %v1633 = vmax.f32 %v1584, 0.0
  %v1634 = vmax.f32 %v1585, 0.0
  %v1635 = vmax.f32 %v1586, 0.0
  %v1636 = vmax.f32 %v1587, 0.0
  %v1637 = vmax.f32 %v1588, 0.0
  %v1638 = vmax.f32 %v1589, 0.0
  %v1639 = vmax.f32 %v1590, 0.0
  %v1640 = vmax.f32 %v1591, 0.0
  %v1641 = vmax.f32 %v1592, 0.0
  %v1642 = vmax.f32 %v1593, 0.0
  %v1643 = vmax.f32 %v1594, 0.0
  %v1644 = vmax.f32 %v1595, 0.0
  %v1645 = vmax.f32 %v1596, 0.0
  %v1646 = vmax.f32 %v1597, 0.0
  %v1647 = vmax.f32 %v1598, 0.0
  %v1648 = vmax.f32 %v1599, 0.0
  %v1649 = vmax.f32 %v1600, 0.0
  %v1650 = vmax.f32 %v1601, 0.0
  %v1651 = vmax.f32 %v1602, 0.0
  %v1652 = vmax.f32 %v1603, 0.0
  %v1653 = vmax.f32 %v1604, 0.0
  %v1654 = vmax.f32 %v1605, 0.0
  %v1655 = vmax.f32 %v1606, 0.0
  %v1656 = vmax.f32 %v1607, 0.0
  %v1657 = vmax.f32 %v1608, 0.0
  %v1658 = vpack.c.bf16 %v1610, %v1609
  %v1659 = vpack.c.bf16 %v1612, %v1611
  %v1660 = vpack.c.bf16 %v1614, %v1613
  %v1661 = vpack.c.bf16 %v1616, %v1615
  %v1662 = vpack.c.bf16 %v1618, %v1617
  %v1663 = vpack.c.bf16 %v1620, %v1619
  %v1664 = vpack.c.bf16 %v1622, %v1621
  %v1665 = vpack.c.bf16 %v1624, %v1623
  %v1666 = vpack.c.bf16 %v1626, %v1625
  %v1667 = vpack.c.bf16 %v1628, %v1627
  %v1668 = vpack.c.bf16 %v1630, %v1629
  %v1669 = vpack.c.bf16 %v1632, %v1631
  %v1670 = vpack.c.bf16 %v1634, %v1633
  %v1671 = vpack.c.bf16 %v1636, %v1635
  %v1672 = vpack.c.bf16 %v1638, %v1637
  %v1673 = vpack.c.bf16 %v1640, %v1639
  %v1674 = vpack.c.bf16 %v1642, %v1641
  %v1675 = vpack.c.bf16 %v1644, %v1643
  %v1676 = vpack.c.bf16 %v1646, %v1645
  %v1677 = vpack.c.bf16 %v1648, %v1647
  %v1678 = vpack.c.bf16 %v1650, %v1649
  %v1679 = vpack.c.bf16 %v1652, %v1651
  %v1680 = vpack.c.bf16 %v1654, %v1653
  %v1681 = vpack.c.bf16 %v1656, %v1655
  %v1682 = vpack.c.bf16 %v1657, %v1657
  %v1708 = vunpack.c.l.b16 %v1658
  %v1709 = vunpack.c.h.b16 %v1658
  %v1710 = vunpack.c.l.b16 %v1659
  %v1711 = vunpack.c.h.b16 %v1659
  %v1712 = vunpack.c.l.b16 %v1660
  %v1713 = vunpack.c.h.b16 %v1660
  %v1714 = vunpack.c.l.b16 %v1661
  %v1715 = vunpack.c.h.b16 %v1661
  %v1716 = vunpack.c.l.b16 %v1662
  %v1717 = vunpack.c.h.b16 %v1662
  %v1718 = vunpack.c.l.b16 %v1663
  %v1719 = vunpack.c.h.b16 %v1663
  %v1720 = vunpack.c.l.b16 %v1664
  %v1721 = vunpack.c.h.b16 %v1664
  %v1722 = vunpack.c.l.b16 %v1665
  %v1723 = vunpack.c.h.b16 %v1665
  %v1724 = vunpack.c.l.b16 %v1666
  %v1725 = vunpack.c.h.b16 %v1666
  %v1726 = vunpack.c.l.b16 %v1667
  %v1727 = vunpack.c.h.b16 %v1667
  %v1728 = vunpack.c.l.b16 %v1668
  %v1729 = vunpack.c.h.b16 %v1668
  %v1730 = vunpack.c.l.b16 %v1669
  %v1731 = vunpack.c.h.b16 %v1669
  %v1732 = vunpack.c.l.b16 %v1670
  %v1733 = vunpack.c.h.b16 %v1670
  %v1734 = vunpack.c.l.b16 %v1671
  %v1735 = vunpack.c.h.b16 %v1671
  %v1736 = vunpack.c.l.b16 %v1672
  %v1737 = vunpack.c.h.b16 %v1672
  %v1738 = vunpack.c.l.b16 %v1673
  %v1739 = vunpack.c.h.b16 %v1673
  %v1740 = vunpack.c.l.b16 %v1674
  %v1741 = vunpack.c.h.b16 %v1674
  %v1742 = vunpack.c.l.b16 %v1675
  %v1743 = vunpack.c.h.b16 %v1675
  %v1744 = vunpack.c.l.b16 %v1676
  %v1745 = vunpack.c.h.b16 %v1676
  %v1746 = vunpack.c.l.b16 %v1677
  %v1747 = vunpack.c.h.b16 %v1677
  %v1748 = vunpack.c.l.b16 %v1678
  %v1749 = vunpack.c.h.b16 %v1678
  %v1750 = vunpack.c.l.b16 %v1679
  %v1751 = vunpack.c.h.b16 %v1679
  %v1752 = vunpack.c.l.b16 %v1680
  %v1753 = vunpack.c.h.b16 %v1680
  %v1754 = vunpack.c.l.b16 %v1681
  %v1755 = vunpack.c.h.b16 %v1681
  %v1756 = vunpack.c.l.b16 %v1682
  %v1757 = vpack.c.b16 %v1708, %v1708
  %v1758 = vpack.c.b16 %v1709, %v1709
  %v1759 = vpack.c.b16 %v1710, %v1710
  %v1760 = vpack.c.b16 %v1711, %v1711
  %v1761 = vpack.c.b16 %v1712, %v1712
  %v1762 = vpack.c.b16 %v1713, %v1713
  %v1763 = vpack.c.b16 %v1714, %v1714
  %v1764 = vpack.c.b16 %v1715, %v1715
  %v1765 = vpack.c.b16 %v1716, %v1716
  %v1766 = vpack.c.b16 %v1717, %v1717
  %v1767 = vpack.c.b16 %v1718, %v1718
  %v1768 = vpack.c.b16 %v1719, %v1719
  %v1769 = vpack.c.b16 %v1720, %v1720
  %v1770 = vpack.c.b16 %v1721, %v1721
  %v1771 = vpack.c.b16 %v1722, %v1722
  %v1772 = vpack.c.b16 %v1723, %v1723
  %v1773 = vpack.c.b16 %v1724, %v1724
  %v1774 = vpack.c.b16 %v1725, %v1725
  %v1775 = vpack.c.b16 %v1726, %v1726
  %v1776 = vpack.c.b16 %v1727, %v1727
  %v1777 = vpack.c.b16 %v1728, %v1728
  %v1778 = vpack.c.b16 %v1729, %v1729
  %v1779 = vpack.c.b16 %v1730, %v1730
  %v1780 = vpack.c.b16 %v1731, %v1731
  %v1781 = vpack.c.b16 %v1732, %v1732
  %v1782 = vpack.c.b16 %v1733, %v1733
  %v1783 = vpack.c.b16 %v1734, %v1734
  %v1784 = vpack.c.b16 %v1735, %v1735
  %v1785 = vpack.c.b16 %v1736, %v1736
  %v1786 = vpack.c.b16 %v1737, %v1737
  %v1787 = vpack.c.b16 %v1738, %v1738
  %v1788 = vpack.c.b16 %v1739, %v1739
  %v1789 = vpack.c.b16 %v1740, %v1740
  %v1790 = vpack.c.b16 %v1741, %v1741
  %v1791 = vpack.c.b16 %v1742, %v1742
  %v1792 = vpack.c.b16 %v1743, %v1743
  %v1793 = vpack.c.b16 %v1744, %v1744
  %v1794 = vpack.c.b16 %v1745, %v1745
  %v1795 = vpack.c.b16 %v1746, %v1746
  %v1796 = vpack.c.b16 %v1747, %v1747
  %v1797 = vpack.c.b16 %v1748, %v1748
  %v1798 = vpack.c.b16 %v1749, %v1749
  %v1799 = vpack.c.b16 %v1750, %v1750
  %v1800 = vpack.c.b16 %v1751, %v1751
  %v1801 = vpack.c.b16 %v1752, %v1752
  %v1802 = vpack.c.b16 %v1753, %v1753
  %v1803 = vpack.c.b16 %v1754, %v1754
  %v1804 = vpack.c.b16 %v1755, %v1755
  %v1805 = vpack.c.b16 %v1756, %v1756
  %1855 = vst [vmem:[%s4] sm:$0xf] %v1757
  %1856 = vst [vmem:[%s4 + $0x4] sm:$0xf] %v1758
  %1857 = vst [vmem:[%s4 + $0x8] sm:$0xf] %v1759
  %1858 = vst [vmem:[%s4 + $0xc] sm:$0xf] %v1760
  %1859 = vst [vmem:[%s4 + $0x10] sm:$0xf] %v1761
  %1860 = vst [vmem:[%s4 + $0x14] sm:$0xf] %v1762
  %1861 = vst [vmem:[%s4 + $0x18] sm:$0xf] %v1763
  %1862 = vst [vmem:[%s4 + $0x1c] sm:$0xf] %v1764
  %1863 = vst [vmem:[%s4 + $0x20] sm:$0xf] %v1765
  %1864 = vst [vmem:[%s4 + $0x24] sm:$0xf] %v1766
  %1865 = vst [vmem:[%s4 + $0x28] sm:$0xf] %v1767
  %1866 = vst [vmem:[%s4 + $0x2c] sm:$0xf] %v1768
  %1867 = vst [vmem:[%s4 + $0x30] sm:$0xf] %v1769
  %1868 = vst [vmem:[%s4 + $0x34] sm:$0xf] %v1770
  %1869 = vst [vmem:[%s4 + $0x38] sm:$0xf] %v1771
  %1870 = vst [vmem:[%s4 + $0x3c] sm:$0xf] %v1772
  %1871 = vst [vmem:[%s4 + $0x40] sm:$0xf] %v1773
  %1872 = vst [vmem:[%s4 + $0x44] sm:$0xf] %v1774
  %1873 = vst [vmem:[%s4 + $0x48] sm:$0xf] %v1775
  %1874 = vst [vmem:[%s4 + $0x4c] sm:$0xf] %v1776
  %1875 = vst [vmem:[%s4 + $0x50] sm:$0xf] %v1777
  %1876 = vst [vmem:[%s4 + $0x54] sm:$0xf] %v1778
  %1877 = vst [vmem:[%s4 + $0x58] sm:$0xf] %v1779
  %1878 = vst [vmem:[%s4 + $0x5c] sm:$0xf] %v1780
  %1879 = vst [vmem:[%s4 + $0x60] sm:$0xf] %v1781
  %1880 = vst [vmem:[%s4 + $0x64] sm:$0xf] %v1782
  %1881 = vst [vmem:[%s4 + $0x68] sm:$0xf] %v1783
  %1882 = vst [vmem:[%s4 + $0x6c] sm:$0xf] %v1784
  %1883 = vst [vmem:[%s4 + $0x70] sm:$0xf] %v1785
  %1884 = vst [vmem:[%s4 + $0x74] sm:$0xf] %v1786
  %1885 = vst [vmem:[%s4 + $0x78] sm:$0xf] %v1787
  %1886 = vst [vmem:[%s4 + $0x7c] sm:$0xf] %v1788
  %1887 = vst [vmem:[%s4 + $0x80] sm:$0xf] %v1789
  %1888 = vst [vmem:[%s4 + $0x84] sm:$0xf] %v1790
  %1889 = vst [vmem:[%s4 + $0x88] sm:$0xf] %v1791
  %1890 = vst [vmem:[%s4 + $0x8c] sm:$0xf] %v1792
  %1891 = vst [vmem:[%s4 + $0x90] sm:$0xf] %v1793
  %1892 = vst [vmem:[%s4 + $0x94] sm:$0xf] %v1794
  %1893 = vst [vmem:[%s4 + $0x98] sm:$0xf] %v1795
  %1894 = vst [vmem:[%s4 + $0x9c] sm:$0xf] %v1796
  %1895 = vst [vmem:[%s4 + $0xa0] sm:$0xf] %v1797
  %1896 = vst [vmem:[%s4 + $0xa4] sm:$0xf] %v1798
  %1897 = vst [vmem:[%s4 + $0xa8] sm:$0xf] %v1799
  %1898 = vst [vmem:[%s4 + $0xac] sm:$0xf] %v1800
  %1899 = vst [vmem:[%s4 + $0xb0] sm:$0xf] %v1801
  %1900 = vst [vmem:[%s4 + $0xb4] sm:$0xf] %v1802
  %1901 = vst [vmem:[%s4 + $0xb8] sm:$0xf] %v1803
  %1902 = vst [vmem:[%s4 + $0xbc] sm:$0xf] %v1804
  %1903 = vst [vmem:[%s4 + $0xc0] sm:$0xf] %v1805
  // Predicated region
  $region18: #{generator_forward.6} parent=0 // pred_check
    _
  $region19: #{generator_forward.6} parent=0 // pred_check_branch
    %1905 = sbr.rel (0) target = $region21
  $region20: #{generator_forward.6} parent=0 // pred_region
    _
  $region21: #{generator_forward.6} parent=0 // pred_fallthru
    _
  // Predicated region
  $region22: #{generator_forward.6} parent=0 // pred_check
    _
  $region23: #{generator_forward.6} parent=0 // pred_check_branch
    %1907 = sbr.rel (0) target = $region25
  $region24: #{generator_forward.6} parent=0 // pred_region
    _
  $region25: #{generator_forward.6} parent=0 // pred_fallthru
    _

// kernel: generator_forward.7
$region0: #{generator_forward.7}
  #allocation0 [shape = 'u32[]', space=smem, size = 0x4, offset = 0x4, fixed_abs, tag = 'smem constant byte address 0x4 - core index']
  #allocation1 [shape = 'u32[144,128]{1,0:T(1,128)}', space=vmem, size = 0x12000, scoped, tag = 'internal scratch']
  %s0 = inlined_call_operand.vmem [shape: bf16[56,1984], index: 0, kind: input, shape index: {}]
  %s1 = inlined_call_operand.vmem [shape: bf16[1984,128], index: 1, kind: input, shape index: {}]
  %s2 = inlined_call_operand.hbm [shape: f32[56,128], index: 2, kind: output, shape index: {}]
  %s3 = sld [smem:[#allocation0]]
  $region18: #{generator_forward.7} parent=0
    _
  %s5 = ssub.s32 1, %s3
  %s6 = scalar_select 0, %s5, %s3
  $region1: #{generator_forward.7} parent=0
    #allocation2 [shape = 'u8[28672]{0}', space=vmem, size = 0x7000, scoped, tag = 'output window, operand 0, single buffered']
    #allocation3 [shape = 's32[1]{0}', space=sflag, size = 0x4, scoped, tag = 'scoped memory for generator_forward.7']
    %7 = vsyncpa [#allocation3], 0
    // Predicated region
    $region2: #{generator_forward.7} parent=1 // pred_check
      _
    $region3: #{generator_forward.7} parent=1 // pred_check_branch
      %9 = sbr.rel (0) target = $region5
    $region4: #{generator_forward.7} parent=1 // pred_region
      _
    $region5: #{generator_forward.7} parent=1 // pred_fallthru
      _
    // Predicated region
    $region6: #{generator_forward.7} parent=1 // pred_check
      _
    $region7: #{generator_forward.7} parent=1 // pred_check_branch
      %11 = sbr.rel (0) target = $region9
    $region8: #{generator_forward.7} parent=1 // pred_region
      _
    $region9: #{generator_forward.7} parent=1 // pred_fallthru
      _
    %v13 = vld [vmem:[%s0] sm:$0xff]
    %v14 = vld [vmem:[%s0 + $0x8] sm:$0xff]
    %v15 = vld [vmem:[%s0 + $0x10] sm:$0xff]
    %v16 = vld [vmem:[%s0 + $0x18] sm:$0xff]
    %v17 = vld [vmem:[%s0 + $0x20] sm:$0xff]
    %v18 = vld [vmem:[%s0 + $0x28] sm:$0xff]
    %v19 = vld [vmem:[%s0 + $0x30] sm:$0xff]
    %v20 = vld [vmem:[%s0 + $0x38] sm:$0xff]
    %v21 = vld [vmem:[%s0 + $0x40] sm:$0xff]
    %v22 = vld [vmem:[%s0 + $0x48] sm:$0xff]
    %v23 = vld [vmem:[%s0 + $0x50] sm:$0xff]
    %v24 = vld [vmem:[%s0 + $0x58] sm:$0xff]
    %v25 = vld [vmem:[%s0 + $0x60] sm:$0xff]
    %v26 = vld [vmem:[%s0 + $0x68] sm:$0xff]
    %v27 = vld [vmem:[%s0 + $0x70] sm:$0xff]
    %v28 = vld [vmem:[%s0 + $0x78] sm:$0xff]
    %v29 = vld [vmem:[%s0 + $0x80] sm:$0xff]
    %v30 = vld [vmem:[%s0 + $0x88] sm:$0xff]
    %v31 = vld [vmem:[%s0 + $0x90] sm:$0xff]
    %v32 = vld [vmem:[%s0 + $0x98] sm:$0xff]
    %v33 = vld [vmem:[%s0 + $0xa0] sm:$0xff]
    %v34 = vld [vmem:[%s0 + $0xa8] sm:$0xff]
    %v35 = vld [vmem:[%s0 + $0xb0] sm:$0xff]
    %v36 = vld [vmem:[%s0 + $0xb8] sm:$0xff]
    %v37 = vld [vmem:[%s0 + $0xc0] sm:$0xff]
    %v38 = vld [vmem:[%s0 + $0xc8] sm:$0xff]
    %v39 = vld [vmem:[%s0 + $0xd0] sm:$0xff]
    %v40 = vld [vmem:[%s0 + $0xd8] sm:$0xff]
    %v41 = vld [vmem:[%s0 + $0xe0] sm:$0xff]
    %v42 = vld [vmem:[%s0 + $0xe8] sm:$0xff]
    %v43 = vld [vmem:[%s0 + $0xf0] sm:$0xff]
    %v44 = vld [vmem:[%s0 + $0xf8] sm:$0xff]
    %v45 = vld [vmem:[%s0 + $0x100] sm:$0xff]
    %v46 = vld [vmem:[%s0 + $0x108] sm:$0xff]
    %v47 = vld [vmem:[%s0 + $0x110] sm:$0xff]
    %v48 = vld [vmem:[%s0 + $0x118] sm:$0xff]
    %v49 = vld [vmem:[%s0 + $0x120] sm:$0xff]
    %v50 = vld [vmem:[%s0 + $0x128] sm:$0xff]
    %v51 = vld [vmem:[%s0 + $0x130] sm:$0xff]
    %v52 = vld [vmem:[%s0 + $0x138] sm:$0xff]
    %v53 = vld [vmem:[%s0 + $0x140] sm:$0xff]
    %v54 = vld [vmem:[%s0 + $0x148] sm:$0xff]
    %v55 = vld [vmem:[%s0 + $0x150] sm:$0xff]
    %v56 = vld [vmem:[%s0 + $0x158] sm:$0xff]
    %v57 = vld [vmem:[%s0 + $0x160] sm:$0xff]
    %v58 = vld [vmem:[%s0 + $0x168] sm:$0xff]
    %v59 = vld [vmem:[%s0 + $0x170] sm:$0xff]
    %v60 = vld [vmem:[%s0 + $0x178] sm:$0xff]
    %v61 = vld [vmem:[%s0 + $0x180] sm:$0xff]
    %v62 = vld [vmem:[%s0 + $0x188] sm:$0xff]
    %v63 = vld [vmem:[%s0 + $0x190] sm:$0xff]
    %v64 = vld [vmem:[%s0 + $0x198] sm:$0xff]
    %v65 = vld [vmem:[%s0 + $0x1a0] sm:$0xff]
    %v66 = vld [vmem:[%s0 + $0x1a8] sm:$0xff]
    %v67 = vld [vmem:[%s0 + $0x1b0] sm:$0xff]
    %v68 = vld [vmem:[%s0 + $0x1b8] sm:$0xff]
    %v69 = vld [vmem:[%s1] sm:$0xf]
    %v70 = vld [vmem:[%s1 + $0x4] sm:$0xf]
    %v71 = vld [vmem:[%s1 + $0x8] sm:$0xf]
    %v72 = vld [vmem:[%s1 + $0xc] sm:$0xf]
    %v73 = vld [vmem:[%s1 + $0x10] sm:$0xf]
    %v74 = vld [vmem:[%s1 + $0x14] sm:$0xf]
    %v75 = vld [vmem:[%s1 + $0x18] sm:$0xf]
    %v76 = vld [vmem:[%s1 + $0x1c] sm:$0xf]
    %v77 = vld [vmem:[%s1 + $0x20] sm:$0xf]
    %v78 = vld [vmem:[%s1 + $0x24] sm:$0xf]
    %v79 = vld [vmem:[%s1 + $0x28] sm:$0xf]
    %v80 = vld [vmem:[%s1 + $0x2c] sm:$0xf]
    %v81 = vld [vmem:[%s1 + $0x30] sm:$0xf]
    %v82 = vld [vmem:[%s1 + $0x34] sm:$0xf]
    %v83 = vld [vmem:[%s1 + $0x38] sm:$0xf]
    %v84 = vld [vmem:[%s1 + $0x3c] sm:$0xf]
    %v85 = vld [vmem:[%s1 + $0x40] sm:$0xf]
    %v86 = vld [vmem:[%s1 + $0x44] sm:$0xf]
    %v87 = vld [vmem:[%s1 + $0x48] sm:$0xf]
    %v88 = vld [vmem:[%s1 + $0x4c] sm:$0xf]
    %v89 = vld [vmem:[%s1 + $0x50] sm:$0xf]
    %v90 = vld [vmem:[%s1 + $0x54] sm:$0xf]
    %v91 = vld [vmem:[%s1 + $0x58] sm:$0xf]
    %v92 = vld [vmem:[%s1 + $0x5c] sm:$0xf]
    %v93 = vld [vmem:[%s1 + $0x60] sm:$0xf]
    %v94 = vld [vmem:[%s1 + $0x64] sm:$0xf]
    %v95 = vld [vmem:[%s1 + $0x68] sm:$0xf]
    %v96 = vld [vmem:[%s1 + $0x6c] sm:$0xf]
    %v97 = vld [vmem:[%s1 + $0x70] sm:$0xf]
    %v98 = vld [vmem:[%s1 + $0x74] sm:$0xf]
    %v99 = vld [vmem:[%s1 + $0x78] sm:$0xf]
    %v100 = vld [vmem:[%s1 + $0x7c] sm:$0xf]
    %v101 = vld [vmem:[%s1 + $0x80] sm:$0xf]
    %v102 = vld [vmem:[%s1 + $0x84] sm:$0xf]
    %v103 = vld [vmem:[%s1 + $0x88] sm:$0xf]
    %v104 = vld [vmem:[%s1 + $0x8c] sm:$0xf]
    %v105 = vld [vmem:[%s1 + $0x90] sm:$0xf]
    %v106 = vld [vmem:[%s1 + $0x94] sm:$0xf]
    %v107 = vld [vmem:[%s1 + $0x98] sm:$0xf]
    %v108 = vld [vmem:[%s1 + $0x9c] sm:$0xf]
    %v109 = vld [vmem:[%s1 + $0xa0] sm:$0xf]
    %v110 = vld [vmem:[%s1 + $0xa4] sm:$0xf]
    %v111 = vld [vmem:[%s1 + $0xa8] sm:$0xf]
    %v112 = vld [vmem:[%s1 + $0xac] sm:$0xf]
    %v113 = vld [vmem:[%s1 + $0xb0] sm:$0xf]
    %v114 = vld [vmem:[%s1 + $0xb4] sm:$0xf]
    %v115 = vld [vmem:[%s1 + $0xb8] sm:$0xf]
    %v116 = vld [vmem:[%s1 + $0xbc] sm:$0xf]
    %v117 = vld [vmem:[%s1 + $0xc0] sm:$0xf]
    %v118 = vld [vmem:[%s1 + $0xc4] sm:$0xf]
    %v119 = vld [vmem:[%s1 + $0xc8] sm:$0xf]
    %v120 = vld [vmem:[%s1 + $0xcc] sm:$0xf]
    %v121 = vld [vmem:[%s1 + $0xd0] sm:$0xf]
    %v122 = vld [vmem:[%s1 + $0xd4] sm:$0xf]
    %v123 = vld [vmem:[%s1 + $0xd8] sm:$0xf]
    %v124 = vld [vmem:[%s1 + $0xdc] sm:$0xf]
    %v125 = vld [vmem:[%s1 + $0xe0] sm:$0xf]
    %v126 = vld [vmem:[%s1 + $0xe4] sm:$0xf]
    %v127 = vld [vmem:[%s1 + $0xe8] sm:$0xf]
    %v128 = vld [vmem:[%s1 + $0xec] sm:$0xf]
    %v129 = vld [vmem:[%s1 + $0xf0] sm:$0xf]
    %v130 = vld [vmem:[%s1 + $0xf4] sm:$0xf]
    %v131 = vld [vmem:[%s1 + $0xf8] sm:$0xf]
    %v132 = vld [vmem:[%s1 + $0xfc] sm:$0xf]
    %v133 = vld [vmem:[%s1 + $0x100] sm:$0xf]
    %v134 = vld [vmem:[%s1 + $0x104] sm:$0xf]
    %v135 = vld [vmem:[%s1 + $0x108] sm:$0xf]
    %v136 = vld [vmem:[%s1 + $0x10c] sm:$0xf]
    %v137 = vld [vmem:[%s1 + $0x110] sm:$0xf]
    %v138 = vld [vmem:[%s1 + $0x114] sm:$0xf]
    %v139 = vld [vmem:[%s1 + $0x118] sm:$0xf]
    %v140 = vld [vmem:[%s1 + $0x11c] sm:$0xf]
    %v141 = vld [vmem:[%s1 + $0x120] sm:$0xf]
    %v142 = vld [vmem:[%s1 + $0x124] sm:$0xf]
    %v143 = vld [vmem:[%s1 + $0x128] sm:$0xf]
    %v144 = vld [vmem:[%s1 + $0x12c] sm:$0xf]
    %v145 = vld [vmem:[%s1 + $0x130] sm:$0xf]
    %v146 = vld [vmem:[%s1 + $0x134] sm:$0xf]
    %v147 = vld [vmem:[%s1 + $0x138] sm:$0xf]
    %v148 = vld [vmem:[%s1 + $0x13c] sm:$0xf]
    %v149 = vld [vmem:[%s1 + $0x140] sm:$0xf]
    %v150 = vld [vmem:[%s1 + $0x144] sm:$0xf]
    %v151 = vld [vmem:[%s1 + $0x148] sm:$0xf]
    %v152 = vld [vmem:[%s1 + $0x14c] sm:$0xf]
    %v153 = vld [vmem:[%s1 + $0x150] sm:$0xf]
    %v154 = vld [vmem:[%s1 + $0x154] sm:$0xf]
    %v155 = vld [vmem:[%s1 + $0x158] sm:$0xf]
    %v156 = vld [vmem:[%s1 + $0x15c] sm:$0xf]
    %v157 = vld [vmem:[%s1 + $0x160] sm:$0xf]
    %v158 = vld [vmem:[%s1 + $0x164] sm:$0xf]
    %v159 = vld [vmem:[%s1 + $0x168] sm:$0xf]
    %v160 = vld [vmem:[%s1 + $0x16c] sm:$0xf]
    %v161 = vld [vmem:[%s1 + $0x170] sm:$0xf]
    %v162 = vld [vmem:[%s1 + $0x174] sm:$0xf]
    %v163 = vld [vmem:[%s1 + $0x178] sm:$0xf]
    %v164 = vld [vmem:[%s1 + $0x17c] sm:$0xf]
    %v165 = vld [vmem:[%s1 + $0x180] sm:$0xf]
    %v166 = vld [vmem:[%s1 + $0x184] sm:$0xf]
    %v167 = vld [vmem:[%s1 + $0x188] sm:$0xf]
    %v168 = vld [vmem:[%s1 + $0x18c] sm:$0xf]
    %v169 = vld [vmem:[%s1 + $0x190] sm:$0xf]
    %v170 = vld [vmem:[%s1 + $0x194] sm:$0xf]
    %v171 = vld [vmem:[%s1 + $0x198] sm:$0xf]
    %v172 = vld [vmem:[%s1 + $0x19c] sm:$0xf]
    %v173 = vld [vmem:[%s1 + $0x1a0] sm:$0xf]
    %v174 = vld [vmem:[%s1 + $0x1a4] sm:$0xf]
    %v175 = vld [vmem:[%s1 + $0x1a8] sm:$0xf]
    %v176 = vld [vmem:[%s1 + $0x1ac] sm:$0xf]
    %v177 = vld [vmem:[%s1 + $0x1b0] sm:$0xf]
    %v178 = vld [vmem:[%s1 + $0x1b4] sm:$0xf]
    %v179 = vld [vmem:[%s1 + $0x1b8] sm:$0xf]
    %v180 = vld [vmem:[%s1 + $0x1bc] sm:$0xf]
    %v181 = vld [vmem:[%s1 + $0x1c0] sm:$0xf]
    %v182 = vld [vmem:[%s1 + $0x1c4] sm:$0xf]
    %v183 = vld [vmem:[%s1 + $0x1c8] sm:$0xf]
    %v184 = vld [vmem:[%s1 + $0x1cc] sm:$0xf]
    %v185 = vld [vmem:[%s1 + $0x1d0] sm:$0xf]
    %v186 = vld [vmem:[%s1 + $0x1d4] sm:$0xf]
    %v187 = vld [vmem:[%s1 + $0x1d8] sm:$0xf]
    %v188 = vld [vmem:[%s1 + $0x1dc] sm:$0xf]
    %v189 = vld [vmem:[%s1 + $0x1e0] sm:$0xf]
    %v190 = vld [vmem:[%s1 + $0x1e4] sm:$0xf]
    %v191 = vld [vmem:[%s1 + $0x1e8] sm:$0xf]
    %v192 = vld [vmem:[%s1 + $0x1ec] sm:$0xf]
    %v193 = vld [vmem:[%s1 + $0x1f0] sm:$0xf]
    %v194 = vld [vmem:[%s1 + $0x1f4] sm:$0xf]
    %v195 = vld [vmem:[%s1 + $0x1f8] sm:$0xf]
    %v196 = vld [vmem:[%s1 + $0x1fc] sm:$0xf]
    %v197 = vld [vmem:[%s1 + $0x200] sm:$0xf]
    %v198 = vld [vmem:[%s1 + $0x204] sm:$0xf]
    %v199 = vld [vmem:[%s1 + $0x208] sm:$0xf]
    %v200 = vld [vmem:[%s1 + $0x20c] sm:$0xf]
    %v201 = vld [vmem:[%s1 + $0x210] sm:$0xf]
    %v202 = vld [vmem:[%s1 + $0x214] sm:$0xf]
    %v203 = vld [vmem:[%s1 + $0x218] sm:$0xf]
    %v204 = vld [vmem:[%s1 + $0x21c] sm:$0xf]
    %v205 = vld [vmem:[%s1 + $0x220] sm:$0xf]
    %v206 = vld [vmem:[%s1 + $0x224] sm:$0xf]
    %v207 = vld [vmem:[%s1 + $0x228] sm:$0xf]
    %v208 = vld [vmem:[%s1 + $0x22c] sm:$0xf]
    %v209 = vld [vmem:[%s1 + $0x230] sm:$0xf]
    %v210 = vld [vmem:[%s1 + $0x234] sm:$0xf]
    %v211 = vld [vmem:[%s1 + $0x238] sm:$0xf]
    %v212 = vld [vmem:[%s1 + $0x23c] sm:$0xf]
    %v213 = vld [vmem:[%s1 + $0x240] sm:$0xf]
    %v214 = vld [vmem:[%s1 + $0x244] sm:$0xf]
    %v215 = vld [vmem:[%s1 + $0x248] sm:$0xf]
    %v216 = vld [vmem:[%s1 + $0x24c] sm:$0xf]
    %v217 = vld [vmem:[%s1 + $0x250] sm:$0xf]
    %v218 = vld [vmem:[%s1 + $0x254] sm:$0xf]
    %v219 = vld [vmem:[%s1 + $0x258] sm:$0xf]
    %v220 = vld [vmem:[%s1 + $0x25c] sm:$0xf]
    %v221 = vld [vmem:[%s1 + $0x260] sm:$0xf]
    %v222 = vld [vmem:[%s1 + $0x264] sm:$0xf]
    %v223 = vld [vmem:[%s1 + $0x268] sm:$0xf]
    %v224 = vld [vmem:[%s1 + $0x26c] sm:$0xf]
    %v225 = vld [vmem:[%s1 + $0x270] sm:$0xf]
    %v226 = vld [vmem:[%s1 + $0x274] sm:$0xf]
    %v227 = vld [vmem:[%s1 + $0x278] sm:$0xf]
    %v228 = vld [vmem:[%s1 + $0x27c] sm:$0xf]
    %v229 = vld [vmem:[%s1 + $0x280] sm:$0xf]
    %v230 = vld [vmem:[%s1 + $0x284] sm:$0xf]
    %v231 = vld [vmem:[%s1 + $0x288] sm:$0xf]
    %v232 = vld [vmem:[%s1 + $0x28c] sm:$0xf]
    %v233 = vld [vmem:[%s1 + $0x290] sm:$0xf]
    %v234 = vld [vmem:[%s1 + $0x294] sm:$0xf]
    %v235 = vld [vmem:[%s1 + $0x298] sm:$0xf]
    %v236 = vld [vmem:[%s1 + $0x29c] sm:$0xf]
    %v237 = vld [vmem:[%s1 + $0x2a0] sm:$0xf]
    %v238 = vld [vmem:[%s1 + $0x2a4] sm:$0xf]
    %v239 = vld [vmem:[%s1 + $0x2a8] sm:$0xf]
    %v240 = vld [vmem:[%s1 + $0x2ac] sm:$0xf]
    %v241 = vld [vmem:[%s1 + $0x2b0] sm:$0xf]
    %v242 = vld [vmem:[%s1 + $0x2b4] sm:$0xf]
    %v243 = vld [vmem:[%s1 + $0x2b8] sm:$0xf]
    %v244 = vld [vmem:[%s1 + $0x2bc] sm:$0xf]
    %v245 = vld [vmem:[%s1 + $0x2c0] sm:$0xf]
    %v246 = vld [vmem:[%s1 + $0x2c4] sm:$0xf]
    %v247 = vld [vmem:[%s1 + $0x2c8] sm:$0xf]
    %v248 = vld [vmem:[%s1 + $0x2cc] sm:$0xf]
    %v249 = vld [vmem:[%s1 + $0x2d0] sm:$0xf]
    %v250 = vld [vmem:[%s1 + $0x2d4] sm:$0xf]
    %v251 = vld [vmem:[%s1 + $0x2d8] sm:$0xf]
    %v252 = vld [vmem:[%s1 + $0x2dc] sm:$0xf]
    %v253 = vld [vmem:[%s1 + $0x2e0] sm:$0xf]
    %v254 = vld [vmem:[%s1 + $0x2e4] sm:$0xf]
    %v255 = vld [vmem:[%s1 + $0x2e8] sm:$0xf]
    %v256 = vld [vmem:[%s1 + $0x2ec] sm:$0xf]
    %v257 = vld [vmem:[%s1 + $0x2f0] sm:$0xf]
    %v258 = vld [vmem:[%s1 + $0x2f4] sm:$0xf]
    %v259 = vld [vmem:[%s1 + $0x2f8] sm:$0xf]
    %v260 = vld [vmem:[%s1 + $0x2fc] sm:$0xf]
    %v261 = vld [vmem:[%s1 + $0x300] sm:$0xf]
    %v262 = vld [vmem:[%s1 + $0x304] sm:$0xf]
    %v263 = vld [vmem:[%s1 + $0x308] sm:$0xf]
    %v264 = vld [vmem:[%s1 + $0x30c] sm:$0xf]
    %v265 = vld [vmem:[%s1 + $0x310] sm:$0xf]
    %v266 = vld [vmem:[%s1 + $0x314] sm:$0xf]
    %v267 = vld [vmem:[%s1 + $0x318] sm:$0xf]
    %v268 = vld [vmem:[%s1 + $0x31c] sm:$0xf]
    %v269 = vld [vmem:[%s1 + $0x320] sm:$0xf]
    %v270 = vld [vmem:[%s1 + $0x324] sm:$0xf]
    %v271 = vld [vmem:[%s1 + $0x328] sm:$0xf]
    %v272 = vld [vmem:[%s1 + $0x32c] sm:$0xf]
    %v273 = vld [vmem:[%s1 + $0x330] sm:$0xf]
    %v274 = vld [vmem:[%s1 + $0x334] sm:$0xf]
    %v275 = vld [vmem:[%s1 + $0x338] sm:$0xf]
    %v276 = vld [vmem:[%s1 + $0x33c] sm:$0xf]
    %v277 = vld [vmem:[%s1 + $0x340] sm:$0xf]
    %v278 = vld [vmem:[%s1 + $0x344] sm:$0xf]
    %v279 = vld [vmem:[%s1 + $0x348] sm:$0xf]
    %v280 = vld [vmem:[%s1 + $0x34c] sm:$0xf]
    %v281 = vld [vmem:[%s1 + $0x350] sm:$0xf]
    %v282 = vld [vmem:[%s1 + $0x354] sm:$0xf]
    %v283 = vld [vmem:[%s1 + $0x358] sm:$0xf]
    %v284 = vld [vmem:[%s1 + $0x35c] sm:$0xf]
    %v285 = vld [vmem:[%s1 + $0x360] sm:$0xf]
    %v286 = vld [vmem:[%s1 + $0x364] sm:$0xf]
    %v287 = vld [vmem:[%s1 + $0x368] sm:$0xf]
    %v288 = vld [vmem:[%s1 + $0x36c] sm:$0xf]
    %v289 = vld [vmem:[%s1 + $0x370] sm:$0xf]
    %v290 = vld [vmem:[%s1 + $0x374] sm:$0xf]
    %v291 = vld [vmem:[%s1 + $0x378] sm:$0xf]
    %v292 = vld [vmem:[%s1 + $0x37c] sm:$0xf]
    %v293 = vld [vmem:[%s1 + $0x380] sm:$0xf]
    %v294 = vld [vmem:[%s1 + $0x384] sm:$0xf]
    %v295 = vld [vmem:[%s1 + $0x388] sm:$0xf]
    %v296 = vld [vmem:[%s1 + $0x38c] sm:$0xf]
    %v297 = vld [vmem:[%s1 + $0x390] sm:$0xf]
    %v298 = vld [vmem:[%s1 + $0x394] sm:$0xf]
    %v299 = vld [vmem:[%s1 + $0x398] sm:$0xf]
    %v300 = vld [vmem:[%s1 + $0x39c] sm:$0xf]
    %v301 = vld [vmem:[%s1 + $0x3a0] sm:$0xf]
    %v302 = vld [vmem:[%s1 + $0x3a4] sm:$0xf]
    %v303 = vld [vmem:[%s1 + $0x3a8] sm:$0xf]
    %v304 = vld [vmem:[%s1 + $0x3ac] sm:$0xf]
    %v305 = vld [vmem:[%s1 + $0x3b0] sm:$0xf]
    %v306 = vld [vmem:[%s1 + $0x3b4] sm:$0xf]
    %v307 = vld [vmem:[%s1 + $0x3b8] sm:$0xf]
    %v308 = vld [vmem:[%s1 + $0x3bc] sm:$0xf]
    %v309 = vld [vmem:[%s1 + $0x3c0] sm:$0xf]
    %v310 = vld [vmem:[%s1 + $0x3c4] sm:$0xf]
    %v311 = vld [vmem:[%s1 + $0x3c8] sm:$0xf]
    %v312 = vld [vmem:[%s1 + $0x3cc] sm:$0xf]
    %v313 = vld [vmem:[%s1 + $0x3d0] sm:$0xf]
    %v314 = vld [vmem:[%s1 + $0x3d4] sm:$0xf]
    %v315 = vld [vmem:[%s1 + $0x3d8] sm:$0xf]
    %v316 = vld [vmem:[%s1 + $0x3dc] sm:$0xf]
    %v373 = vunpack.c.l.b16 %v13
    %v374 = vunpack.c.h.b16 %v13
    %v375 = vunpack.c.l.b16 %v14
    %v376 = vunpack.c.h.b16 %v14
    %v377 = vunpack.c.l.b16 %v15
    %v378 = vunpack.c.h.b16 %v15
    %v379 = vunpack.c.l.b16 %v16
    %v380 = vunpack.c.h.b16 %v16
    %v381 = vunpack.c.l.b16 %v17
    %v382 = vunpack.c.h.b16 %v17
    %v383 = vunpack.c.l.b16 %v18
    %v384 = vunpack.c.h.b16 %v18
    %v385 = vunpack.c.l.b16 %v19
    %v386 = vunpack.c.h.b16 %v19
    %v387 = vunpack.c.l.b16 %v20
    %v388 = vunpack.c.h.b16 %v20
    %v389 = vunpack.c.l.b16 %v21
    %v390 = vunpack.c.h.b16 %v21
    %v391 = vunpack.c.l.b16 %v22
    %v392 = vunpack.c.h.b16 %v22
    %v393 = vunpack.c.l.b16 %v23
    %v394 = vunpack.c.h.b16 %v23
    %v395 = vunpack.c.l.b16 %v24
    %v396 = vunpack.c.h.b16 %v24
    %v397 = vunpack.c.l.b16 %v25
    %v398 = vunpack.c.h.b16 %v25
    %v399 = vunpack.c.l.b16 %v26
    %v400 = vunpack.c.h.b16 %v26
    %v401 = vunpack.c.l.b16 %v27
    %v402 = vunpack.c.h.b16 %v27
    %v403 = vunpack.c.l.b16 %v28
    %v404 = vunpack.c.h.b16 %v28
    %v405 = vunpack.c.l.b16 %v29
    %v406 = vunpack.c.h.b16 %v29
    %v407 = vunpack.c.l.b16 %v30
    %v408 = vunpack.c.h.b16 %v30
    %v409 = vunpack.c.l.b16 %v31
    %v410 = vunpack.c.h.b16 %v31
    %v411 = vunpack.c.l.b16 %v32
    %v412 = vunpack.c.h.b16 %v32
    %v413 = vunpack.c.l.b16 %v33
    %v414 = vunpack.c.h.b16 %v33
    %v415 = vunpack.c.l.b16 %v34
    %v416 = vunpack.c.h.b16 %v34
    %v417 = vunpack.c.l.b16 %v35
    %v418 = vunpack.c.h.b16 %v35
    %v419 = vunpack.c.l.b16 %v36
    %v420 = vunpack.c.h.b16 %v36
    %v421 = vunpack.c.l.b16 %v37
    %v422 = vunpack.c.h.b16 %v37
    %v423 = vunpack.c.l.b16 %v38
    %v424 = vunpack.c.h.b16 %v38
    %v425 = vunpack.c.l.b16 %v39
    %v426 = vunpack.c.h.b16 %v39
    %v427 = vunpack.c.l.b16 %v40
    %v428 = vunpack.c.h.b16 %v40
    %v429 = vunpack.c.l.b16 %v41
    %v430 = vunpack.c.h.b16 %v41
    %v431 = vunpack.c.l.b16 %v42
    %v432 = vunpack.c.h.b16 %v42
    %v433 = vunpack.c.l.b16 %v43
    %v434 = vunpack.c.h.b16 %v43
    %v435 = vunpack.c.l.b16 %v44
    %v436 = vunpack.c.h.b16 %v44
    %v437 = vunpack.c.l.b16 %v45
    %v438 = vunpack.c.h.b16 %v45
    %v439 = vunpack.c.l.b16 %v46
    %v440 = vunpack.c.h.b16 %v46
    %v441 = vunpack.c.l.b16 %v47
    %v442 = vunpack.c.h.b16 %v47
    %v443 = vunpack.c.l.b16 %v48
    %v444 = vunpack.c.h.b16 %v48
    %v445 = vunpack.c.l.b16 %v49
    %v446 = vunpack.c.h.b16 %v49
    %v447 = vunpack.c.l.b16 %v50
    %v448 = vunpack.c.h.b16 %v50
    %v449 = vunpack.c.l.b16 %v51
    %v450 = vunpack.c.h.b16 %v51
    %v451 = vunpack.c.l.b16 %v52
    %v452 = vunpack.c.h.b16 %v52
    %v453 = vunpack.c.l.b16 %v53
    %v454 = vunpack.c.h.b16 %v53
    %v455 = vunpack.c.l.b16 %v54
    %v456 = vunpack.c.h.b16 %v54
    %v457 = vunpack.c.l.b16 %v55
    %v458 = vunpack.c.h.b16 %v55
    %v459 = vunpack.c.l.b16 %v56
    %v460 = vunpack.c.h.b16 %v56
    %v461 = vunpack.c.l.b16 %v57
    %v462 = vunpack.c.h.b16 %v57
    %v463 = vunpack.c.l.b16 %v58
    %v464 = vunpack.c.h.b16 %v58
    %v465 = vunpack.c.l.b16 %v59
    %v466 = vunpack.c.h.b16 %v59
    %v467 = vunpack.c.l.b16 %v60
    %v468 = vunpack.c.h.b16 %v60
    %v469 = vunpack.c.l.b16 %v61
    %v470 = vunpack.c.h.b16 %v61
    %v471 = vunpack.c.l.b16 %v62
    %v472 = vunpack.c.h.b16 %v62
    %v473 = vunpack.c.l.b16 %v63
    %v474 = vunpack.c.h.b16 %v63
    %v475 = vunpack.c.l.b16 %v64
    %v476 = vunpack.c.h.b16 %v64
    %v477 = vunpack.c.l.b16 %v65
    %v478 = vunpack.c.h.b16 %v65
    %v479 = vunpack.c.l.b16 %v66
    %v480 = vunpack.c.h.b16 %v66
    %v481 = vunpack.c.l.b16 %v67
    %v482 = vunpack.c.h.b16 %v67
    %v483 = vunpack.c.l.b16 %v68
    %v484 = vunpack.c.h.b16 %v68
    %v485 = vpack.c.b16 %v389, %v373
    %v486 = vpack.c.b16 %v390, %v374
    %v487 = vpack.c.b16 %v391, %v375
    %v488 = vpack.c.b16 %v392, %v376
    %v489 = vpack.c.b16 %v393, %v377
    %v490 = vpack.c.b16 %v394, %v378
    %v491 = vpack.c.b16 %v395, %v379
    %v492 = vpack.c.b16 %v396, %v380
    %v493 = vpack.c.b16 %v397, %v381
    %v494 = vpack.c.b16 %v398, %v382
    %v495 = vpack.c.b16 %v399, %v383
    %v496 = vpack.c.b16 %v400, %v384
    %v497 = vpack.c.b16 %v401, %v385
    %v498 = vpack.c.b16 %v402, %v386
    %v499 = vpack.c.b16 %v403, %v387
    %v500 = vpack.c.b16 %v404, %v388
    %v501 = vpack.c.b16 %v421, %v405
    %v502 = vpack.c.b16 %v422, %v406
    %v503 = vpack.c.b16 %v423, %v407
    %v504 = vpack.c.b16 %v424, %v408
    %v505 = vpack.c.b16 %v425, %v409
    %v506 = vpack.c.b16 %v426, %v410
    %v507 = vpack.c.b16 %v427, %v411
    %v508 = vpack.c.b16 %v428, %v412
    %v509 = vpack.c.b16 %v429, %v413
    %v510 = vpack.c.b16 %v430, %v414
    %v511 = vpack.c.b16 %v431, %v415
    %v512 = vpack.c.b16 %v432, %v416
    %v513 = vpack.c.b16 %v433, %v417
    %v514 = vpack.c.b16 %v434, %v418
    %v515 = vpack.c.b16 %v435, %v419
    %v516 = vpack.c.b16 %v436, %v420
    %v517 = vpack.c.b16 %v453, %v437
    %v518 = vpack.c.b16 %v454, %v438
    %v519 = vpack.c.b16 %v455, %v439
    %v520 = vpack.c.b16 %v456, %v440
    %v521 = vpack.c.b16 %v457, %v441
    %v522 = vpack.c.b16 %v458, %v442
    %v523 = vpack.c.b16 %v459, %v443
    %v524 = vpack.c.b16 %v460, %v444
    %v525 = vpack.c.b16 %v461, %v445
    %v526 = vpack.c.b16 %v462, %v446
    %v527 = vpack.c.b16 %v463, %v447
    %v528 = vpack.c.b16 %v464, %v448
    %v529 = vpack.c.b16 %v465, %v449
    %v530 = vpack.c.b16 %v466, %v450
    %v531 = vpack.c.b16 %v467, %v451
    %v532 = vpack.c.b16 %v468, %v452
    %v533 = vpack.c.b16 %v469, %v469
    %v534 = vpack.c.b16 %v470, %v470
    %v535 = vpack.c.b16 %v471, %v471
    %v536 = vpack.c.b16 %v472, %v472
    %v537 = vpack.c.b16 %v473, %v473
    %v538 = vpack.c.b16 %v474, %v474
    %v539 = vpack.c.b16 %v475, %v475
    %v540 = vpack.c.b16 %v476, %v476
    %v541 = vpack.c.b16 %v477, %v477
    %v542 = vpack.c.b16 %v478, %v478
    %v543 = vpack.c.b16 %v479, %v479
    %v544 = vpack.c.b16 %v480, %v480
    %v545 = vpack.c.b16 %v481, %v481
    %v546 = vpack.c.b16 %v482, %v482
    %v547 = vpack.c.b16 %v483, %v483
    %v548 = vpack.c.b16 %v484, %v484
    %v857 = vunpack.c.l.b16 %v69
    %v858 = vunpack.c.l.b16 %v70
    %v859 = vunpack.c.l.b16 %v71
    %v860 = vunpack.c.l.b16 %v72
    %v861 = vunpack.c.l.b16 %v73
    %v862 = vunpack.c.l.b16 %v74
    %v863 = vunpack.c.l.b16 %v75
    %v864 = vunpack.c.l.b16 %v76
    %v865 = vunpack.c.l.b16 %v77
    %v866 = vunpack.c.l.b16 %v78
    %v867 = vunpack.c.l.b16 %v79
    %v868 = vunpack.c.l.b16 %v80
    %v869 = vunpack.c.l.b16 %v81
    %v870 = vunpack.c.l.b16 %v82
    %v871 = vunpack.c.l.b16 %v83
    %v872 = vunpack.c.l.b16 %v84
    %v873 = vunpack.c.l.b16 %v85
    %v874 = vunpack.c.l.b16 %v86
    %v875 = vunpack.c.l.b16 %v87
    %v876 = vunpack.c.l.b16 %v88
    %v877 = vunpack.c.l.b16 %v89
    %v878 = vunpack.c.l.b16 %v90
    %v879 = vunpack.c.l.b16 %v91
    %v880 = vunpack.c.l.b16 %v92
    %v881 = vunpack.c.l.b16 %v93
    %v882 = vunpack.c.l.b16 %v94
    %v883 = vunpack.c.l.b16 %v95
    %v884 = vunpack.c.l.b16 %v96
    %v885 = vunpack.c.l.b16 %v97
    %v886 = vunpack.c.l.b16 %v98
    %v887 = vunpack.c.l.b16 %v99
    %v888 = vunpack.c.l.b16 %v100
    %v889 = vunpack.c.l.b16 %v101
    %v890 = vunpack.c.l.b16 %v102
    %v891 = vunpack.c.l.b16 %v103
    %v892 = vunpack.c.l.b16 %v104
    %v893 = vunpack.c.l.b16 %v105
    %v894 = vunpack.c.l.b16 %v106
    %v895 = vunpack.c.l.b16 %v107
    %v896 = vunpack.c.l.b16 %v108
    %v897 = vunpack.c.l.b16 %v109
    %v898 = vunpack.c.l.b16 %v110
    %v899 = vunpack.c.l.b16 %v111
    %v900 = vunpack.c.l.b16 %v112
    %v901 = vunpack.c.l.b16 %v113
    %v902 = vunpack.c.l.b16 %v114
    %v903 = vunpack.c.l.b16 %v115
    %v904 = vunpack.c.l.b16 %v116
    %v905 = vunpack.c.l.b16 %v117
    %v906 = vunpack.c.l.b16 %v118
    %v907 = vunpack.c.l.b16 %v119
    %v908 = vunpack.c.l.b16 %v120
    %v909 = vunpack.c.l.b16 %v121
    %v910 = vunpack.c.l.b16 %v122
    %v911 = vunpack.c.l.b16 %v123
    %v912 = vunpack.c.l.b16 %v124
    %v913 = vunpack.c.l.b16 %v125
    %v914 = vunpack.c.l.b16 %v126
    %v915 = vunpack.c.l.b16 %v127
    %v916 = vunpack.c.l.b16 %v128
    %v917 = vunpack.c.l.b16 %v129
    %v918 = vunpack.c.l.b16 %v130
    %v919 = vunpack.c.l.b16 %v131
    %v920 = vunpack.c.l.b16 %v132
    %v921 = vunpack.c.l.b16 %v133
    %v922 = vunpack.c.l.b16 %v134
    %v923 = vunpack.c.l.b16 %v135
    %v924 = vunpack.c.l.b16 %v136
    %v925 = vunpack.c.l.b16 %v137
    %v926 = vunpack.c.l.b16 %v138
    %v927 = vunpack.c.l.b16 %v139
    %v928 = vunpack.c.l.b16 %v140
    %v929 = vunpack.c.l.b16 %v141
    %v930 = vunpack.c.l.b16 %v142
    %v931 = vunpack.c.l.b16 %v143
    %v932 = vunpack.c.l.b16 %v144
    %v933 = vunpack.c.l.b16 %v145
    %v934 = vunpack.c.l.b16 %v146
    %v935 = vunpack.c.l.b16 %v147
    %v936 = vunpack.c.l.b16 %v148
    %v937 = vunpack.c.l.b16 %v149
    %v938 = vunpack.c.l.b16 %v150
    %v939 = vunpack.c.l.b16 %v151
    %v940 = vunpack.c.l.b16 %v152
    %v941 = vunpack.c.l.b16 %v153
    %v942 = vunpack.c.l.b16 %v154
    %v943 = vunpack.c.l.b16 %v155
    %v944 = vunpack.c.l.b16 %v156
    %v945 = vunpack.c.l.b16 %v157
    %v946 = vunpack.c.l.b16 %v158
    %v947 = vunpack.c.l.b16 %v159
    %v948 = vunpack.c.l.b16 %v160
    %v949 = vunpack.c.l.b16 %v161
    %v950 = vunpack.c.l.b16 %v162
    %v951 = vunpack.c.l.b16 %v163
    %v952 = vunpack.c.l.b16 %v164
    %v953 = vunpack.c.l.b16 %v165
    %v954 = vunpack.c.l.b16 %v166
    %v955 = vunpack.c.l.b16 %v167
    %v956 = vunpack.c.l.b16 %v168
    %v957 = vunpack.c.l.b16 %v169
    %v958 = vunpack.c.l.b16 %v170
    %v959 = vunpack.c.l.b16 %v171
    %v960 = vunpack.c.l.b16 %v172
    %v961 = vunpack.c.l.b16 %v173
    %v962 = vunpack.c.l.b16 %v174
    %v963 = vunpack.c.l.b16 %v175
    %v964 = vunpack.c.l.b16 %v176
    %v965 = vunpack.c.l.b16 %v177
    %v966 = vunpack.c.l.b16 %v178
    %v967 = vunpack.c.l.b16 %v179
    %v968 = vunpack.c.l.b16 %v180
    %v969 = vunpack.c.l.b16 %v181
    %v970 = vunpack.c.l.b16 %v182
    %v971 = vunpack.c.l.b16 %v183
    %v972 = vunpack.c.l.b16 %v184
    %v973 = vunpack.c.l.b16 %v185
    %v974 = vunpack.c.l.b16 %v186
    %v975 = vunpack.c.l.b16 %v187
    %v976 = vunpack.c.l.b16 %v188
    %v977 = vunpack.c.l.b16 %v189
    %v978 = vunpack.c.l.b16 %v190
    %v979 = vunpack.c.l.b16 %v191
    %v980 = vunpack.c.l.b16 %v192
    %v981 = vunpack.c.l.b16 %v193
    %v982 = vunpack.c.l.b16 %v194
    %v983 = vunpack.c.l.b16 %v195
    %v984 = vunpack.c.l.b16 %v196
    %v985 = vunpack.c.l.b16 %v197
    %v986 = vunpack.c.l.b16 %v198
    %v987 = vunpack.c.l.b16 %v199
    %v988 = vunpack.c.l.b16 %v200
    %v989 = vunpack.c.l.b16 %v201
    %v990 = vunpack.c.l.b16 %v202
    %v991 = vunpack.c.l.b16 %v203
    %v992 = vunpack.c.l.b16 %v204
    %v993 = vunpack.c.l.b16 %v205
    %v994 = vunpack.c.l.b16 %v206
    %v995 = vunpack.c.l.b16 %v207
    %v996 = vunpack.c.l.b16 %v208
    %v997 = vunpack.c.l.b16 %v209
    %v998 = vunpack.c.l.b16 %v210
    %v999 = vunpack.c.l.b16 %v211
    %v1000 = vunpack.c.l.b16 %v212
    %v1001 = vunpack.c.l.b16 %v213
    %v1002 = vunpack.c.l.b16 %v214
    %v1003 = vunpack.c.l.b16 %v215
    %v1004 = vunpack.c.l.b16 %v216
    %v1005 = vunpack.c.l.b16 %v217
    %v1006 = vunpack.c.l.b16 %v218
    %v1007 = vunpack.c.l.b16 %v219
    %v1008 = vunpack.c.l.b16 %v220
    %v1009 = vunpack.c.l.b16 %v221
    %v1010 = vunpack.c.l.b16 %v222
    %v1011 = vunpack.c.l.b16 %v223
    %v1012 = vunpack.c.l.b16 %v224
    %v1013 = vunpack.c.l.b16 %v225
    %v1014 = vunpack.c.l.b16 %v226
    %v1015 = vunpack.c.l.b16 %v227
    %v1016 = vunpack.c.l.b16 %v228
    %v1017 = vunpack.c.l.b16 %v229
    %v1018 = vunpack.c.l.b16 %v230
    %v1019 = vunpack.c.l.b16 %v231
    %v1020 = vunpack.c.l.b16 %v232
    %v1021 = vunpack.c.l.b16 %v233
    %v1022 = vunpack.c.l.b16 %v234
    %v1023 = vunpack.c.l.b16 %v235
    %v1024 = vunpack.c.l.b16 %v236
    %v1025 = vunpack.c.l.b16 %v237
    %v1026 = vunpack.c.l.b16 %v238
    %v1027 = vunpack.c.l.b16 %v239
    %v1028 = vunpack.c.l.b16 %v240
    %v1029 = vunpack.c.l.b16 %v241
    %v1030 = vunpack.c.l.b16 %v242
    %v1031 = vunpack.c.l.b16 %v243
    %v1032 = vunpack.c.l.b16 %v244
    %v1033 = vunpack.c.l.b16 %v245
    %v1034 = vunpack.c.l.b16 %v246
    %v1035 = vunpack.c.l.b16 %v247
    %v1036 = vunpack.c.l.b16 %v248
    %v1037 = vunpack.c.l.b16 %v249
    %v1038 = vunpack.c.l.b16 %v250
    %v1039 = vunpack.c.l.b16 %v251
    %v1040 = vunpack.c.l.b16 %v252
    %v1041 = vunpack.c.l.b16 %v253
    %v1042 = vunpack.c.l.b16 %v254
    %v1043 = vunpack.c.l.b16 %v255
    %v1044 = vunpack.c.l.b16 %v256
    %v1045 = vunpack.c.l.b16 %v257
    %v1046 = vunpack.c.l.b16 %v258
    %v1047 = vunpack.c.l.b16 %v259
    %v1048 = vunpack.c.l.b16 %v260
    %v1049 = vunpack.c.l.b16 %v261
    %v1050 = vunpack.c.l.b16 %v262
    %v1051 = vunpack.c.l.b16 %v263
    %v1052 = vunpack.c.l.b16 %v264
    %v1053 = vunpack.c.l.b16 %v265
    %v1054 = vunpack.c.l.b16 %v266
    %v1055 = vunpack.c.l.b16 %v267
    %v1056 = vunpack.c.l.b16 %v268
    %v1057 = vunpack.c.l.b16 %v269
    %v1058 = vunpack.c.l.b16 %v270
    %v1059 = vunpack.c.l.b16 %v271
    %v1060 = vunpack.c.l.b16 %v272
    %v1061 = vunpack.c.l.b16 %v273
    %v1062 = vunpack.c.l.b16 %v274
    %v1063 = vunpack.c.l.b16 %v275
    %v1064 = vunpack.c.l.b16 %v276
    %v1065 = vunpack.c.l.b16 %v277
    %v1066 = vunpack.c.l.b16 %v278
    %v1067 = vunpack.c.l.b16 %v279
    %v1068 = vunpack.c.l.b16 %v280
    %v1069 = vunpack.c.l.b16 %v281
    %v1070 = vunpack.c.l.b16 %v282
    %v1071 = vunpack.c.l.b16 %v283
    %v1072 = vunpack.c.l.b16 %v284
    %v1073 = vunpack.c.l.b16 %v285
    %v1074 = vunpack.c.l.b16 %v286
    %v1075 = vunpack.c.l.b16 %v287
    %v1076 = vunpack.c.l.b16 %v288
    %v1077 = vunpack.c.l.b16 %v289
    %v1078 = vunpack.c.l.b16 %v290
    %v1079 = vunpack.c.l.b16 %v291
    %v1080 = vunpack.c.l.b16 %v292
    %v1081 = vunpack.c.l.b16 %v293
    %v1082 = vunpack.c.l.b16 %v294
    %v1083 = vunpack.c.l.b16 %v295
    %v1084 = vunpack.c.l.b16 %v296
    %v1085 = vunpack.c.l.b16 %v297
    %v1086 = vunpack.c.l.b16 %v298
    %v1087 = vunpack.c.l.b16 %v299
    %v1088 = vunpack.c.l.b16 %v300
    %v1089 = vunpack.c.l.b16 %v301
    %v1090 = vunpack.c.l.b16 %v302
    %v1091 = vunpack.c.l.b16 %v303
    %v1092 = vunpack.c.l.b16 %v304
    %v1093 = vunpack.c.l.b16 %v305
    %v1094 = vunpack.c.l.b16 %v306
    %v1095 = vunpack.c.l.b16 %v307
    %v1096 = vunpack.c.l.b16 %v308
    %v1097 = vunpack.c.l.b16 %v309
    %v1098 = vunpack.c.l.b16 %v310
    %v1099 = vunpack.c.l.b16 %v311
    %v1100 = vunpack.c.l.b16 %v312
    %v1101 = vunpack.c.l.b16 %v313
    %v1102 = vunpack.c.l.b16 %v314
    %v1103 = vunpack.c.l.b16 %v315
    %v1104 = vunpack.c.l.b16 %v316
    %v1105 = vpack.c.b16 %v858, %v857
    %v1106 = vpack.c.b16 %v860, %v859
    %v1107 = vpack.c.b16 %v862, %v861
    %v1108 = vpack.c.b16 %v864, %v863
    %v1109 = vpack.c.b16 %v866, %v865
    %v1110 = vpack.c.b16 %v868, %v867
    %v1111 = vpack.c.b16 %v870, %v869
    %v1112 = vpack.c.b16 %v872, %v871
    %v1113 = vpack.c.b16 %v874, %v873
    %v1114 = vpack.c.b16 %v876, %v875
    %v1115 = vpack.c.b16 %v878, %v877
    %v1116 = vpack.c.b16 %v880, %v879
    %v1117 = vpack.c.b16 %v882, %v881
    %v1118 = vpack.c.b16 %v884, %v883
    %v1119 = vpack.c.b16 %v886, %v885
    %v1120 = vpack.c.b16 %v888, %v887
    %v1121 = vpack.c.b16 %v890, %v889
    %v1122 = vpack.c.b16 %v892, %v891
    %v1123 = vpack.c.b16 %v894, %v893
    %v1124 = vpack.c.b16 %v896, %v895
    %v1125 = vpack.c.b16 %v898, %v897
    %v1126 = vpack.c.b16 %v900, %v899
    %v1127 = vpack.c.b16 %v902, %v901
    %v1128 = vpack.c.b16 %v904, %v903
    %v1129 = vpack.c.b16 %v906, %v905
    %v1130 = vpack.c.b16 %v908, %v907
    %v1131 = vpack.c.b16 %v910, %v909
    %v1132 = vpack.c.b16 %v912, %v911
    %v1133 = vpack.c.b16 %v914, %v913
    %v1134 = vpack.c.b16 %v916, %v915
    %v1135 = vpack.c.b16 %v918, %v917
    %v1136 = vpack.c.b16 %v920, %v919
    %v1137 = vpack.c.b16 %v922, %v921
    %v1138 = vpack.c.b16 %v924, %v923
    %v1139 = vpack.c.b16 %v926, %v925
    %v1140 = vpack.c.b16 %v928, %v927
    %v1141 = vpack.c.b16 %v930, %v929
    %v1142 = vpack.c.b16 %v932, %v931
    %v1143 = vpack.c.b16 %v934, %v933
    %v1144 = vpack.c.b16 %v936, %v935
    %v1145 = vpack.c.b16 %v938, %v937
    %v1146 = vpack.c.b16 %v940, %v939
    %v1147 = vpack.c.b16 %v942, %v941
    %v1148 = vpack.c.b16 %v944, %v943
    %v1149 = vpack.c.b16 %v946, %v945
    %v1150 = vpack.c.b16 %v948, %v947
    %v1151 = vpack.c.b16 %v950, %v949
    %v1152 = vpack.c.b16 %v952, %v951
    %v1153 = vpack.c.b16 %v954, %v953
    %v1154 = vpack.c.b16 %v956, %v955
    %v1155 = vpack.c.b16 %v958, %v957
    %v1156 = vpack.c.b16 %v960, %v959
    %v1157 = vpack.c.b16 %v962, %v961
    %v1158 = vpack.c.b16 %v964, %v963
    %v1159 = vpack.c.b16 %v966, %v965
    %v1160 = vpack.c.b16 %v968, %v967
    %v1161 = vpack.c.b16 %v970, %v969
    %v1162 = vpack.c.b16 %v972, %v971
    %v1163 = vpack.c.b16 %v974, %v973
    %v1164 = vpack.c.b16 %v976, %v975
    %v1165 = vpack.c.b16 %v978, %v977
    %v1166 = vpack.c.b16 %v980, %v979
    %v1167 = vpack.c.b16 %v982, %v981
    %v1168 = vpack.c.b16 %v984, %v983
    %v1169 = vpack.c.b16 %v986, %v985
    %v1170 = vpack.c.b16 %v988, %v987
    %v1171 = vpack.c.b16 %v990, %v989
    %v1172 = vpack.c.b16 %v992, %v991
    %v1173 = vpack.c.b16 %v994, %v993
    %v1174 = vpack.c.b16 %v996, %v995
    %v1175 = vpack.c.b16 %v998, %v997
    %v1176 = vpack.c.b16 %v1000, %v999
    %v1177 = vpack.c.b16 %v1002, %v1001
    %v1178 = vpack.c.b16 %v1004, %v1003
    %v1179 = vpack.c.b16 %v1006, %v1005
    %v1180 = vpack.c.b16 %v1008, %v1007
    %v1181 = vpack.c.b16 %v1010, %v1009
    %v1182 = vpack.c.b16 %v1012, %v1011
    %v1183 = vpack.c.b16 %v1014, %v1013
    %v1184 = vpack.c.b16 %v1016, %v1015
    %v1185 = vpack.c.b16 %v1018, %v1017
    %v1186 = vpack.c.b16 %v1020, %v1019
    %v1187 = vpack.c.b16 %v1022, %v1021
    %v1188 = vpack.c.b16 %v1024, %v1023
    %v1189 = vpack.c.b16 %v1026, %v1025
    %v1190 = vpack.c.b16 %v1028, %v1027
    %v1191 = vpack.c.b16 %v1030, %v1029
    %v1192 = vpack.c.b16 %v1032, %v1031
    %v1193 = vpack.c.b16 %v1034, %v1033
    %v1194 = vpack.c.b16 %v1036, %v1035
    %v1195 = vpack.c.b16 %v1038, %v1037
    %v1196 = vpack.c.b16 %v1040, %v1039
    %v1197 = vpack.c.b16 %v1042, %v1041
    %v1198 = vpack.c.b16 %v1044, %v1043
    %v1199 = vpack.c.b16 %v1046, %v1045
    %v1200 = vpack.c.b16 %v1048, %v1047
    %v1201 = vpack.c.b16 %v1050, %v1049
    %v1202 = vpack.c.b16 %v1052, %v1051
    %v1203 = vpack.c.b16 %v1054, %v1053
    %v1204 = vpack.c.b16 %v1056, %v1055
    %v1205 = vpack.c.b16 %v1058, %v1057
    %v1206 = vpack.c.b16 %v1060, %v1059
    %v1207 = vpack.c.b16 %v1062, %v1061
    %v1208 = vpack.c.b16 %v1064, %v1063
    %v1209 = vpack.c.b16 %v1066, %v1065
    %v1210 = vpack.c.b16 %v1068, %v1067
    %v1211 = vpack.c.b16 %v1070, %v1069
    %v1212 = vpack.c.b16 %v1072, %v1071
    %v1213 = vpack.c.b16 %v1074, %v1073
    %v1214 = vpack.c.b16 %v1076, %v1075
    %v1215 = vpack.c.b16 %v1078, %v1077
    %v1216 = vpack.c.b16 %v1080, %v1079
    %v1217 = vpack.c.b16 %v1082, %v1081
    %v1218 = vpack.c.b16 %v1084, %v1083
    %v1219 = vpack.c.b16 %v1086, %v1085
    %v1220 = vpack.c.b16 %v1088, %v1087
    %v1221 = vpack.c.b16 %v1090, %v1089
    %v1222 = vpack.c.b16 %v1092, %v1091
    %v1223 = vpack.c.b16 %v1094, %v1093
    %v1224 = vpack.c.b16 %v1096, %v1095
    %v1225 = vpack.c.b16 %v1098, %v1097
    %v1226 = vpack.c.b16 %v1100, %v1099
    %v1227 = vpack.c.b16 %v1102, %v1101
    %v1228 = vpack.c.b16 %v1104, %v1103
    %vm1353 = vcmask 523264
    %v1355 = vsel %vm1353, %v500, 0
    %v1358 = vsel %vm1353, %v516, 0
    %v1361 = vsel %vm1353, %v532, 0
    %v1364 = vsel %vm1353, %v548, 0
    %1366 = vmatprep.subr.bf16.mxu0 0
    %1367 = vmatpush1.bf16.msra.mxu0 %v1105
    %1368 = vmatprep.subr.bf16.mxu0 0
    %1369 = vmatpush1.bf16.msra.mxu0 %v1106
    %1370 = vmatprep.subr.bf16.mxu0 0
    %1371 = vmatpush1.bf16.msra.mxu0 %v1107
    %1372 = vmatprep.subr.bf16.mxu0 0
    %1373 = vmatpush1.bf16.msra.mxu0 %v1108
    %1374 = vmatprep.subr.bf16.mxu0 0
    %1375 = vmatpush1.bf16.msra.mxu0 %v1109
    %1376 = vmatprep.subr.bf16.mxu0 0
    %1377 = vmatpush1.bf16.msra.mxu0 %v1110
    %1378 = vmatprep.subr.bf16.mxu0 0
    %1379 = vmatpush1.bf16.msra.mxu0 %v1111
    %1380 = vmatprep.subr.bf16.mxu0 0
    %1381 = vmatpush1.bf16.msra.mxu0 %v1112
    %1382 = vmatprep.subr.bf16.mxu0 0
    %1383 = vmatpush1.bf16.msra.mxu0 %v1113
    %1384 = vmatprep.subr.bf16.mxu0 0
    %1385 = vmatpush1.bf16.msra.mxu0 %v1114
    %1386 = vmatprep.subr.bf16.mxu0 0
    %1387 = vmatpush1.bf16.msra.mxu0 %v1115
    %1388 = vmatprep.subr.bf16.mxu0 0
    %1389 = vmatpush1.bf16.msra.mxu0 %v1116
    %1390 = vmatprep.subr.bf16.mxu0 0
    %1391 = vmatpush1.bf16.msra.mxu0 %v1117
    %1392 = vmatprep.subr.bf16.mxu0 0
    %1393 = vmatpush1.bf16.msra.mxu0 %v1118
    %1394 = vmatprep.subr.bf16.mxu0 0
    %1395 = vmatpush1.bf16.msra.mxu0 %v1119
    %1396 = vmatprep.subr.bf16.mxu0 0
    %1397 = vmatpush1.bf16.msra.mxu0 %v1120
    %1398 = vmatprep.mubr.bf16.mxu0 %v486
    %1399 = vmatmul.mubr.bf16.gmra.mrb[0].mxu0 %v485
    %v1400 = vpop.f32.mrb[0].mxu0
    %v1401 = vadd.f32 0.0, %v1400
    %v1402 = vpop.f32.mrb[0].mxu0
    %v1403 = vpop.f32.mrb[0].mxu0
    %v1404 = vadd.f32 0.0, %v1403
    %v1405 = vpop.f32.mrb[0].mxu0
    %1406 = vmatprep.mubr.bf16.mxu0 %v502
    %1407 = vmatmul.mubr.bf16.gmra.mrb[0].mxu0 %v501
    %v1408 = vpop.f32.mrb[0].mxu0
    %v1409 = vadd.f32 0.0, %v1408
    %v1410 = vpop.f32.mrb[0].mxu0
    %v1411 = vpop.f32.mrb[0].mxu0
    %v1412 = vadd.f32 0.0, %v1411
    %v1413 = vpop.f32.mrb[0].mxu0
    %1414 = vmatprep.mubr.bf16.mxu0 %v518
    %1415 = vmatmul.mubr.bf16.gmra.mrb[0].mxu0 %v517
    %v1416 = vpop.f32.mrb[0].mxu0
    %v1417 = vadd.f32 0.0, %v1416
    %v1418 = vpop.f32.mrb[0].mxu0
    %v1419 = vpop.f32.mrb[0].mxu0
    %v1420 = vadd.f32 0.0, %v1419
    %v1421 = vpop.f32.mrb[0].mxu0
    %1422 = vmatprep.mubr.bf16.mxu0 %v534
    %1423 = vmatmul.mubr.bf16.gmra.mrb[0].mxu0 %v533
    %v1424 = vpop.f32.mrb[0].mxu0
    %v1425 = vadd.f32 0.0, %v1424
    %v1426 = vpop.f32.mrb[0].mxu0
    %v1427 = vpop.f32.mrb[0].mxu0
    %v1428 = vpop.f32.mrb[0].mxu0
    %1429 = vdwg.mxu0
    %1430 = vmatprep.subr.bf16.mxu0 0
    %1431 = vmatpush1.bf16.msra.mxu0 %v1121
    %1432 = vmatprep.subr.bf16.mxu0 0
    %1433 = vmatpush1.bf16.msra.mxu0 %v1122
    %1434 = vmatprep.subr.bf16.mxu0 0
    %1435 = vmatpush1.bf16.msra.mxu0 %v1123
    %1436 = vmatprep.subr.bf16.mxu0 0
    %1437 = vmatpush1.bf16.msra.mxu0 %v1124
    %1438 = vmatprep.subr.bf16.mxu0 0
    %1439 = vmatpush1.bf16.msra.mxu0 %v1125
    %1440 = vmatprep.subr.bf16.mxu0 0
    %1441 = vmatpush1.bf16.msra.mxu0 %v1126
    %1442 = vmatprep.subr.bf16.mxu0 0
    %1443 = vmatpush1.bf16.msra.mxu0 %v1127
    %1444 = vmatprep.subr.bf16.mxu0 0
    %1445 = vmatpush1.bf16.msra.mxu0 %v1128
    %1446 = vmatprep.subr.bf16.mxu0 0
    %1447 = vmatpush1.bf16.msra.mxu0 %v1129
    %1448 = vmatprep.subr.bf16.mxu0 0
    %1449 = vmatpush1.bf16.msra.mxu0 %v1130
    %1450 = vmatprep.subr.bf16.mxu0 0
    %1451 = vmatpush1.bf16.msra.mxu0 %v1131
    %1452 = vmatprep.subr.bf16.mxu0 0
    %1453 = vmatpush1.bf16.msra.mxu0 %v1132
    %1454 = vmatprep.subr.bf16.mxu0 0
    %1455 = vmatpush1.bf16.msra.mxu0 %v1133
    %1456 = vmatprep.subr.bf16.mxu0 0
    %1457 = vmatpush1.bf16.msra.mxu0 %v1134
    %1458 = vmatprep.subr.bf16.mxu0 0
    %1459 = vmatpush1.bf16.msra.mxu0 %v1135
    %1460 = vmatprep.subr.bf16.mxu0 0
    %1461 = vmatpush1.bf16.msra.mxu0 %v1136
    %1462 = vmatprep.mubr.bf16.mxu0 %v488
    %1463 = vmatmul.mubr.bf16.gmra.mrb[0].mxu0 %v487
    %v1464 = vpop.f32.mrb[0].mxu0
    %v1465 = vadd.f32 %v1401, %v1464
    %v1466 = vpop.f32.mrb[0].mxu0
    %v1467 = vpop.f32.mrb[0].mxu0
    %v1468 = vadd.f32 %v1404, %v1467
    %v1469 = vpop.f32.mrb[0].mxu0
    %1470 = vmatprep.mubr.bf16.mxu0 %v504
    %1471 = vmatmul.mubr.bf16.gmra.mrb[0].mxu0 %v503
    %v1472 = vpop.f32.mrb[0].mxu0
    %v1473 = vadd.f32 %v1409, %v1472
    %v1474 = vpop.f32.mrb[0].mxu0
    %v1475 = vpop.f32.mrb[0].mxu0
    %v1476 = vadd.f32 %v1412, %v1475
    %v1477 = vpop.f32.mrb[0].mxu0
    %1478 = vmatprep.mubr.bf16.mxu0 %v520
    %1479 = vmatmul.mubr.bf16.gmra.mrb[0].mxu0 %v519
    %v1480 = vpop.f32.mrb[0].mxu0
    %v1481 = vadd.f32 %v1417, %v1480
    %v1482 = vpop.f32.mrb[0].mxu0
    %v1483 = vpop.f32.mrb[0].mxu0
    %v1484 = vadd.f32 %v1420, %v1483
    %v1485 = vpop.f32.mrb[0].mxu0
    %1486 = vmatprep.mubr.bf16.mxu0 %v536
    %1487 = vmatmul.mubr.bf16.gmra.mrb[0].mxu0 %v535
    %v1488 = vpop.f32.mrb[0].mxu0
    %v1489 = vadd.f32 %v1425, %v1488
    %v1490 = vpop.f32.mrb[0].mxu0
    %v1491 = vpop.f32.mrb[0].mxu0
    %v1492 = vpop.f32.mrb[0].mxu0
    %1493 = vdwg.mxu0
    %1494 = vmatprep.subr.bf16.mxu0 0
    %1495 = vmatpush1.bf16.msra.mxu0 %v1137
    %1496 = vmatprep.subr.bf16.mxu0 0
    %1497 = vmatpush1.bf16.msra.mxu0 %v1138
    %1498 = vmatprep.subr.bf16.mxu0 0
    %1499 = vmatpush1.bf16.msra.mxu0 %v1139
    %1500 = vmatprep.subr.bf16.mxu0 0
    %1501 = vmatpush1.bf16.msra.mxu0 %v1140
    %1502 = vmatprep.subr.bf16.mxu0 0
    %1503 = vmatpush1.bf16.msra.mxu0 %v1141
    %1504 = vmatprep.subr.bf16.mxu0 0
    %1505 = vmatpush1.bf16.msra.mxu0 %v1142
    %1506 = vmatprep.subr.bf16.mxu0 0
    %1507 = vmatpush1.bf16.msra.mxu0 %v1143
    %1508 = vmatprep.subr.bf16.mxu0 0
    %1509 = vmatpush1.bf16.msra.mxu0 %v1144
    %1510 = vmatprep.subr.bf16.mxu0 0
    %1511 = vmatpush1.bf16.msra.mxu0 %v1145
    %1512 = vmatprep.subr.bf16.mxu0 0
    %1513 = vmatpush1.bf16.msra.mxu0 %v1146
    %1514 = vmatprep.subr.bf16.mxu0 0
    %1515 = vmatpush1.bf16.msra.mxu0 %v1147
    %1516 = vmatprep.subr.bf16.mxu0 0
    %1517 = vmatpush1.bf16.msra.mxu0 %v1148
    %1518 = vmatprep.subr.bf16.mxu0 0
    %1519 = vmatpush1.bf16.msra.mxu0 %v1149
    %1520 = vmatprep.subr.bf16.mxu0 0
    %1521 = vmatpush1.bf16.msra.mxu0 %v1150
    %1522 = vmatprep.subr.bf16.mxu0 0
    %1523 = vmatpush1.bf16.msra.mxu0 %v1151
    %1524 = vmatprep.subr.bf16.mxu0 0
    %1525 = vmatpush1.bf16.msra.mxu0 %v1152
    %1526 = vmatprep.mubr.bf16.mxu0 %v490
    %1527 = vmatmul.mubr.bf16.gmra.mrb[0].mxu0 %v489
    %v1528 = vpop.f32.mrb[0].mxu0
    %v1529 = vadd.f32 %v1465, %v1528
    %v1530 = vpop.f32.mrb[0].mxu0
    %v1531 = vpop.f32.mrb[0].mxu0
    %v1532 = vadd.f32 %v1468, %v1531
    %v1533 = vpop.f32.mrb[0].mxu0
    %1534 = vmatprep.mubr.bf16.mxu0 %v506
    %1535 = vmatmul.mubr.bf16.gmra.mrb[0].mxu0 %v505
    %v1536 = vpop.f32.mrb[0].mxu0
    %v1537 = vadd.f32 %v1473, %v1536
    %v1538 = vpop.f32.mrb[0].mxu0
    %v1539 = vpop.f32.mrb[0].mxu0
    %v1540 = vadd.f32 %v1476, %v1539
    %v1541 = vpop.f32.mrb[0].mxu0
    %1542 = vmatprep.mubr.bf16.mxu0 %v522
    %1543 = vmatmul.mubr.bf16.gmra.mrb[0].mxu0 %v521
    %v1544 = vpop.f32.mrb[0].mxu0
    %v1545 = vadd.f32 %v1481, %v1544
    %v1546 = vpop.f32.mrb[0].mxu0
    %v1547 = vpop.f32.mrb[0].mxu0
    %v1548 = vadd.f32 %v1484, %v1547
    %v1549 = vpop.f32.mrb[0].mxu0
    %1550 = vmatprep.mubr.bf16.mxu0 %v538
    %1551 = vmatmul.mubr.bf16.gmra.mrb[0].mxu0 %v537
    %v1552 = vpop.f32.mrb[0].mxu0
    %v1553 = vadd.f32 %v1489, %v1552
    %v1554 = vpop.f32.mrb[0].mxu0
    %v1555 = vpop.f32.mrb[0].mxu0
    %v1556 = vpop.f32.mrb[0].mxu0
    %1557 = vdwg.mxu0
    %1558 = vmatprep.subr.bf16.mxu0 0
    %1559 = vmatpush1.bf16.msra.mxu0 %v1153
    %1560 = vmatprep.subr.bf16.mxu0 0
    %1561 = vmatpush1.bf16.msra.mxu0 %v1154
    %1562 = vmatprep.subr.bf16.mxu0 0
    %1563 = vmatpush1.bf16.msra.mxu0 %v1155
    %1564 = vmatprep.subr.bf16.mxu0 0
    %1565 = vmatpush1.bf16.msra.mxu0 %v1156
    %1566 = vmatprep.subr.bf16.mxu0 0
    %1567 = vmatpush1.bf16.msra.mxu0 %v1157
    %1568 = vmatprep.subr.bf16.mxu0 0
    %1569 = vmatpush1.bf16.msra.mxu0 %v1158
    %1570 = vmatprep.subr.bf16.mxu0 0
    %1571 = vmatpush1.bf16.msra.mxu0 %v1159
    %1572 = vmatprep.subr.bf16.mxu0 0
    %1573 = vmatpush1.bf16.msra.mxu0 %v1160
    %1574 = vmatprep.subr.bf16.mxu0 0
    %1575 = vmatpush1.bf16.msra.mxu0 %v1161
    %1576 = vmatprep.subr.bf16.mxu0 0
    %1577 = vmatpush1.bf16.msra.mxu0 %v1162
    %1578 = vmatprep.subr.bf16.mxu0 0
    %1579 = vmatpush1.bf16.msra.mxu0 %v1163
    %1580 = vmatprep.subr.bf16.mxu0 0
    %1581 = vmatpush1.bf16.msra.mxu0 %v1164
    %1582 = vmatprep.subr.bf16.mxu0 0
    %1583 = vmatpush1.bf16.msra.mxu0 %v1165
    %1584 = vmatprep.subr.bf16.mxu0 0
    %1585 = vmatpush1.bf16.msra.mxu0 %v1166
    %1586 = vmatprep.subr.bf16.mxu0 0
    %1587 = vmatpush1.bf16.msra.mxu0 %v1167
    %1588 = vmatprep.subr.bf16.mxu0 0
    %1589 = vmatpush1.bf16.msra.mxu0 %v1168
    %1590 = vmatprep.mubr.bf16.mxu0 %v492
    %1591 = vmatmul.mubr.bf16.gmra.mrb[0].mxu0 %v491
    %v1592 = vpop.f32.mrb[0].mxu0
    %v1593 = vadd.f32 %v1529, %v1592
    %v1594 = vpop.f32.mrb[0].mxu0
    %v1595 = vpop.f32.mrb[0].mxu0
    %v1596 = vadd.f32 %v1532, %v1595
    %v1597 = vpop.f32.mrb[0].mxu0
    %1598 = vmatprep.mubr.bf16.mxu0 %v508
    %1599 = vmatmul.mubr.bf16.gmra.mrb[0].mxu0 %v507
    %v1600 = vpop.f32.mrb[0].mxu0
    %v1601 = vadd.f32 %v1537, %v1600
    %v1602 = vpop.f32.mrb[0].mxu0
    %v1603 = vpop.f32.mrb[0].mxu0
    %v1604 = vadd.f32 %v1540, %v1603
    %v1605 = vpop.f32.mrb[0].mxu0
    %1606 = vmatprep.mubr.bf16.mxu0 %v524
    %1607 = vmatmul.mubr.bf16.gmra.mrb[0].mxu0 %v523
    %v1608 = vpop.f32.mrb[0].mxu0
    %v1609 = vadd.f32 %v1545, %v1608
    %v1610 = vpop.f32.mrb[0].mxu0
    %v1611 = vpop.f32.mrb[0].mxu0
    %v1612 = vadd.f32 %v1548, %v1611
    %v1613 = vpop.f32.mrb[0].mxu0
    %1614 = vmatprep.mubr.bf16.mxu0 %v540
    %1615 = vmatmul.mubr.bf16.gmra.mrb[0].mxu0 %v539
    %v1616 = vpop.f32.mrb[0].mxu0
    %v1617 = vadd.f32 %v1553, %v1616
    %v1618 = vpop.f32.mrb[0].mxu0
    %v1619 = vpop.f32.mrb[0].mxu0
    %v1620 = vpop.f32.mrb[0].mxu0
    %1621 = vdwg.mxu0
    %1622 = vmatprep.subr.bf16.mxu0 0
    %1623 = vmatpush1.bf16.msra.mxu0 %v1169
    %1624 = vmatprep.subr.bf16.mxu0 0
    %1625 = vmatpush1.bf16.msra.mxu0 %v1170
    %1626 = vmatprep.subr.bf16.mxu0 0
    %1627 = vmatpush1.bf16.msra.mxu0 %v1171
    %1628 = vmatprep.subr.bf16.mxu0 0
    %1629 = vmatpush1.bf16.msra.mxu0 %v1172
    %1630 = vmatprep.subr.bf16.mxu0 0
    %1631 = vmatpush1.bf16.msra.mxu0 %v1173
    %1632 = vmatprep.subr.bf16.mxu0 0
    %1633 = vmatpush1.bf16.msra.mxu0 %v1174
    %1634 = vmatprep.subr.bf16.mxu0 0
    %1635 = vmatpush1.bf16.msra.mxu0 %v1175
    %1636 = vmatprep.subr.bf16.mxu0 0
    %1637 = vmatpush1.bf16.msra.mxu0 %v1176
    %1638 = vmatprep.subr.bf16.mxu0 0
    %1639 = vmatpush1.bf16.msra.mxu0 %v1177
    %1640 = vmatprep.subr.bf16.mxu0 0
    %1641 = vmatpush1.bf16.msra.mxu0 %v1178
    %1642 = vmatprep.subr.bf16.mxu0 0
    %1643 = vmatpush1.bf16.msra.mxu0 %v1179
    %1644 = vmatprep.subr.bf16.mxu0 0
    %1645 = vmatpush1.bf16.msra.mxu0 %v1180
    %1646 = vmatprep.subr.bf16.mxu0 0
    %1647 = vmatpush1.bf16.msra.mxu0 %v1181
    %1648 = vmatprep.subr.bf16.mxu0 0
    %1649 = vmatpush1.bf16.msra.mxu0 %v1182
    %1650 = vmatprep.subr.bf16.mxu0 0
    %1651 = vmatpush1.bf16.msra.mxu0 %v1183
    %1652 = vmatprep.subr.bf16.mxu0 0
    %1653 = vmatpush1.bf16.msra.mxu0 %v1184
    %1654 = vmatprep.mubr.bf16.mxu0 %v494
    %1655 = vmatmul.mubr.bf16.gmra.mrb[0].mxu0 %v493
    %v1656 = vpop.f32.mrb[0].mxu0
    %v1657 = vadd.f32 %v1593, %v1656
    %v1658 = vpop.f32.mrb[0].mxu0
    %v1659 = vpop.f32.mrb[0].mxu0
    %v1660 = vadd.f32 %v1596, %v1659
    %v1661 = vpop.f32.mrb[0].mxu0
    %1662 = vmatprep.mubr.bf16.mxu0 %v510
    %1663 = vmatmul.mubr.bf16.gmra.mrb[0].mxu0 %v509
    %v1664 = vpop.f32.mrb[0].mxu0
    %v1665 = vadd.f32 %v1601, %v1664
    %v1666 = vpop.f32.mrb[0].mxu0
    %v1667 = vpop.f32.mrb[0].mxu0
    %v1668 = vadd.f32 %v1604, %v1667
    %v1669 = vpop.f32.mrb[0].mxu0
    %1670 = vmatprep.mubr.bf16.mxu0 %v526
    %1671 = vmatmul.mubr.bf16.gmra.mrb[0].mxu0 %v525
    %v1672 = vpop.f32.mrb[0].mxu0
    %v1673 = vadd.f32 %v1609, %v1672
    %v1674 = vpop.f32.mrb[0].mxu0
    %v1675 = vpop.f32.mrb[0].mxu0
    %v1676 = vadd.f32 %v1612, %v1675
    %v1677 = vpop.f32.mrb[0].mxu0
    %1678 = vmatprep.mubr.bf16.mxu0 %v542
    %1679 = vmatmul.mubr.bf16.gmra.mrb[0].mxu0 %v541
    %v1680 = vpop.f32.mrb[0].mxu0
    %v1681 = vadd.f32 %v1617, %v1680
    %v1682 = vpop.f32.mrb[0].mxu0
    %v1683 = vpop.f32.mrb[0].mxu0
    %v1684 = vpop.f32.mrb[0].mxu0
    %1685 = vdwg.mxu0
    %1686 = vmatprep.subr.bf16.mxu0 0
    %1687 = vmatpush1.bf16.msra.mxu0 %v1185
    %1688 = vmatprep.subr.bf16.mxu0 0
    %1689 = vmatpush1.bf16.msra.mxu0 %v1186
    %1690 = vmatprep.subr.bf16.mxu0 0
    %1691 = vmatpush1.bf16.msra.mxu0 %v1187
    %1692 = vmatprep.subr.bf16.mxu0 0
    %1693 = vmatpush1.bf16.msra.mxu0 %v1188
    %1694 = vmatprep.subr.bf16.mxu0 0
    %1695 = vmatpush1.bf16.msra.mxu0 %v1189
    %1696 = vmatprep.subr.bf16.mxu0 0
    %1697 = vmatpush1.bf16.msra.mxu0 %v1190
    %1698 = vmatprep.subr.bf16.mxu0 0
    %1699 = vmatpush1.bf16.msra.mxu0 %v1191
    %1700 = vmatprep.subr.bf16.mxu0 0
    %1701 = vmatpush1.bf16.msra.mxu0 %v1192
    %1702 = vmatprep.subr.bf16.mxu0 0
    %1703 = vmatpush1.bf16.msra.mxu0 %v1193
    %1704 = vmatprep.subr.bf16.mxu0 0
    %1705 = vmatpush1.bf16.msra.mxu0 %v1194
    %1706 = vmatprep.subr.bf16.mxu0 0
    %1707 = vmatpush1.bf16.msra.mxu0 %v1195
    %1708 = vmatprep.subr.bf16.mxu0 0
    %1709 = vmatpush1.bf16.msra.mxu0 %v1196
    %1710 = vmatprep.subr.bf16.mxu0 0
    %1711 = vmatpush1.bf16.msra.mxu0 %v1197
    %1712 = vmatprep.subr.bf16.mxu0 0
    %1713 = vmatpush1.bf16.msra.mxu0 %v1198
    %1714 = vmatprep.subr.bf16.mxu0 0
    %1715 = vmatpush1.bf16.msra.mxu0 %v1199
    %1716 = vmatprep.subr.bf16.mxu0 0
    %1717 = vmatpush1.bf16.msra.mxu0 %v1200
    %1718 = vmatprep.mubr.bf16.mxu0 %v496
    %1719 = vmatmul.mubr.bf16.gmra.mrb[0].mxu0 %v495
    %v1720 = vpop.f32.mrb[0].mxu0
    %v1721 = vadd.f32 %v1657, %v1720
    %v1722 = vpop.f32.mrb[0].mxu0
    %v1723 = vpop.f32.mrb[0].mxu0
    %v1724 = vadd.f32 %v1660, %v1723
    %v1725 = vpop.f32.mrb[0].mxu0
    %1726 = vmatprep.mubr.bf16.mxu0 %v512
    %1727 = vmatmul.mubr.bf16.gmra.mrb[0].mxu0 %v511
    %v1728 = vpop.f32.mrb[0].mxu0
    %v1729 = vadd.f32 %v1665, %v1728
    %v1730 = vpop.f32.mrb[0].mxu0
    %v1731 = vpop.f32.mrb[0].mxu0
    %v1732 = vadd.f32 %v1668, %v1731
    %v1733 = vpop.f32.mrb[0].mxu0
    %1734 = vmatprep.mubr.bf16.mxu0 %v528
    %1735 = vmatmul.mubr.bf16.gmra.mrb[0].mxu0 %v527
    %v1736 = vpop.f32.mrb[0].mxu0
    %v1737 = vadd.f32 %v1673, %v1736
    %v1738 = vpop.f32.mrb[0].mxu0
    %v1739 = vpop.f32.mrb[0].mxu0
    %v1740 = vadd.f32 %v1676, %v1739
    %v1741 = vpop.f32.mrb[0].mxu0
    %1742 = vmatprep.mubr.bf16.mxu0 %v544
    %1743 = vmatmul.mubr.bf16.gmra.mrb[0].mxu0 %v543
    %v1744 = vpop.f32.mrb[0].mxu0
    %v1745 = vadd.f32 %v1681, %v1744
    %v1746 = vpop.f32.mrb[0].mxu0
    %v1747 = vpop.f32.mrb[0].mxu0
    %v1748 = vpop.f32.mrb[0].mxu0
    %1749 = vdwg.mxu0
    %1750 = vmatprep.subr.bf16.mxu0 0
    %1751 = vmatpush1.bf16.msra.mxu0 %v1201
    %1752 = vmatprep.subr.bf16.mxu0 0
    %1753 = vmatpush1.bf16.msra.mxu0 %v1202
    %1754 = vmatprep.subr.bf16.mxu0 0
    %1755 = vmatpush1.bf16.msra.mxu0 %v1203
    %1756 = vmatprep.subr.bf16.mxu0 0
    %1757 = vmatpush1.bf16.msra.mxu0 %v1204
    %1758 = vmatprep.subr.bf16.mxu0 0
    %1759 = vmatpush1.bf16.msra.mxu0 %v1205
    %1760 = vmatprep.subr.bf16.mxu0 0
    %1761 = vmatpush1.bf16.msra.mxu0 %v1206
    %1762 = vmatprep.subr.bf16.mxu0 0
    %1763 = vmatpush1.bf16.msra.mxu0 %v1207
    %1764 = vmatprep.subr.bf16.mxu0 0
    %1765 = vmatpush1.bf16.msra.mxu0 %v1208
    %1766 = vmatprep.subr.bf16.mxu0 0
    %1767 = vmatpush1.bf16.msra.mxu0 %v1209
    %1768 = vmatprep.subr.bf16.mxu0 0
    %1769 = vmatpush1.bf16.msra.mxu0 %v1210
    %1770 = vmatprep.subr.bf16.mxu0 0
    %1771 = vmatpush1.bf16.msra.mxu0 %v1211
    %1772 = vmatprep.subr.bf16.mxu0 0
    %1773 = vmatpush1.bf16.msra.mxu0 %v1212
    %1774 = vmatprep.subr.bf16.mxu0 0
    %1775 = vmatpush1.bf16.msra.mxu0 %v1213
    %1776 = vmatprep.subr.bf16.mxu0 0
    %1777 = vmatpush1.bf16.msra.mxu0 %v1214
    %1778 = vmatprep.subr.bf16.mxu0 0
    %1779 = vmatpush1.bf16.msra.mxu0 %v1215
    %1780 = vmatprep.subr.bf16.mxu0 0
    %1781 = vmatpush1.bf16.msra.mxu0 %v1216
    %1782 = vmatprep.mubr.bf16.mxu0 %v498
    %1783 = vmatmul.mubr.bf16.gmra.mrb[0].mxu0 %v497
    %v1784 = vpop.f32.mrb[0].mxu0
    %v1785 = vadd.f32 %v1721, %v1784
    %v1786 = vpop.f32.mrb[0].mxu0
    %v1787 = vpop.f32.mrb[0].mxu0
    %v1788 = vadd.f32 %v1724, %v1787
    %v1789 = vpop.f32.mrb[0].mxu0
    %1790 = vmatprep.mubr.bf16.mxu0 %v514
    %1791 = vmatmul.mubr.bf16.gmra.mrb[0].mxu0 %v513
    %v1792 = vpop.f32.mrb[0].mxu0
    %v1793 = vadd.f32 %v1729, %v1792
    %v1794 = vpop.f32.mrb[0].mxu0
    %v1795 = vpop.f32.mrb[0].mxu0
    %v1796 = vadd.f32 %v1732, %v1795
    %v1797 = vpop.f32.mrb[0].mxu0
    %1798 = vmatprep.mubr.bf16.mxu0 %v530
    %1799 = vmatmul.mubr.bf16.gmra.mrb[0].mxu0 %v529
    %v1800 = vpop.f32.mrb[0].mxu0
    %v1801 = vadd.f32 %v1737, %v1800
    %v1802 = vpop.f32.mrb[0].mxu0
    %v1803 = vpop.f32.mrb[0].mxu0
    %v1804 = vadd.f32 %v1740, %v1803
    %v1805 = vpop.f32.mrb[0].mxu0
    %1806 = vmatprep.mubr.bf16.mxu0 %v546
    %1807 = vmatmul.mubr.bf16.gmra.mrb[0].mxu0 %v545
    %v1808 = vpop.f32.mrb[0].mxu0
    %v1809 = vadd.f32 %v1745, %v1808
    %v1810 = vpop.f32.mrb[0].mxu0
    %v1811 = vpop.f32.mrb[0].mxu0
    %v1812 = vpop.f32.mrb[0].mxu0
    %1813 = vdwg.mxu0
    %1814 = vmatprep.subr.bf16.mxu0 0
    %1815 = vmatpush1.bf16.msra.mxu0 %v1217
    %1816 = vmatprep.subr.bf16.mxu0 0
    %1817 = vmatpush1.bf16.msra.mxu0 %v1218
    %1818 = vmatprep.subr.bf16.mxu0 0
    %1819 = vmatpush1.bf16.msra.mxu0 %v1219
    %1820 = vmatprep.subr.bf16.mxu0 0
    %1821 = vmatpush1.bf16.msra.mxu0 %v1220
    %1822 = vmatprep.subr.bf16.mxu0 0
    %1823 = vmatpush1.bf16.msra.mxu0 %v1221
    %1824 = vmatprep.subr.bf16.mxu0 0
    %1825 = vmatpush1.bf16.msra.mxu0 %v1222
    %1826 = vmatprep.subr.bf16.mxu0 0
    %1827 = vmatpush1.bf16.msra.mxu0 %v1223
    %1828 = vmatprep.subr.bf16.mxu0 0
    %1829 = vmatpush1.bf16.msra.mxu0 %v1224
    %1830 = vmatprep.subr.bf16.mxu0 0
    %1831 = vmatpush1.bf16.msra.mxu0 %v1225
    %1832 = vmatprep.subr.bf16.mxu0 0
    %1833 = vmatpush1.bf16.msra.mxu0 %v1226
    %1834 = vmatprep.subr.bf16.mxu0 0
    %1835 = vmatpush1.bf16.msra.mxu0 %v1227
    %1836 = vmatprep.subr.bf16.mxu0 0
    %1837 = vmatpush1.bf16.msra.mxu0 %v1228
    %1838 = vmatprep.subr.bf16.mxu0 0
    %1839 = vmatpush1.bf16.msra.mxu0 0
    %1840 = vmatprep.subr.bf16.mxu0 0
    %1841 = vmatpush1.bf16.msra.mxu0 0
    %1842 = vmatprep.subr.bf16.mxu0 0
    %1843 = vmatpush1.bf16.msra.mxu0 0
    %1844 = vmatprep.subr.bf16.mxu0 0
    %1845 = vmatpush1.bf16.msra.mxu0 0
    %1846 = vmatprep.mubr.bf16.mxu0 %v1355
    %1847 = vmatmul.mubr.bf16.gmra.mrb[0].mxu0 %v499
    %v1848 = vpop.f32.mrb[0].mxu0
    %v1849 = vadd.f32 %v1785, %v1848
    %v1850 = vpop.f32.mrb[0].mxu0
    %v1851 = vpop.f32.mrb[0].mxu0
    %v1852 = vadd.f32 %v1788, %v1851
    %v1853 = vpop.f32.mrb[0].mxu0
    %1854 = vmatprep.mubr.bf16.mxu0 %v1358
    %1855 = vmatmul.mubr.bf16.gmra.mrb[0].mxu0 %v515
    %v1856 = vpop.f32.mrb[0].mxu0
    %v1857 = vadd.f32 %v1793, %v1856
    %v1858 = vpop.f32.mrb[0].mxu0
    %v1859 = vpop.f32.mrb[0].mxu0
    %v1860 = vadd.f32 %v1796, %v1859
    %v1861 = vpop.f32.mrb[0].mxu0
    %1862 = vmatprep.mubr.bf16.mxu0 %v1361
    %1863 = vmatmul.mubr.bf16.gmra.mrb[0].mxu0 %v531
    %v1864 = vpop.f32.mrb[0].mxu0
    %v1865 = vadd.f32 %v1801, %v1864
    %v1866 = vpop.f32.mrb[0].mxu0
    %v1867 = vpop.f32.mrb[0].mxu0
    %v1868 = vadd.f32 %v1804, %v1867
    %v1869 = vpop.f32.mrb[0].mxu0
    %1870 = vmatprep.mubr.bf16.mxu0 %v1364
    %1871 = vmatmul.mubr.bf16.gmra.mrb[0].mxu0 %v547
    %v1872 = vpop.f32.mrb[0].mxu0
    %v1873 = vadd.f32 %v1809, %v1872
    %v1874 = vpop.f32.mrb[0].mxu0
    %v1875 = vpop.f32.mrb[0].mxu0
    %v1876 = vpop.f32.mrb[0].mxu0
    %1877 = vdwg.mxu0
    %v1878 = vtanh.pop %v1849
    %v1879 = vtanh.pop %v1852
    %v1880 = vtanh.pop %v1857
    %v1881 = vtanh.pop %v1860
    %v1882 = vtanh.pop %v1865
    %v1883 = vtanh.pop %v1868
    %v1884 = vtanh.pop %v1873
    %1885 = vst [vmem:[#allocation2] sm:$0xff] %v1878
    %1886 = vst [vmem:[#allocation2 + $0x8] sm:$0xff] %v1879
    %1887 = vst [vmem:[#allocation2 + $0x10] sm:$0xff] %v1880
    %1888 = vst [vmem:[#allocation2 + $0x18] sm:$0xff] %v1881
    %1889 = vst [vmem:[#allocation2 + $0x20] sm:$0xff] %v1882
    %1890 = vst [vmem:[#allocation2 + $0x28] sm:$0xff] %v1883
    %1891 = vst [vmem:[#allocation2 + $0x30] sm:$0xff] %v1884
    // Predicated region
    $region10: #{generator_forward.7} parent=1 // pred_check
      _
    $region11: #{generator_forward.7} parent=1 // pred_check_branch
      %1893 = sbr.rel (0) target = $region13
    $region12: #{generator_forward.7} parent=1 // pred_region
      %s1895 = ssub.s32 896, 896
      %1896 = vsyncadd [#allocation3], %s1895
      %s1897 = sshll.u32 [#allocation2], 4
      %s1898 = int_to_ptr.vmem [resolvable:$true] %s1897
      %1903 = dma.vmem_to_hbm [thread:$0]  %s1898, 896, %s2, [#allocation3], 128, 128, 8
    $region13: #{generator_forward.7} parent=1 // pred_fallthru
      _
    // Predicated region
    $region14: #{generator_forward.7} parent=1 // pred_check
      _
    $region15: #{generator_forward.7} parent=1 // pred_check_branch
      %1905 = sbr.rel (0) target = $region17
    $region16: #{generator_forward.7} parent=1 // pred_region
      %1906 = dma.done [#allocation3], 896
    $region17: #{generator_forward.7} parent=1 // pred_fallthru
      _
    %1907 = vsyncpa [#allocation3], 1

</llo_original>
